<compile_context>
chip_gen: v7x
topology: tpu7x:2x2x1
jax: 0.10.0
libtpu: 0.0.40
codegen_flags: <defaults>
</compile_context>

<pallas_src>
import functools
import math

import numpy as np
import jax
import jax.numpy as jnp
from jax.experimental import pallas as pl
from jax.experimental.pallas import tpu as pltpu

F32 = jnp.float32
BF16 = jnp.bfloat16


def _vmem_limit_bytes():
    cap = 128 * 1024 * 1024
    try:
        info = pltpu.get_tpu_info()
        cap = int(getattr(info, "vmem_capacity_bytes", cap))
    except Exception:
        pass
    # leave headroom for double-buffered inputs / compiler scratch
    return max(16 * 1024 * 1024, min(cap * 5 // 8, 80 * 1024 * 1024))


VMEM_LIMIT = _vmem_limit_bytes()


def _cparams(dims=None):
    return pltpu.CompilerParams(dimension_semantics=dims,
                                vmem_limit_bytes=VMEM_LIMIT)


def _vspec():
    return pl.BlockSpec(memory_space=pltpu.MemorySpace.VMEM)


def _sspec():
    return pl.BlockSpec(memory_space=pltpu.MemorySpace.SMEM)


def _wspec(shape):
    # full-array block, independent of the grid index
    return pl.BlockSpec(shape, lambda *_: (0,) * len(shape))


# ---------------------------------------------------------------------------
# in-kernel helpers (traced)
# ---------------------------------------------------------------------------

def _ln(z, g, b, eps):
    mu = jnp.mean(z, axis=-1, keepdims=True)
    var = jnp.mean((z - mu) ** 2, axis=-1, keepdims=True)
    return (z - mu) * jax.lax.rsqrt(var + eps) * g + b


def _softmax(s):
    m = jnp.max(s, axis=-1, keepdims=True)
    p = jnp.exp(s - m)
    return p * pl.reciprocal(jnp.sum(p, axis=-1, keepdims=True), approx=True)


# ---------------------------------------------------------------------------
# small generic kernels (LayerNorm on embeddings, memory-KV projection)
# ---------------------------------------------------------------------------

def _layernorm_kernel(x_ref, g_ref, b_ref, o_ref, *, eps):
    o_ref[...] = _ln(x_ref[...], g_ref[...], b_ref[...], eps)


def pallas_layernorm(x, g, b, eps=1e-5):
    M, D = x.shape
    kern = functools.partial(_layernorm_kernel, eps=eps)
    return pl.pallas_call(
        kern,
        out_shape=jax.ShapeDtypeStruct((M, D), F32),
        compiler_params=_cparams(),
    )(x.astype(F32), g.reshape(1, D).astype(F32), b.reshape(1, D).astype(F32))


def _linear_kernel(x_ref, w_ref, b_ref, o_ref):
    o_ref[...] = jnp.dot(x_ref[...], w_ref[...],
                         preferred_element_type=jnp.float32) + b_ref[...]


def pallas_linear(x, w, b):
    M, K = x.shape
    N = w.shape[1]
    return pl.pallas_call(
        _linear_kernel,
        out_shape=jax.ShapeDtypeStruct((M, N), F32),
        compiler_params=_cparams(),
    )(x.astype(BF16), w.astype(BF16), b.reshape(1, N).astype(F32))


# ---------------------------------------------------------------------------
# fused encoder layer (post-LN BERT layer, gelu FFN) — grid over batch
# ---------------------------------------------------------------------------

def _enc_layer_kernel(x_ref, mask_ref, wqkv_ref, bqkv_ref, wo_ref, bo_ref,
                      ln1g_ref, ln1b_ref, w1_ref, b1_ref, w2_ref, b2_ref,
                      ln2g_ref, ln2b_ref, y_ref, *, heads, eps):
    x = x_ref[0]                                        # (S, D) f32
    S, D = x.shape
    dh = D // heads
    scale = 1.0 / math.sqrt(dh)

    qkv = jnp.dot(x.astype(BF16), wqkv_ref[...],
                  preferred_element_type=jnp.float32) + bqkv_ref[...]   # (S, 3D)
    kbias = jnp.where(mask_ref[0] > 0.0, 0.0, -1e9)     # (1, S) key padding bias

    ctx = jnp.zeros((S, D), jnp.float32)
    for h in range(heads):
        sl = slice(h * dh, (h + 1) * dh)
        q_h = qkv[:, sl].astype(BF16)                                   # (S, dh)
        k_h = qkv[:, D + h * dh:D + (h + 1) * dh].astype(BF16)
        v_h = qkv[:, 2 * D + h * dh:2 * D + (h + 1) * dh].astype(BF16)
        s = jax.lax.dot_general(q_h, k_h, (((1,), (1,)), ((), ())),
                                preferred_element_type=jnp.float32) * scale + kbias
        p = _softmax(s)
        o_h = jnp.dot(p.astype(BF16), v_h, preferred_element_type=jnp.float32)
        # accumulate through the output projection -> lane-dense (S, D)
        ctx = ctx + jnp.dot(o_h.astype(BF16), wo_ref[sl, :],
                            preferred_element_type=jnp.float32)

    y1 = _ln(x + ctx + bo_ref[...], ln1g_ref[...], ln1b_ref[...], eps)
    h1 = jax.nn.gelu(jnp.dot(y1.astype(BF16), w1_ref[...],
                             preferred_element_type=jnp.float32) + b1_ref[...])
    y2 = jnp.dot(h1.astype(BF16), w2_ref[...],
                 preferred_element_type=jnp.float32) + b2_ref[...]
    y_ref[0] = _ln(y1 + y2, ln2g_ref[...], ln2b_ref[...], eps)


def pallas_encoder_layer(x, mask3, lw, heads, eps=1e-5):
    # x: (B, S, D) f32 ; mask3: (B, 1, S) f32 (1 = valid)
    B, S, D = x.shape
    FF = lw["w1"].shape[1]
    aw = lw["attn"]
    kern = functools.partial(_enc_layer_kernel, heads=heads, eps=eps)
    return pl.pallas_call(
        kern,
        grid=(B,),
        out_shape=jax.ShapeDtypeStruct((B, S, D), F32),
        in_specs=[pl.BlockSpec((1, S, D), lambda b: (b, 0, 0)),
                  pl.BlockSpec((1, 1, S), lambda b: (b, 0, 0)),
                  _wspec((D, 3 * D)), _wspec((1, 3 * D)),
                  _wspec((D, D)), _wspec((1, D)),
                  _wspec((1, D)), _wspec((1, D)),
                  _wspec((D, FF)), _wspec((1, FF)),
                  _wspec((FF, D)), _wspec((1, D)),
                  _wspec((1, D)), _wspec((1, D))],
        out_specs=pl.BlockSpec((1, S, D), lambda b: (b, 0, 0)),
        compiler_params=_cparams(("parallel",)),
    )(x.astype(F32), mask3.astype(F32),
      aw["w_qkv"].astype(BF16), aw["b_qkv"].reshape(1, 3 * D).astype(F32),
      aw["wo"].astype(BF16), aw["bo"].reshape(1, D).astype(F32),
      lw["ln1_g"].reshape(1, D).astype(F32), lw["ln1_b"].reshape(1, D).astype(F32),
      lw["w1"].astype(BF16), lw["b1"].reshape(1, FF).astype(F32),
      lw["w2"].astype(BF16), lw["b2"].reshape(1, D).astype(F32),
      lw["ln2_g"].reshape(1, D).astype(F32), lw["ln2_b"].reshape(1, D).astype(F32))


# ---------------------------------------------------------------------------
# fused decoder layer for one decode step (Lq = 1, incremental KV cache)
# ---------------------------------------------------------------------------

def _dec_layer_kernel(pos_ref, x_ref, wqkv_ref, bqkv_ref, wo1_ref, bo1_ref,
                      ln1g_ref, ln1b_ref, wq_ref, bq_ref, memk_ref, memv_ref,
                      mmask_ref, wo2_ref, bo2_ref, ln2g_ref, ln2b_ref,
                      w1_ref, b1_ref, w2_ref, b2_ref, ln3g_ref, ln3b_ref,
                      kc_ref, vc_ref,
                      y_ref, kco_ref, vco_ref, *, heads, eps):
    pos = pos_ref[0]                                    # current position (scalar, SMEM)
    x = x_ref[...]                                      # (beam, D) f32
    beam, D = x.shape
    dh = D // heads
    scale = 1.0 / math.sqrt(dh)

    # ---- self-attention (query length 1) with in-kernel KV-cache append ----
    qkv = jnp.dot(x.astype(BF16), wqkv_ref[...],
                  preferred_element_type=jnp.float32) + bqkv_ref[...]   # (beam, 3D)
    q1 = qkv[:, 0:D]
    k_new = qkv[:, D:2 * D]
    v_new = qkv[:, 2 * D:3 * D]

    Lc = kc_ref.shape[1]
    wr = jax.lax.broadcasted_iota(jnp.int32, (beam, Lc, D), 1) == pos
    k_all = jnp.where(wr, k_new[:, None, :], kc_ref[...])              # (beam, Lc, D)
    v_all = jnp.where(wr, v_new[:, None, :], vc_ref[...])
    kco_ref[...] = k_all
    vco_ref[...] = v_all

    key_iota = jax.lax.broadcasted_iota(jnp.int32, (beam, 1, Lc), 2)
    self_bias = jnp.where(key_iota <= pos, 0.0, -1e30)                  # future slots invalid

    ctx1 = jnp.zeros((beam, D), jnp.float32)
    for h in range(heads):
        sl = slice(h * dh, (h + 1) * dh)
        q_h = q1[:, sl][:, None, :].astype(BF16)                        # (beam, 1, dh)
        k_h = k_all[:, :, sl].astype(BF16)                              # (beam, Lc, dh)
        v_h = v_all[:, :, sl].astype(BF16)
        s = jnp.einsum("bqd,bkd->bqk", q_h, k_h,
                       preferred_element_type=jnp.float32) * scale + self_bias
        p = _softmax(s)
        o_h = jnp.einsum("bqk,bkd->bqd", p.astype(BF16), v_h,
                         preferred_element_type=jnp.float32)            # (beam, 1, dh)
        ctx1 = ctx1 + jnp.dot(o_h[:, 0, :].astype(BF16), wo1_ref[sl, :],
                              preferred_element_type=jnp.float32)
    y1 = _ln(x + ctx1 + bo1_ref[...], ln1g_ref[...], ln1b_ref[...], eps)

    # ---- cross-attention over cached encoder-memory K/V ----
    q2 = jnp.dot(y1.astype(BF16), wq_ref[...],
                 preferred_element_type=jnp.float32) + bq_ref[...]
    memk = memk_ref[...]                                                # (beam, S, D)
    memv = memv_ref[...]
    mbias = jnp.where(mmask_ref[...] > 0.0, 0.0, -1e9)[:, None, :]      # (beam, 1, S)

    ctx2 = jnp.zeros((beam, D), jnp.float32)
    for h in range(heads):
        sl = slice(h * dh, (h + 1) * dh)
        q_h = q2[:, sl][:, None, :].astype(BF16)
        k_h = memk[:, :, sl].astype(BF16)
        v_h = memv[:, :, sl].astype(BF16)
        s = jnp.einsum("bqd,bkd->bqk", q_h, k_h,
                       preferred_element_type=jnp.float32) * scale + mbias
        p = _softmax(s)
        o_h = jnp.einsum("bqk,bkd->bqd", p.astype(BF16), v_h,
                         preferred_element_type=jnp.float32)
        ctx2 = ctx2 + jnp.dot(o_h[:, 0, :].astype(BF16), wo2_ref[sl, :],
                              preferred_element_type=jnp.float32)
    y2 = _ln(y1 + ctx2 + bo2_ref[...], ln2g_ref[...], ln2b_ref[...], eps)

    # ---- FFN (relu) + residual + LN ----
    h1 = jnp.maximum(jnp.dot(y2.astype(BF16), w1_ref[...],
                             preferred_element_type=jnp.float32) + b1_ref[...], 0.0)
    y3 = jnp.dot(h1.astype(BF16), w2_ref[...],
                 preferred_element_type=jnp.float32) + b2_ref[...]
    y_ref[...] = _ln(y2 + y3, ln3g_ref[...], ln3b_ref[...], eps)


def pallas_decoder_layer(pos, x, lw, memk, memv, memmask, kcache, vcache,
                         heads, eps=1e-5):
    beam, D = x.shape
    Lc = kcache.shape[1]
    FF = lw["w1"].shape[1]
    aw, cw = lw["self_attn"], lw["cross_attn"]
    kern = functools.partial(_dec_layer_kernel, heads=heads, eps=eps)
    out_shapes = (jax.ShapeDtypeStruct((beam, D), F32),
                  jax.ShapeDtypeStruct((beam, Lc, D), F32),
                  jax.ShapeDtypeStruct((beam, Lc, D), F32))
    return pl.pallas_call(
        kern,
        out_shape=out_shapes,
        in_specs=[_sspec()] + [_vspec()] * 24,
        out_specs=(_vspec(), _vspec(), _vspec()),
        compiler_params=_cparams(),
    )(jnp.asarray(pos, dtype=jnp.int32).reshape(1),
      x.astype(F32),
      aw["w_qkv"].astype(BF16), aw["b_qkv"].reshape(1, 3 * D).astype(F32),
      aw["wo"].astype(BF16), aw["bo"].reshape(1, D).astype(F32),
      lw["ln1_g"].reshape(1, D).astype(F32), lw["ln1_b"].reshape(1, D).astype(F32),
      cw["wq"].astype(BF16), cw["bq"].reshape(1, D).astype(F32),
      memk.astype(F32), memv.astype(F32), memmask.astype(F32),
      cw["wo"].astype(BF16), cw["bo"].reshape(1, D).astype(F32),
      lw["ln2_g"].reshape(1, D).astype(F32), lw["ln2_b"].reshape(1, D).astype(F32),
      lw["w1"].astype(BF16), lw["b1"].reshape(1, FF).astype(F32),
      lw["w2"].astype(BF16), lw["b2"].reshape(1, D).astype(F32),
      lw["ln3_g"].reshape(1, D).astype(F32), lw["ln3_b"].reshape(1, D).astype(F32),
      kcache.astype(F32), vcache.astype(F32))


# ---------------------------------------------------------------------------
# fused dense(tanh) + tied lm_head + online logsumexp (vocab-tiled)
# ---------------------------------------------------------------------------

def _lm_head_kernel(x_ref, dw_ref, db_ref, w_ref, logits_ref, lse_ref,
                    hid_sc, m_sc, l_sc, *, v_real):
    j = pl.program_id(0)

    @pl.when(j == 0)
    def _():
        hid = jnp.tanh(jnp.dot(x_ref[...].astype(BF16), dw_ref[...],
                               preferred_element_type=jnp.float32) + db_ref[...])
        hid_sc[...] = hid
        m_sc[...] = jnp.full_like(m_sc, -jnp.inf)
        l_sc[...] = jnp.zeros_like(l_sc)

    tv = logits_ref.shape[-1]
    logits = jnp.dot(hid_sc[...].astype(BF16), w_ref[...],
                     preferred_element_type=jnp.float32)
    col = j * tv + jax.lax.broadcasted_iota(jnp.int32, logits.shape, 1)
    logits = jnp.where(col < v_real, logits, -1e30)     # mask padded vocab columns
    logits_ref[...] = logits

    m_prev = m_sc[...]
    m_new = jnp.maximum(m_prev, jnp.max(logits, axis=-1, keepdims=True))
    l_sc[...] = (l_sc[...] * jnp.exp(m_prev - m_new)
                 + jnp.sum(jnp.exp(logits - m_new), axis=-1, keepdims=True))
    m_sc[...] = m_new

    @pl.when(j == pl.num_programs(0) - 1)
    def _():
        lse_ref[...] = m_sc[...] + jnp.log(l_sc[...])


def pallas_lm_head(x, dense_w, dense_b, lm_w_pad, v_real, tile_v=512):
    # x: (M, D) f32 ; lm_w_pad: (D, Vp) bf16, Vp % 128 == 0
    M, D = x.shape
    Vp = lm_w_pad.shape[1]
    tv = min(tile_v, Vp)
    while Vp % tv != 0:
        tv //= 2
    kern = functools.partial(_lm_head_kernel, v_real=v_real)
    return pl.pallas_call(
        kern,
        grid=(Vp // tv,),
        out_shape=(jax.ShapeDtypeStruct((M, Vp), F32),
                   jax.ShapeDtypeStruct((M, 1), F32)),
        in_specs=[pl.BlockSpec((M, D), lambda j: (0, 0)),
                  pl.BlockSpec((D, D), lambda j: (0, 0)),
                  pl.BlockSpec((1, D), lambda j: (0, 0)),
                  pl.BlockSpec((D, tv), lambda j: (0, j))],
        out_specs=(pl.BlockSpec((M, tv), lambda j: (0, j)),
                   pl.BlockSpec((M, 1), lambda j: (0, 0))),
        scratch_shapes=[pltpu.VMEM((M, D), F32),
                        pltpu.VMEM((M, 1), F32),
                        pltpu.VMEM((M, 1), F32)],
        compiler_params=_cparams(("arbitrary",)),
    )(x.astype(F32), dense_w.astype(BF16), dense_b.reshape(1, D).astype(F32),
      lm_w_pad.astype(BF16))


# ---------------------------------------------------------------------------
# embeddings / encoder / device-side beam decode
# ---------------------------------------------------------------------------

def embed_tokens(params, ids):
    # ids: (N, L) -> (N, L, D)
    N, L = ids.shape
    D = params["word_emb"].shape[1]
    x = (params["word_emb"][ids]
         + params["pos_emb"][:L][None, :, :]
         + params["tok_type_emb"][0][None, None, :])
    x = pallas_layernorm(x.reshape(N * L, D), params["emb_ln_g"], params["emb_ln_b"])
    return x.reshape(N, L, D)


def embed_step(params, tok, pos):
    # tok: (beam,) int32 ; pos: scalar int32 -> (beam, D)
    x = (params["word_emb"][tok]
         + params["pos_emb"][pos][None, :]
         + params["tok_type_emb"][0][None, :])
    return pallas_layernorm(x, params["emb_ln_g"], params["emb_ln_b"])


def encoder_forward(params, source_ids, source_mask, cfg):
    B, S = source_ids.shape
    x = embed_tokens(params, source_ids)                      # (B, S, D)
    mask3 = source_mask.astype(F32).reshape(B, 1, S)
    for lw in params["enc_layers"]:
        x = pallas_encoder_layer(x, mask3, lw, cfg["heads"])
    return x                                                  # (B, S, D)


def decode_example(params, lm_w_pad, enc_out_i, src_mask_i, cfg):
    """One example's full beam decode as a single device-side lax.scan."""
    beam = cfg["beam"]
    Lmax = cfg["max_length"]
    D = cfg["hidden"]
    H = cfg["heads"]
    eos, sos = cfg["eos"], cfg["sos"]
    n_layers = len(params["dec_layers"])
    S = enc_out_i.shape[0]
    Vp = lm_w_pad.shape[1]

    # cross-attention K/V for ALL layers in one fused projection (once per example)
    w_kv_all = jnp.concatenate([lw["cross_attn"]["w_kv"]
                                for lw in params["dec_layers"]], axis=1)
    b_kv_all = jnp.concatenate([lw["cross_attn"]["b_kv"]
                                for lw in params["dec_layers"]], axis=0)
    kv = pallas_linear(enc_out_i, w_kv_all, b_kv_all)         # (S, 2*D*n_layers)
    kv = kv.reshape(S, n_layers, 2, D)
    mem_k = [jnp.broadcast_to(kv[:, l, 0, :][None], (beam, S, D)) for l in range(n_layers)]
    mem_v = [jnp.broadcast_to(kv[:, l, 1, :][None], (beam, S, D)) for l in range(n_layers)]
    mem_mask = jnp.broadcast_to(src_mask_i.astype(F32)[None, :], (beam, S))

    k0 = tuple(jnp.zeros((beam, Lmax, D), F32) for _ in range(n_layers))
    v0 = tuple(jnp.zeros((beam, Lmax, D), F32) for _ in range(n_layers))
    last_tok0 = jnp.zeros((beam,), jnp.int32).at[0].set(sos)  # nextYs[0]
    scores0 = jnp.zeros((beam,), F32)

    def step(carry, t):
        last_tok, scores, kc, vc = carry
        x = embed_step(params, last_tok, t)                   # (beam, D)
        kc_new, vc_new = [], []
        for l, lw in enumerate(params["dec_layers"]):
            x, kcl, vcl = pallas_decoder_layer(t, x, lw, mem_k[l], mem_v[l],
                                               mem_mask, kc[l], vc[l], H)
            kc_new.append(kcl)
            vc_new.append(vcl)

        logits, lse = pallas_lm_head(x, params["dense_w"], params["dense_b"],
                                     lm_w_pad, cfg["vocab"])
        logp = logits - lse                                   # log_softmax (beam, Vp)

        # Beam.advance semantics (combine + flattened top-k), on device
        first_bias = jnp.where(jnp.arange(beam) == 0, 0.0, -1e20).astype(F32)
        later_bias = jnp.where(last_tok == eos, -1e20, 0.0).astype(F32) + scores
        row_bias = jnp.where(t == 0, first_bias, later_bias)
        flat = (logp + row_bias[:, None]).reshape(-1)
        best_scores, best_ids = jax.lax.top_k(flat, beam)
        prev_k = (best_ids // Vp).astype(jnp.int32)
        next_y = (best_ids - prev_k * Vp).astype(jnp.int32)

        # reorder KV caches to follow the surviving beams
        kc_new = tuple(a[prev_k] for a in kc_new)
        vc_new = tuple(a[prev_k] for a in vc_new)
        return (next_y, best_scores, kc_new, vc_new), (best_scores, prev_k, next_y)

    _, (bs, pk, ny) = jax.lax.scan(step, (last_tok0, scores0, k0, v0),
                                   jnp.arange(Lmax, dtype=jnp.int32))
    return bs, pk, ny


# ---------------------------------------------------------------------------
# Beam bookkeeping (host side; the per-step top-k already ran on device)
# ---------------------------------------------------------------------------

class Beam:
    def __init__(self, size, sos, eos):
        self.size = size
        self.scores = np.zeros(size, dtype=np.float32)
        self.prevKs = []
        self.nextYs = [np.zeros(size, dtype=np.int64)]
        self.nextYs[0][0] = sos
        self._eos = eos
        self.eosTop = False
        self.finished = []

    def advance_topk(self, bestScores, prevK, nextY):
        # device already did: score add, eos-row masking, flatten + top-k
        self.scores = np.asarray(bestScores, dtype=np.float32)
        self.prevKs.append(np.asarray(prevK, dtype=np.int64))
        self.nextYs.append(np.asarray(nextY, dtype=np.int64))
        for i in range(self.nextYs[-1].shape[0]):
            if self.nextYs[-1][i] == self._eos:
                self.finished.append((float(self.scores[i]), len(self.nextYs) - 1, i))
        if self.nextYs[-1][0] == self._eos:
            self.eosTop = True

    def done(self):
        return self.eosTop and len(self.finished) >= self.size

    def getFinal(self):
        if len(self.finished) == 0:
            self.finished.append((float(self.scores[0]), len(self.nextYs) - 1, 0))
        self.finished.sort(key=lambda a: -a[0])
        if len(self.finished) != self.size:
            unfinished = []
            for i in range(self.nextYs[-1].shape[0]):
                if self.nextYs[-1][i] != self._eos:
                    unfinished.append((float(self.scores[i]), len(self.nextYs) - 1, i))
            unfinished.sort(key=lambda a: -a[0])
            self.finished += unfinished[: self.size - len(self.finished)]
        return self.finished[: self.size]

    def getHyp(self, beam_res):
        hyps = []
        for _, timestep, k in beam_res:
            hyp = []
            for j in range(len(self.prevKs[:timestep]) - 1, -1, -1):
                hyp.append(int(self.nextYs[j + 1][k]))
                k = int(self.prevKs[j][k])
            hyps.append(hyp[::-1])
        return hyps

    def buildTargetTokens(self, preds):
        sentence = []
        for pred in preds:
            tokens = []
            for tok in pred:
                if tok == self._eos:
                    break
                tokens.append(tok)
            sentence.append(tokens)
        return sentence


# ---------------------------------------------------------------------------
# Seq2Seq forward (beam-search inference path of the reference module)
# ---------------------------------------------------------------------------

def seq2seq_forward(params, cfg, source_ids, source_mask):
    beam_size, max_length = cfg["beam"], cfg["max_length"]
    sos_id, eos_id = cfg["sos"], cfg["eos"]
    V, D = cfg["vocab"], cfg["hidden"]

    # tied lm_head weight: transpose + bf16 cast + pad to a 128-multiple once
    Vp = ((V + 127) // 128) * 128
    lm_w_pad = jnp.zeros((D, Vp), BF16).at[:, :V].set(
        jnp.asarray(params["word_emb"].T, BF16))

    enc_fn = jax.jit(lambda p, ids, m: encoder_forward(p, ids, m, cfg))
    dec_fn = jax.jit(lambda p, w, e, m: decode_example(p, w, e, m, cfg))

    encoder_output = enc_fn(params, source_ids, source_mask)   # (B, S, D)

    preds = []
    for i in range(int(source_ids.shape[0])):
        bs, pk, ny = dec_fn(params, lm_w_pad, encoder_output[i], source_mask[i])
        bs = np.asarray(jax.device_get(bs))
        pk = np.asarray(jax.device_get(pk))
        ny = np.asarray(jax.device_get(ny))

        # host replay of Beam bookkeeping (stops where the reference would break)
        beam = Beam(beam_size, sos_id, eos_id)
        hyp = None
        for t in range(max_length):
            if beam.done():
                break
            beam.advance_topk(bs[t], pk[t], ny[t])
            hyp = beam.getHyp(beam.getFinal())

        pred = beam.buildTargetTokens(hyp)[:beam_size]
        pred = [np.concatenate(
                    [np.array(p, dtype=np.int64).reshape(-1),
                     np.zeros(max_length - len(p), dtype=np.int64)]).reshape(1, -1)
                for p in pred]
        preds.append(np.concatenate(pred, 0)[None])
        preds = np.concatenate(preds, 0)
        return preds   # NOTE: early return inside the loop matches the reference code exactly


# ---------------------------------------------------------------------------
# Deterministic parameter init (MXU weights stored in bf16)
# ---------------------------------------------------------------------------

def init_params(key, cfg):
    D, V, FF = cfg["hidden"], cfg["vocab"], cfg["ffn"]
    keys = iter(jax.random.split(key, 1024))

    def nrm(shape, scale=0.02, dtype=BF16):
        return (scale * jax.random.normal(next(keys), shape, dtype=F32)).astype(dtype)

    def self_attn_block():
        return dict(w_qkv=nrm((D, 3 * D)), b_qkv=jnp.zeros((3 * D,), F32),
                    wo=nrm((D, D)), bo=jnp.zeros((D,), F32))

    def cross_attn_block():
        return dict(wq=nrm((D, D)), bq=jnp.zeros((D,), F32),
                    w_kv=nrm((D, 2 * D)), b_kv=jnp.zeros((2 * D,), F32),
                    wo=nrm((D, D)), bo=jnp.zeros((D,), F32))

    params = dict(
        word_emb=nrm((V, D), dtype=F32),
        pos_emb=nrm((cfg["max_pos"], D), dtype=F32),
        tok_type_emb=nrm((1, D), dtype=F32),
        emb_ln_g=jnp.ones((D,), F32), emb_ln_b=jnp.zeros((D,), F32),
        dense_w=nrm((D, D)), dense_b=jnp.zeros((D,), F32),
    )
    params["enc_layers"] = [
        dict(attn=self_attn_block(),
             ln1_g=jnp.ones((D,), F32), ln1_b=jnp.zeros((D,), F32),
             w1=nrm((D, FF)), b1=jnp.zeros((FF,), F32),
             w2=nrm((FF, D)), b2=jnp.zeros((D,), F32),
             ln2_g=jnp.ones((D,), F32), ln2_b=jnp.zeros((D,), F32))
        for _ in range(cfg["enc_layers"])]
    params["dec_layers"] = [
        dict(self_attn=self_attn_block(), cross_attn=cross_attn_block(),
             ln1_g=jnp.ones((D,), F32), ln1_b=jnp.zeros((D,), F32),
             ln2_g=jnp.ones((D,), F32), ln2_b=jnp.zeros((D,), F32),
             w1=nrm((D, FF)), b1=jnp.zeros((FF,), F32),
             w2=nrm((FF, D)), b2=jnp.zeros((D,), F32),
             ln3_g=jnp.ones((D,), F32), ln3_b=jnp.zeros((D,), F32))
        for _ in range(cfg["dec_layers"])]
    return params


if __name__ == "__main__":
    # small but lane-friendly dims; vocab=300 exercises the padded / multi-tile lm_head path
    cfg = dict(hidden=128, heads=4, vocab=300, ffn=256, max_pos=64,
               enc_layers=2, dec_layers=6, beam=2, max_length=6, sos=1, eos=2)
    key = jax.random.PRNGKey(0)
    pkey, dkey = jax.random.split(key)
    params = init_params(pkey, cfg)

    B, S = 2, 16
    source_ids = jax.random.randint(dkey, (B, S), 0, cfg["vocab"], dtype=jnp.int32)
    source_mask = jnp.ones((B, S), jnp.int32).at[1, S - 4:].set(0)

    preds = seq2seq_forward(params, cfg, source_ids, source_mask)
    jax.block_until_ready(jnp.asarray(preds))
    assert preds.shape == (1, cfg["beam"], cfg["max_length"])
    print("KERNEL_OK")
</pallas_src>

<mosaic_0001>
module attributes {stable_mosaic.version = 11 : i64} {
  func.func @_layernorm_kernel(%arg0: memref<32x128xf32, #tpu.memory_space<vmem>>, %arg1: memref<1x128xf32, #tpu.memory_space<vmem>>, %arg2: memref<1x128xf32, #tpu.memory_space<vmem>>, %arg3: memref<32x128xf32, #tpu.memory_space<vmem>>) attributes {dimension_semantics = [], scalar_prefetch = 0 : i64, scratch_operands = 0 : i64, tpu.core_type = #tpu.core_type<tc>} {
    %c0 = arith.constant 0 : index
    %c0_0 = arith.constant 0 : index
    %0 = vector.load %arg0[%c0, %c0_0] : memref<32x128xf32, #tpu.memory_space<vmem>>, vector<32x128xf32>
    %c0_1 = arith.constant 0 : index
    %c0_2 = arith.constant 0 : index
    %1 = vector.load %arg1[%c0_1, %c0_2] : memref<1x128xf32, #tpu.memory_space<vmem>>, vector<1x128xf32>
    %c0_3 = arith.constant 0 : index
    %c0_4 = arith.constant 0 : index
    %2 = vector.load %arg2[%c0_3, %c0_4] : memref<1x128xf32, #tpu.memory_space<vmem>>, vector<1x128xf32>
    %cst = arith.constant dense<0.000000e+00> : vector<32xf32>
    %3 = vector.multi_reduction <add>, %0, %cst [1] : vector<32x128xf32> to vector<32xf32>
    %4 = vector.shape_cast %3 : vector<32xf32> to vector<32x1xf32>
    %cst_5 = arith.constant 1.280000e+02 : f32
    %5 = vector.broadcast %cst_5 : f32 to vector<32x1xf32>
    %6 = arith.divf %4, %5 : vector<32x1xf32>
    %7 = vector.broadcast %6 : vector<32x1xf32> to vector<32x128xf32>
    %8 = arith.subf %0, %7 : vector<32x128xf32>
    %9 = arith.mulf %8, %8 : vector<32x128xf32>
    %cst_6 = arith.constant dense<0.000000e+00> : vector<32xf32>
    %10 = vector.multi_reduction <add>, %9, %cst_6 [1] : vector<32x128xf32> to vector<32xf32>
    %11 = vector.shape_cast %10 : vector<32xf32> to vector<32x1xf32>
    %cst_7 = arith.constant 1.280000e+02 : f32
    %12 = vector.broadcast %cst_7 : f32 to vector<32x1xf32>
    %13 = arith.divf %11, %12 : vector<32x1xf32>
    %14 = vector.broadcast %6 : vector<32x1xf32> to vector<32x128xf32>
    %15 = arith.subf %0, %14 : vector<32x128xf32>
    %cst_8 = arith.constant 9.99999974E-6 : f32
    %16 = vector.broadcast %cst_8 : f32 to vector<32x1xf32>
    %17 = arith.addf %13, %16 : vector<32x1xf32>
    %18 = math.rsqrt %17 : vector<32x1xf32>
    %19 = vector.broadcast %18 : vector<32x1xf32> to vector<32x128xf32>
    %20 = arith.mulf %15, %19 : vector<32x128xf32>
    %21 = vector.broadcast %1 : vector<1x128xf32> to vector<32x128xf32>
    %22 = arith.mulf %20, %21 : vector<32x128xf32>
    %23 = vector.broadcast %2 : vector<1x128xf32> to vector<32x128xf32>
    %24 = arith.addf %22, %23 : vector<32x128xf32>
    %c0_9 = arith.constant 0 : index
    %c0_10 = arith.constant 0 : index
    %25 = vector.load %arg3[%c0_9, %c0_10] : memref<32x128xf32, #tpu.memory_space<vmem>>, vector<32x128xf32>
    tpu.vector_store %arg3[%c0_9, %c0_10], %24 {strides = array<i32>} : memref<32x128xf32, #tpu.memory_space<vmem>>, vector<32x128xf32>,
    return
  }
}

module attributes {stable_mosaic.version = 11 : i64} {
  func.func @_enc_layer_kernel(%arg0: i32, %arg1: memref<1x16x128xf32, #tpu.memory_space<vmem>>, %arg2: memref<1x1x16xf32, #tpu.memory_space<vmem>>, %arg3: memref<128x384xbf16, #tpu.memory_space<vmem>>, %arg4: memref<1x384xf32, #tpu.memory_space<vmem>>, %arg5: memref<128x128xbf16, #tpu.memory_space<vmem>>, %arg6: memref<1x128xf32, #tpu.memory_space<vmem>>, %arg7: memref<1x128xf32, #tpu.memory_space<vmem>>, %arg8: memref<1x128xf32, #tpu.memory_space<vmem>>, %arg9: memref<128x256xbf16, #tpu.memory_space<vmem>>, %arg10: memref<1x256xf32, #tpu.memory_space<vmem>>, %arg11: memref<256x128xbf16, #tpu.memory_space<vmem>>, %arg12: memref<1x128xf32, #tpu.memory_space<vmem>>, %arg13: memref<1x128xf32, #tpu.memory_space<vmem>>, %arg14: memref<1x128xf32, #tpu.memory_space<vmem>>, %arg15: memref<1x16x128xf32, #tpu.memory_space<vmem>>) attributes {dimension_semantics = [#tpu.dimension_semantics<parallel>], iteration_bounds = array<i64: 2>, scalar_prefetch = 0 : i64, scratch_operands = 0 : i64, tpu.core_type = #tpu.core_type<tc>, window_params = [{transform_indices = @transform_0, window_bounds = array<i64: 1, 16, 128>}, {transform_indices = @transform_1, window_bounds = array<i64: 1, 1, 16>}, {pipeline_mode = #tpu.pipeline_mode<synchronous>, transform_indices = @transform_2, window_bounds = array<i64: 128, 384>}, {pipeline_mode = #tpu.pipeline_mode<synchronous>, transform_indices = @transform_3, window_bounds = array<i64: 1, 384>}, {pipeline_mode = #tpu.pipeline_mode<synchronous>, transform_indices = @transform_4, window_bounds = array<i64: 128, 128>}, {pipeline_mode = #tpu.pipeline_mode<synchronous>, transform_indices = @transform_5, window_bounds = array<i64: 1, 128>}, {pipeline_mode = #tpu.pipeline_mode<synchronous>, transform_indices = @transform_6, window_bounds = array<i64: 1, 128>}, {pipeline_mode = #tpu.pipeline_mode<synchronous>, transform_indices = @transform_7, window_bounds = array<i64: 1, 128>}, {pipeline_mode = #tpu.pipeline_mode<synchronous>, transform_indices = @transform_8, window_bounds = array<i64: 128, 256>}, {pipeline_mode = #tpu.pipeline_mode<synchronous>, transform_indices = @transform_9, window_bounds = array<i64: 1, 256>}, {pipeline_mode = #tpu.pipeline_mode<synchronous>, transform_indices = @transform_10, window_bounds = array<i64: 256, 128>}, {pipeline_mode = #tpu.pipeline_mode<synchronous>, transform_indices = @transform_11, window_bounds = array<i64: 1, 128>}, {pipeline_mode = #tpu.pipeline_mode<synchronous>, transform_indices = @transform_12, window_bounds = array<i64: 1, 128>}, {pipeline_mode = #tpu.pipeline_mode<synchronous>, transform_indices = @transform_13, window_bounds = array<i64: 1, 128>}, {transform_indices = @transform_14, window_bounds = array<i64: 1, 16, 128>}]} {
    %c0 = arith.constant 0 : index
    %c0_0 = arith.constant 0 : index
    %c0_1 = arith.constant 0 : index
    %0 = vector.load %arg1[%c0, %c0_0, %c0_1] : memref<1x16x128xf32, #tpu.memory_space<vmem>>, vector<1x16x128xf32>
    %1 = vector.shape_cast %0 : vector<1x16x128xf32> to vector<16x128xf32>
    %2 = arith.truncf %1 : vector<16x128xf32> to vector<16x128xbf16>
    %c0_2 = arith.constant 0 : index
    %c0_3 = arith.constant 0 : index
    %3 = vector.load %arg3[%c0_2, %c0_3] : memref<128x384xbf16, #tpu.memory_space<vmem>>, vector<128x384xbf16>
    %cst = arith.constant dense<0.000000e+00> : vector<16x384xf32>
    %4 = tpu.matmul %2, %3, %cst {dimension_numbers = #tpu.dot_dimension_numbers<[1], [0], [0], [1], [0, 0, 1, 1], [], []>} : vector<16x128xbf16>, vector<128x384xbf16>, vector<16x384xf32> -> vector<16x384xf32>
    %c0_4 = arith.constant 0 : index
    %c0_5 = arith.constant 0 : index
    %5 = vector.load %arg4[%c0_4, %c0_5] : memref<1x384xf32, #tpu.memory_space<vmem>>, vector<1x384xf32>
    %6 = vector.broadcast %5 : vector<1x384xf32> to vector<16x384xf32>
    %7 = arith.addf %4, %6 : vector<16x384xf32>
    %c0_6 = arith.constant 0 : index
    %c0_7 = arith.constant 0 : index
    %c0_8 = arith.constant 0 : index
    %8 = vector.load %arg2[%c0_6, %c0_7, %c0_8] : memref<1x1x16xf32, #tpu.memory_space<vmem>>, vector<1x1x16xf32>
    %9 = vector.shape_cast %8 : vector<1x1x16xf32> to vector<1x16xf32>
    %cst_9 = arith.constant 0.000000e+00 : f32
    %10 = vector.broadcast %cst_9 : f32 to vector<1x16xf32>
    %11 = arith.cmpf ogt, %9, %10 : vector<1x16xf32>
    %cst_10 = arith.constant 0.000000e+00 : f32
    %cst_11 = arith.constant -1.000000e+09 : f32
    %12 = vector.broadcast %cst_10 : f32 to vector<1x16xf32>
    %13 = vector.broadcast %cst_11 : f32 to vector<1x16xf32>
    %14 = arith.select %11, %12, %13 : vector<1x16xi1>, vector<1x16xf32>
    %cst_12 = arith.constant 0.000000e+00 : f32
    %15 = vector.broadcast %cst_12 : f32 to vector<16x128xf32>
    %16 = vector.extract_strided_slice %7 {offsets = [0, 0], sizes = [16, 32], strides = [1, 1]} : vector<16x384xf32> to vector<16x32xf32>
    %17 = arith.truncf %16 : vector<16x32xf32> to vector<16x32xbf16>
    %18 = vector.extract_strided_slice %7 {offsets = [0, 128], sizes = [16, 32], strides = [1, 1]} : vector<16x384xf32> to vector<16x32xf32>
    %19 = arith.truncf %18 : vector<16x32xf32> to vector<16x32xbf16>
    %20 = vector.extract_strided_slice %7 {offsets = [0, 256], sizes = [16, 32], strides = [1, 1]} : vector<16x384xf32> to vector<16x32xf32>
    %21 = arith.truncf %20 : vector<16x32xf32> to vector<16x32xbf16>
    %cst_13 = arith.constant dense<0.000000e+00> : vector<16x16xf32>
    %22 = tpu.matmul %17, %19, %cst_13 {dimension_numbers = #tpu.dot_dimension_numbers<[1], [1], [0], [0], [0, 0, 1, 0], [], []>} : vector<16x32xbf16>, vector<16x32xbf16>, vector<16x16xf32> -> vector<16x16xf32>
    %cst_14 = arith.constant 0.176776692 : f32
    %23 = vector.broadcast %cst_14 : f32 to vector<16x16xf32>
    %24 = arith.mulf %22, %23 : vector<16x16xf32>
    %25 = vector.broadcast %14 : vector<1x16xf32> to vector<16x16xf32>
    %26 = arith.addf %24, %25 : vector<16x16xf32>
    %cst_15 = arith.constant dense<0xFF800000> : vector<16xf32>
    %27 = vector.multi_reduction <maximumf>, %26, %cst_15 [1] : vector<16x16xf32> to vector<16xf32>
    %28 = vector.shape_cast %27 : vector<16xf32> to vector<16x1xf32>
    %29 = vector.broadcast %28 : vector<16x1xf32> to vector<16x16xf32>
    %30 = arith.subf %26, %29 : vector<16x16xf32>
    %31 = math.exp %30 : vector<16x16xf32>
    %cst_16 = arith.constant dense<0.000000e+00> : vector<16xf32>
    %32 = vector.multi_reduction <add>, %31, %cst_16 [1] : vector<16x16xf32> to vector<16xf32>
    %33 = vector.shape_cast %32 : vector<16xf32> to vector<16x1xf32>
    %34 = tpu.reciprocal %33 {approx = true} : vector<16x1xf32> -> vector<16x1xf32>
    %35 = vector.broadcast %34 : vector<16x1xf32> to vector<16x16xf32>
    %36 = arith.mulf %31, %35 : vector<16x16xf32>
    %37 = arith.truncf %36 : vector<16x16xf32> to vector<16x16xbf16>
    %cst_17 = arith.constant dense<0.000000e+00> : vector<16x32xf32>
    %38 = tpu.matmul %37, %21, %cst_17 {dimension_numbers = #tpu.dot_dimension_numbers<[1], [0], [0], [1], [0, 0, 1, 1], [], []>} : vector<16x16xbf16>, vector<16x32xbf16>, vector<16x32xf32> -> vector<16x32xf32>
    %39 = arith.truncf %38 : vector<16x32xf32> to vector<16x32xbf16>
    %c0_18 = arith.constant 0 : index
    %c0_19 = arith.constant 0 : index
    %40 = vector.load %arg5[%c0_18, %c0_19] : memref<128x128xbf16, #tpu.memory_space<vmem>>, vector<32x128xbf16>
    %cst_20 = arith.constant dense<0.000000e+00> : vector<16x128xf32>
    %41 = tpu.matmul %39, %40, %cst_20 {dimension_numbers = #tpu.dot_dimension_numbers<[1], [0], [0], [1], [0, 0, 1, 1], [], []>} : vector<16x32xbf16>, vector<32x128xbf16>, vector<16x128xf32> -> vector<16x128xf32>
    %42 = arith.addf %15, %41 : vector<16x128xf32>
    %43 = vector.extract_strided_slice %7 {offsets = [0, 32], sizes = [16, 32], strides = [1, 1]} : vector<16x384xf32> to vector<16x32xf32>
    %44 = arith.truncf %43 : vector<16x32xf32> to vector<16x32xbf16>
    %45 = vector.extract_strided_slice %7 {offsets = [0, 160], sizes = [16, 32], strides = [1, 1]} : vector<16x384xf32> to vector<16x32xf32>
    %46 = arith.truncf %45 : vector<16x32xf32> to vector<16x32xbf16>
    %47 = vector.extract_strided_slice %7 {offsets = [0, 288], sizes = [16, 32], strides = [1, 1]} : vector<16x384xf32> to vector<16x32xf32>
    %48 = arith.truncf %47 : vector<16x32xf32> to vector<16x32xbf16>
    %cst_21 = arith.constant dense<0.000000e+00> : vector<16x16xf32>
    %49 = tpu.matmul %44, %46, %cst_21 {dimension_numbers = #tpu.dot_dimension_numbers<[1], [1], [0], [0], [0, 0, 1, 0], [], []>} : vector<16x32xbf16>, vector<16x32xbf16>, vector<16x16xf32> -> vector<16x16xf32>
    %cst_22 = arith.constant 0.176776692 : f32
    %50 = vector.broadcast %cst_22 : f32 to vector<16x16xf32>
    %51 = arith.mulf %49, %50 : vector<16x16xf32>
    %52 = vector.broadcast %14 : vector<1x16xf32> to vector<16x16xf32>
    %53 = arith.addf %51, %52 : vector<16x16xf32>
    %cst_23 = arith.constant dense<0xFF800000> : vector<16xf32>
    %54 = vector.multi_reduction <maximumf>, %53, %cst_23 [1] : vector<16x16xf32> to vector<16xf32>
    %55 = vector.shape_cast %54 : vector<16xf32> to vector<16x1xf32>
    %56 = vector.broadcast %55 : vector<16x1xf32> to vector<16x16xf32>
    %57 = arith.subf %53, %56 : vector<16x16xf32>
    %58 = math.exp %57 : vector<16x16xf32>
    %cst_24 = arith.constant dense<0.000000e+00> : vector<16xf32>
    %59 = vector.multi_reduction <add>, %58, %cst_24 [1] : vector<16x16xf32> to vector<16xf32>
    %60 = vector.shape_cast %59 : vector<16xf32> to vector<16x1xf32>
    %61 = tpu.reciprocal %60 {approx = true} : vector<16x1xf32> -> vector<16x1xf32>
    %62 = vector.broadcast %61 : vector<16x1xf32> to vector<16x16xf32>
    %63 = arith.mulf %58, %62 : vector<16x16xf32>
    %64 = arith.truncf %63 : vector<16x16xf32> to vector<16x16xbf16>
    %cst_25 = arith.constant dense<0.000000e+00> : vector<16x32xf32>
    %65 = tpu.matmul %64, %48, %cst_25 {dimension_numbers = #tpu.dot_dimension_numbers<[1], [0], [0], [1], [0, 0, 1, 1], [], []>} : vector<16x16xbf16>, vector<16x32xbf16>, vector<16x32xf32> -> vector<16x32xf32>
    %66 = arith.truncf %65 : vector<16x32xf32> to vector<16x32xbf16>
    %c32 = arith.constant 32 : index
    %c0_26 = arith.constant 0 : index
    %67 = vector.load %arg5[%c32, %c0_26] : memref<128x128xbf16, #tpu.memory_space<vmem>>, vector<32x128xbf16>
    %cst_27 = arith.constant dense<0.000000e+00> : vector<16x128xf32>
    %68 = tpu.matmul %66, %67, %cst_27 {dimension_numbers = #tpu.dot_dimension_numbers<[1], [0], [0], [1], [0, 0, 1, 1], [], []>} : vector<16x32xbf16>, vector<32x128xbf16>, vector<16x128xf32> -> vector<16x128xf32>
    %69 = arith.addf %42, %68 : vector<16x128xf32>
    %70 = vector.extract_strided_slice %7 {offsets = [0, 64], sizes = [16, 32], strides = [1, 1]} : vector<16x384xf32> to vector<16x32xf32>
    %71 = arith.truncf %70 : vector<16x32xf32> to vector<16x32xbf16>
    %72 = vector.extract_strided_slice %7 {offsets = [0, 192], sizes = [16, 32], strides = [1, 1]} : vector<16x384xf32> to vector<16x32xf32>
    %73 = arith.truncf %72 : vector<16x32xf32> to vector<16x32xbf16>
    %74 = vector.extract_strided_slice %7 {offsets = [0, 320], sizes = [16, 32], strides = [1, 1]} : vector<16x384xf32> to vector<16x32xf32>
    %75 = arith.truncf %74 : vector<16x32xf32> to vector<16x32xbf16>
    %cst_28 = arith.constant dense<0.000000e+00> : vector<16x16xf32>
    %76 = tpu.matmul %71, %73, %cst_28 {dimension_numbers = #tpu.dot_dimension_numbers<[1], [1], [0], [0], [0, 0, 1, 0], [], []>} : vector<16x32xbf16>, vector<16x32xbf16>, vector<16x16xf32> -> vector<16x16xf32>
    %cst_29 = arith.constant 0.176776692 : f32
    %77 = vector.broadcast %cst_29 : f32 to vector<16x16xf32>
    %78 = arith.mulf %76, %77 : vector<16x16xf32>
    %79 = vector.broadcast %14 : vector<1x16xf32> to vector<16x16xf32>
    %80 = arith.addf %78, %79 : vector<16x16xf32>
    %cst_30 = arith.constant dense<0xFF800000> : vector<16xf32>
    %81 = vector.multi_reduction <maximumf>, %80, %cst_30 [1] : vector<16x16xf32> to vector<16xf32>
    %82 = vector.shape_cast %81 : vector<16xf32> to vector<16x1xf32>
    %83 = vector.broadcast %82 : vector<16x1xf32> to vector<16x16xf32>
    %84 = arith.subf %80, %83 : vector<16x16xf32>
    %85 = math.exp %84 : vector<16x16xf32>
    %cst_31 = arith.constant dense<0.000000e+00> : vector<16xf32>
    %86 = vector.multi_reduction <add>, %85, %cst_31 [1] : vector<16x16xf32> to vector<16xf32>
    %87 = vector.shape_cast %86 : vector<16xf32> to vector<16x1xf32>
    %88 = tpu.reciprocal %87 {approx = true} : vector<16x1xf32> -> vector<16x1xf32>
    %89 = vector.broadcast %88 : vector<16x1xf32> to vector<16x16xf32>
    %90 = arith.mulf %85, %89 : vector<16x16xf32>
    %91 = arith.truncf %90 : vector<16x16xf32> to vector<16x16xbf16>
    %cst_32 = arith.constant dense<0.000000e+00> : vector<16x32xf32>
    %92 = tpu.matmul %91, %75, %cst_32 {dimension_numbers = #tpu.dot_dimension_numbers<[1], [0], [0], [1], [0, 0, 1, 1], [], []>} : vector<16x16xbf16>, vector<16x32xbf16>, vector<16x32xf32> -> vector<16x32xf32>
    %93 = arith.truncf %92 : vector<16x32xf32> to vector<16x32xbf16>
    %c64 = arith.constant 64 : index
    %c0_33 = arith.constant 0 : index
    %94 = vector.load %arg5[%c64, %c0_33] : memref<128x128xbf16, #tpu.memory_space<vmem>>, vector<32x128xbf16>
    %cst_34 = arith.constant dense<0.000000e+00> : vector<16x128xf32>
    %95 = tpu.matmul %93, %94, %cst_34 {dimension_numbers = #tpu.dot_dimension_numbers<[1], [0], [0], [1], [0, 0, 1, 1], [], []>} : vector<16x32xbf16>, vector<32x128xbf16>, vector<16x128xf32> -> vector<16x128xf32>
    %96 = arith.addf %69, %95 : vector<16x128xf32>
    %97 = vector.extract_strided_slice %7 {offsets = [0, 96], sizes = [16, 32], strides = [1, 1]} : vector<16x384xf32> to vector<16x32xf32>
    %98 = arith.truncf %97 : vector<16x32xf32> to vector<16x32xbf16>
    %99 = vector.extract_strided_slice %7 {offsets = [0, 224], sizes = [16, 32], strides = [1, 1]} : vector<16x384xf32> to vector<16x32xf32>
    %100 = arith.truncf %99 : vector<16x32xf32> to vector<16x32xbf16>
    %101 = vector.extract_strided_slice %7 {offsets = [0, 352], sizes = [16, 32], strides = [1, 1]} : vector<16x384xf32> to vector<16x32xf32>
    %102 = arith.truncf %101 : vector<16x32xf32> to vector<16x32xbf16>
    %cst_35 = arith.constant dense<0.000000e+00> : vector<16x16xf32>
    %103 = tpu.matmul %98, %100, %cst_35 {dimension_numbers = #tpu.dot_dimension_numbers<[1], [1], [0], [0], [0, 0, 1, 0], [], []>} : vector<16x32xbf16>, vector<16x32xbf16>, vector<16x16xf32> -> vector<16x16xf32>
    %cst_36 = arith.constant 0.176776692 : f32
    %104 = vector.broadcast %cst_36 : f32 to vector<16x16xf32>
    %105 = arith.mulf %103, %104 : vector<16x16xf32>
    %106 = vector.broadcast %14 : vector<1x16xf32> to vector<16x16xf32>
    %107 = arith.addf %105, %106 : vector<16x16xf32>
    %cst_37 = arith.constant dense<0xFF800000> : vector<16xf32>
    %108 = vector.multi_reduction <maximumf>, %107, %cst_37 [1] : vector<16x16xf32> to vector<16xf32>
    %109 = vector.shape_cast %108 : vector<16xf32> to vector<16x1xf32>
    %110 = vector.broadcast %109 : vector<16x1xf32> to vector<16x16xf32>
    %111 = arith.subf %107, %110 : vector<16x16xf32>
    %112 = math.exp %111 : vector<16x16xf32>
    %cst_38 = arith.constant dense<0.000000e+00> : vector<16xf32>
    %113 = vector.multi_reduction <add>, %112, %cst_38 [1] : vector<16x16xf32> to vector<16xf32>
    %114 = vector.shape_cast %113 : vector<16xf32> to vector<16x1xf32>
    %115 = tpu.reciprocal %114 {approx = true} : vector<16x1xf32> -> vector<16x1xf32>
    %116 = vector.broadcast %115 : vector<16x1xf32> to vector<16x16xf32>
    %117 = arith.mulf %112, %116 : vector<16x16xf32>
    %118 = arith.truncf %117 : vector<16x16xf32> to vector<16x16xbf16>
    %cst_39 = arith.constant dense<0.000000e+00> : vector<16x32xf32>
    %119 = tpu.matmul %118, %102, %cst_39 {dimension_numbers = #tpu.dot_dimension_numbers<[1], [0], [0], [1], [0, 0, 1, 1], [], []>} : vector<16x16xbf16>, vector<16x32xbf16>, vector<16x32xf32> -> vector<16x32xf32>
    %120 = arith.truncf %119 : vector<16x32xf32> to vector<16x32xbf16>
    %c96 = arith.constant 96 : index
    %c0_40 = arith.constant 0 : index
    %121 = vector.load %arg5[%c96, %c0_40] : memref<128x128xbf16, #tpu.memory_space<vmem>>, vector<32x128xbf16>
    %cst_41 = arith.constant dense<0.000000e+00> : vector<16x128xf32>
    %122 = tpu.matmul %120, %121, %cst_41 {dimension_numbers = #tpu.dot_dimension_numbers<[1], [0], [0], [1], [0, 0, 1, 1], [], []>} : vector<16x32xbf16>, vector<32x128xbf16>, vector<16x128xf32> -> vector<16x128xf32>
    %123 = arith.addf %96, %122 : vector<16x128xf32>
    %124 = arith.addf %1, %123 : vector<16x128xf32>
    %c0_42 = arith.constant 0 : index
    %c0_43 = arith.constant 0 : index
    %125 = vector.load %arg6[%c0_42, %c0_43] : memref<1x128xf32, #tpu.memory_space<vmem>>, vector<1x128xf32>
    %126 = vector.broadcast %125 : vector<1x128xf32> to vector<16x128xf32>
    %127 = arith.addf %124, %126 : vector<16x128xf32>
    %c0_44 = arith.constant 0 : index
    %c0_45 = arith.constant 0 : index
    %128 = vector.load %arg7[%c0_44, %c0_45] : memref<1x128xf32, #tpu.memory_space<vmem>>, vector<1x128xf32>
    %c0_46 = arith.constant 0 : index
    %c0_47 = arith.constant 0 : index
    %129 = vector.load %arg8[%c0_46, %c0_47] : memref<1x128xf32, #tpu.memory_space<vmem>>, vector<1x128xf32>
    %cst_48 = arith.constant dense<0.000000e+00> : vector<16xf32>
    %130 = vector.multi_reduction <add>, %127, %cst_48 [1] : vector<16x128xf32> to vector<16xf32>
    %131 = vector.shape_cast %130 : vector<16xf32> to vector<16x1xf32>
    %cst_49 = arith.constant 1.280000e+02 : f32
    %132 = vector.broadcast %cst_49 : f32 to vector<16x1xf32>
    %133 = arith.divf %131, %132 : vector<16x1xf32>
    %134 = vector.broadcast %133 : vector<16x1xf32> to vector<16x128xf32>
    %135 = arith.subf %127, %134 : vector<16x128xf32>
    %136 = arith.mulf %135, %135 : vector<16x128xf32>
    %cst_50 = arith.constant dense<0.000000e+00> : vector<16xf32>
    %137 = vector.multi_reduction <add>, %136, %cst_50 [1] : vector<16x128xf32> to vector<16xf32>
    %138 = vector.shape_cast %137 : vector<16xf32> to vector<16x1xf32>
    %cst_51 = arith.constant 1.280000e+02 : f32
    %139 = vector.broadcast %cst_51 : f32 to vector<16x1xf32>
    %140 = arith.divf %138, %139 : vector<16x1xf32>
    %141 = vector.broadcast %133 : vector<16x1xf32> to vector<16x128xf32>
    %142 = arith.subf %127, %141 : vector<16x128xf32>
    %cst_52 = arith.constant 9.99999974E-6 : f32
    %143 = vector.broadcast %cst_52 : f32 to vector<16x1xf32>
    %144 = arith.addf %140, %143 : vector<16x1xf32>
    %145 = math.rsqrt %144 : vector<16x1xf32>
    %146 = vector.broadcast %145 : vector<16x1xf32> to vector<16x128xf32>
    %147 = arith.mulf %142, %146 : vector<16x128xf32>
    %148 = vector.broadcast %128 : vector<1x128xf32> to vector<16x128xf32>
    %149 = arith.mulf %147, %148 : vector<16x128xf32>
    %150 = vector.broadcast %129 : vector<1x128xf32> to vector<16x128xf32>
    %151 = arith.addf %149, %150 : vector<16x128xf32>
    %152 = arith.truncf %151 : vector<16x128xf32> to vector<16x128xbf16>
    %c0_53 = arith.constant 0 : index
    %c0_54 = arith.constant 0 : index
    %153 = vector.load %arg9[%c0_53, %c0_54] : memref<128x256xbf16, #tpu.memory_space<vmem>>, vector<128x256xbf16>
    %cst_55 = arith.constant dense<0.000000e+00> : vector<16x256xf32>
    %154 = tpu.matmul %152, %153, %cst_55 {dimension_numbers = #tpu.dot_dimension_numbers<[1], [0], [0], [1], [0, 0, 1, 1], [], []>} : vector<16x128xbf16>, vector<128x256xbf16>, vector<16x256xf32> -> vector<16x256xf32>
    %c0_56 = arith.constant 0 : index
    %c0_57 = arith.constant 0 : index
    %155 = vector.load %arg10[%c0_56, %c0_57] : memref<1x256xf32, #tpu.memory_space<vmem>>, vector<1x256xf32>
    %156 = vector.broadcast %155 : vector<1x256xf32> to vector<16x256xf32>
    %157 = arith.addf %154, %156 : vector<16x256xf32>
    %158 = arith.mulf %157, %157 : vector<16x256xf32>
    %159 = arith.mulf %157, %158 : vector<16x256xf32>
    %cst_58 = arith.constant 4.471500e-02 : f32
    %160 = vector.broadcast %cst_58 : f32 to vector<16x256xf32>
    %161 = arith.mulf %160, %159 : vector<16x256xf32>
    %162 = arith.addf %157, %161 : vector<16x256xf32>
    %cst_59 = arith.constant 0.797884583 : f32
    %163 = vector.broadcast %cst_59 : f32 to vector<16x256xf32>
    %164 = arith.mulf %163, %162 : vector<16x256xf32>
    %165 = math.tanh %164 : vector<16x256xf32>
    %cst_60 = arith.constant 1.000000e+00 : f32
    %166 = vector.broadcast %cst_60 : f32 to vector<16x256xf32>
    %167 = arith.addf %166, %165 : vector<16x256xf32>
    %cst_61 = arith.constant 5.000000e-01 : f32
    %168 = vector.broadcast %cst_61 : f32 to vector<16x256xf32>
    %169 = arith.mulf %168, %167 : vector<16x256xf32>
    %170 = arith.mulf %157, %169 : vector<16x256xf32>
    %171 = arith.truncf %170 : vector<16x256xf32> to vector<16x256xbf16>
    %c0_62 = arith.constant 0 : index
    %c0_63 = arith.constant 0 : index
    %172 = vector.load %arg11[%c0_62, %c0_63] : memref<256x128xbf16, #tpu.memory_space<vmem>>, vector<256x128xbf16>
    %cst_64 = arith.constant dense<0.000000e+00> : vector<16x128xf32>
    %173 = tpu.matmul %171, %172, %cst_64 {dimension_numbers = #tpu.dot_dimension_numbers<[1], [0], [0], [1], [0, 0, 1, 1], [], []>} : vector<16x256xbf16>, vector<256x128xbf16>, vector<16x128xf32> -> vector<16x128xf32>
    %c0_65 = arith.constant 0 : index
    %c0_66 = arith.constant 0 : index
    %174 = vector.load %arg12[%c0_65, %c0_66] : memref<1x128xf32, #tpu.memory_space<vmem>>, vector<1x128xf32>
    %175 = vector.broadcast %174 : vector<1x128xf32> to vector<16x128xf32>
    %176 = arith.addf %173, %175 : vector<16x128xf32>
    %177 = arith.addf %151, %176 : vector<16x128xf32>
    %c0_67 = arith.constant 0 : index
    %c0_68 = arith.constant 0 : index
    %178 = vector.load %arg13[%c0_67, %c0_68] : memref<1x128xf32, #tpu.memory_space<vmem>>, vector<1x128xf32>
    %c0_69 = arith.constant 0 : index
    %c0_70 = arith.constant 0 : index
    %179 = vector.load %arg14[%c0_69, %c0_70] : memref<1x128xf32, #tpu.memory_space<vmem>>, vector<1x128xf32>
    %cst_71 = arith.constant dense<0.000000e+00> : vector<16xf32>
    %180 = vector.multi_reduction <add>, %177, %cst_71 [1] : vector<16x128xf32> to vector<16xf32>
    %181 = vector.shape_cast %180 : vector<16xf32> to vector<16x1xf32>
    %cst_72 = arith.constant 1.280000e+02 : f32
    %182 = vector.broadcast %cst_72 : f32 to vector<16x1xf32>
    %183 = arith.divf %181, %182 : vector<16x1xf32>
    %184 = vector.broadcast %183 : vector<16x1xf32> to vector<16x128xf32>
    %185 = arith.subf %177, %184 : vector<16x128xf32>
    %186 = arith.mulf %185, %185 : vector<16x128xf32>
    %cst_73 = arith.constant dense<0.000000e+00> : vector<16xf32>
    %187 = vector.multi_reduction <add>, %186, %cst_73 [1] : vector<16x128xf32> to vector<16xf32>
    %188 = vector.shape_cast %187 : vector<16xf32> to vector<16x1xf32>
    %cst_74 = arith.constant 1.280000e+02 : f32
    %189 = vector.broadcast %cst_74 : f32 to vector<16x1xf32>
    %190 = arith.divf %188, %189 : vector<16x1xf32>
    %191 = vector.broadcast %183 : vector<16x1xf32> to vector<16x128xf32>
    %192 = arith.subf %177, %191 : vector<16x128xf32>
    %cst_75 = arith.constant 9.99999974E-6 : f32
    %193 = vector.broadcast %cst_75 : f32 to vector<16x1xf32>
    %194 = arith.addf %190, %193 : vector<16x1xf32>
    %195 = math.rsqrt %194 : vector<16x1xf32>
    %196 = vector.broadcast %195 : vector<16x1xf32> to vector<16x128xf32>
    %197 = arith.mulf %192, %196 : vector<16x128xf32>
    %198 = vector.broadcast %178 : vector<1x128xf32> to vector<16x128xf32>
    %199 = arith.mulf %197, %198 : vector<16x128xf32>
    %200 = vector.broadcast %179 : vector<1x128xf32> to vector<16x128xf32>
    %201 = arith.addf %199, %200 : vector<16x128xf32>
    %c0_76 = arith.constant 0 : index
    %c0_77 = arith.constant 0 : index
    %c0_78 = arith.constant 0 : index
    %202 = vector.load %arg15[%c0_76, %c0_77, %c0_78] : memref<1x16x128xf32, #tpu.memory_space<vmem>>, vector<1x16x128xf32>
    %203 = vector.shape_cast %202 : vector<1x16x128xf32> to vector<16x128xf32>
    %204 = vector.shape_cast %201 : vector<16x128xf32> to vector<1x16x128xf32>
    tpu.vector_store %arg15[%c0_76, %c0_77, %c0_78], %204 {strides = array<i32>} : memref<1x16x128xf32, #tpu.memory_space<vmem>>, vector<1x16x128xf32>,
    return
  }
  func.func @transform_0(%arg0: i32) -> (i32, i32, i32) {
    %c0_i32 = arith.constant 0 : i32
    %c0_i32_0 = arith.constant 0 : i32
    %c0_i32_1 = arith.constant 0 : i32
    return %arg0, %c0_i32, %c0_i32_0 : i32, i32, i32
  }
  func.func @transform_1(%arg0: i32) -> (i32, i32, i32) {
    %c0_i32 = arith.constant 0 : i32
    %c0_i32_0 = arith.constant 0 : i32
    %c0_i32_1 = arith.constant 0 : i32
    return %arg0, %c0_i32, %c0_i32_0 : i32, i32, i32
  }
  func.func @transform_2(%arg0: i32) -> (i32, i32) {
    %c0_i32 = arith.constant 0 : i32
    %c0_i32_0 = arith.constant 0 : i32
    %c0_i32_1 = arith.constant 0 : i32
    return %c0_i32, %c0_i32_0 : i32, i32
  }
  func.func @transform_3(%arg0: i32) -> (i32, i32) {
    %c0_i32 = arith.constant 0 : i32
    %c0_i32_0 = arith.constant 0 : i32
    %c0_i32_1 = arith.constant 0 : i32
    return %c0_i32, %c0_i32_0 : i32, i32
  }
  func.func @transform_4(%arg0: i32) -> (i32, i32) {
    %c0_i32 = arith.constant 0 : i32
    %c0_i32_0 = arith.constant 0 : i32
    %c0_i32_1 = arith.constant 0 : i32
    return %c0_i32, %c0_i32_0 : i32, i32
  }
  func.func @transform_5(%arg0: i32) -> (i32, i32) {
    %c0_i32 = arith.constant 0 : i32
    %c0_i32_0 = arith.constant 0 : i32
    %c0_i32_1 = arith.constant 0 : i32
    return %c0_i32, %c0_i32_0 : i32, i32
  }
  func.func @transform_6(%arg0: i32) -> (i32, i32) {
    %c0_i32 = arith.constant 0 : i32
    %c0_i32_0 = arith.constant 0 : i32
    %c0_i32_1 = arith.constant 0 : i32
    return %c0_i32, %c0_i32_0 : i32, i32
  }
  func.func @transform_7(%arg0: i32) -> (i32, i32) {
    %c0_i32 = arith.constant 0 : i32
    %c0_i32_0 = arith.constant 0 : i32
    %c0_i32_1 = arith.constant 0 : i32
    return %c0_i32, %c0_i32_0 : i32, i32
  }
  func.func @transform_8(%arg0: i32) -> (i32, i32) {
    %c0_i32 = arith.constant 0 : i32
    %c0_i32_0 = arith.constant 0 : i32
    %c0_i32_1 = arith.constant 0 : i32
    return %c0_i32, %c0_i32_0 : i32, i32
  }
  func.func @transform_9(%arg0: i32) -> (i32, i32) {
    %c0_i32 = arith.constant 0 : i32
    %c0_i32_0 = arith.constant 0 : i32
    %c0_i32_1 = arith.constant 0 : i32
    return %c0_i32, %c0_i32_0 : i32, i32
  }
  func.func @transform_10(%arg0: i32) -> (i32, i32) {
    %c0_i32 = arith.constant 0 : i32
    %c0_i32_0 = arith.constant 0 : i32
    %c0_i32_1 = arith.constant 0 : i32
    return %c0_i32, %c0_i32_0 : i32, i32
  }
  func.func @transform_11(%arg0: i32) -> (i32, i32) {
    %c0_i32 = arith.constant 0 : i32
    %c0_i32_0 = arith.constant 0 : i32
    %c0_i32_1 = arith.constant 0 : i32
    return %c0_i32, %c0_i32_0 : i32, i32
  }
  func.func @transform_12(%arg0: i32) -> (i32, i32) {
    %c0_i32 = arith.constant 0 : i32
    %c0_i32_0 = arith.constant 0 : i32
    %c0_i32_1 = arith.constant 0 : i32
    return %c0_i32, %c0_i32_0 : i32, i32
  }
  func.func @transform_13(%arg0: i32) -> (i32, i32) {
    %c0_i32 = arith.constant 0 : i32
    %c0_i32_0 = arith.constant 0 : i32
    %c0_i32_1 = arith.constant 0 : i32
    return %c0_i32, %c0_i32_0 : i32, i32
  }
  func.func @transform_14(%arg0: i32) -> (i32, i32, i32) {
    %c0_i32 = arith.constant 0 : i32
    %c0_i32_0 = arith.constant 0 : i32
    %c0_i32_1 = arith.constant 0 : i32
    return %arg0, %c0_i32, %c0_i32_0 : i32, i32, i32
  }
}

</mosaic_0001>

<llo_original>
// kernel: _lambda_.3
$region0: #{_lambda_.3}
  #allocation0 [shape = 'u32[]', space=smem, size = 0x4, offset = 0x4, fixed_abs, tag = 'smem constant byte address 0x4 - core index']
  #allocation1 [shape = 'u32[144,128]{1,0:T(1,128)}', space=vmem, size = 0x12000, scoped, tag = 'internal scratch']
  %s0 = inlined_call_operand.hbm [shape: f32[32,128], index: 0, kind: input, shape index: {}]
  %s1 = inlined_call_operand.hbm [shape: f32[1,128], index: 1, kind: input, shape index: {}]
  %s2 = inlined_call_operand.hbm [shape: f32[1,128], index: 2, kind: input, shape index: {}]
  %s3 = inlined_call_operand.hbm [shape: f32[32,128], index: 3, kind: output, shape index: {}]
  %s4 = sld [smem:[#allocation0]]
  $region34: #{_lambda_.3} parent=0
    _
  %s6 = ssub.s32 1, %s4
  %s7 = scalar_select 0, %s6, %s4
  $region1: #{_lambda_.3} parent=0
    #allocation2 [shape = 'u8[16384]{0}', space=vmem, size = 0x4000, scoped, tag = 'input window, operand 0, single buffered']
    #allocation3 [shape = 's32[1]{0}', space=sflag, size = 0x4, scoped, tag = 'scoped memory for _lambda_.3']
    #allocation4 [shape = 's32[1]{0}', space=sflag, size = 0x4, scoped, tag = 'scoped memory for _lambda_.3']
    #allocation5 [shape = 'u8[512]{0}', space=vmem, size = 0x400, scoped, tag = 'input window, operand 1, single buffered']
    #allocation6 [shape = 's32[1]{0}', space=sflag, size = 0x4, scoped, tag = 'scoped memory for _lambda_.3']
    #allocation7 [shape = 'u8[512]{0}', space=vmem, size = 0x400, scoped, tag = 'input window, operand 2, single buffered']
    #allocation8 [shape = 'u8[16384]{0}', space=vmem, size = 0x4000, scoped, tag = 'output window, operand 0, single buffered']
    %8 = vsyncpa [#allocation3], 0
    %9 = vsyncpa [#allocation6], 0
    %10 = vsyncpa [#allocation4], 0
    // Predicated region
    $region2: #{_lambda_.3} parent=1 // pred_check
      _
    $region3: #{_lambda_.3} parent=1 // pred_check_branch
      %12 = sbr.rel (0) target = $region5
    $region4: #{_lambda_.3} parent=1 // pred_region
      %s14 = ssub.s32 512, 512
      %15 = vsyncadd [#allocation3], %s14
      %s16 = sshll.u32 [#allocation2], 4
      %s17 = int_to_ptr.vmem [resolvable:$true] %s16
      %22 = dma.hbm_to_vmem [thread:$0]  %s0, 512, %s17, [#allocation3], 128, 128, 8
    $region5: #{_lambda_.3} parent=1 // pred_fallthru
      _
    // Predicated region
    $region6: #{_lambda_.3} parent=1 // pred_check
      _
    $region7: #{_lambda_.3} parent=1 // pred_check_branch
      %24 = sbr.rel (0) target = $region9
    $region8: #{_lambda_.3} parent=1 // pred_region
      %s26 = ssub.s32 16, 16
      %27 = vsyncadd [#allocation6], %s26
      %s29 = sshll.u32 [#allocation5], 4
      %s30 = int_to_ptr.vmem [resolvable:$true] %s29
      %32 = dma.hbm_to_vmem [thread:$0]  %s1, 16, %s30, [#allocation6]
    $region9: #{_lambda_.3} parent=1 // pred_fallthru
      _
    // Predicated region
    $region10: #{_lambda_.3} parent=1 // pred_check
      _
    $region11: #{_lambda_.3} parent=1 // pred_check_branch
      %34 = sbr.rel (0) target = $region13
    $region12: #{_lambda_.3} parent=1 // pred_region
      %s36 = ssub.s32 16, 16
      %37 = vsyncadd [#allocation6], %s36
      %s39 = sshll.u32 [#allocation7], 4
      %s40 = int_to_ptr.vmem [resolvable:$true] %s39
      %42 = dma.hbm_to_vmem [thread:$0]  %s2, 16, %s40, [#allocation6]
    $region13: #{_lambda_.3} parent=1 // pred_fallthru
      _
    // Predicated region
    $region14: #{_lambda_.3} parent=1 // pred_check
      _
    $region15: #{_lambda_.3} parent=1 // pred_check_branch
      %44 = sbr.rel (0) target = $region17
    $region16: #{_lambda_.3} parent=1 // pred_region
      %45 = dma.done [#allocation3], 512
    $region17: #{_lambda_.3} parent=1 // pred_fallthru
      _
    // Predicated region
    $region18: #{_lambda_.3} parent=1 // pred_check
      _
    $region19: #{_lambda_.3} parent=1 // pred_check_branch
      %47 = sbr.rel (0) target = $region21
    $region20: #{_lambda_.3} parent=1 // pred_region
      %48 = dma.done [#allocation6], 16
    $region21: #{_lambda_.3} parent=1 // pred_fallthru
      _
    // Predicated region
    $region22: #{_lambda_.3} parent=1 // pred_check
      _
    $region23: #{_lambda_.3} parent=1 // pred_check_branch
      %50 = sbr.rel (0) target = $region25
    $region24: #{_lambda_.3} parent=1 // pred_region
      %51 = dma.done [#allocation6], 16
    $region25: #{_lambda_.3} parent=1 // pred_fallthru
      _
    %v52 = vld [vmem:[#allocation2] sm:$0xff]
    %v53 = vld [vmem:[#allocation2 + $0x8] sm:$0xff]
    %v54 = vld [vmem:[#allocation2 + $0x10] sm:$0xff]
    %v55 = vld [vmem:[#allocation2 + $0x18] sm:$0xff]
    %v56 = vld [vmem:[#allocation5] sm:$0x1]
    %v57 = vld [vmem:[#allocation7] sm:$0x1]
    %58 = vadd.xlane.f32.xlu0 %v52
    %v59 = vpop.xlane.xlu0 %58
    %60 = vadd.xlane.f32.xlu0 %v53
    %v61 = vpop.xlane.xlu0 %60
    %62 = vadd.xlane.f32.xlu0 %v54
    %v63 = vpop.xlane.xlu0 %62
    %64 = vadd.xlane.f32.xlu0 %v55
    %v65 = vpop.xlane.xlu0 %64
    %v66 = vrcp.pop 128.0
    %v67 = vmul.f32 %v59, %v66
    %v68 = vmul.f32 %v61, %v66
    %v69 = vmul.f32 %v63, %v66
    %v70 = vmul.f32 %v65, %v66
    %v71 = vsub.f32 %v52, %v67
    %v72 = vsub.f32 %v53, %v68
    %v73 = vsub.f32 %v54, %v69
    %v74 = vsub.f32 %v55, %v70
    %v75 = vmul.f32 %v71, %v71
    %v76 = vmul.f32 %v72, %v72
    %v77 = vmul.f32 %v73, %v73
    %v78 = vmul.f32 %v74, %v74
    %79 = vadd.xlane.f32.xlu0 %v75
    %v80 = vpop.xlane.xlu0 %79
    %81 = vadd.xlane.f32.xlu0 %v76
    %v82 = vpop.xlane.xlu0 %81
    %83 = vadd.xlane.f32.xlu0 %v77
    %v84 = vpop.xlane.xlu0 %83
    %85 = vadd.xlane.f32.xlu0 %v78
    %v86 = vpop.xlane.xlu0 %85
    %v87 = vmul.f32 %v80, %v66
    %v88 = vmul.f32 %v82, %v66
    %v89 = vmul.f32 %v84, %v66
    %v90 = vmul.f32 %v86, %v66
    %v91 = vadd.f32 %v87, 1e-05
    %v92 = vadd.f32 %v88, 1e-05
    %v93 = vadd.f32 %v89, 1e-05
    %v94 = vadd.f32 %v90, 1e-05
    %v95 = vrsqrt.pop %v91
    %v96 = vrsqrt.pop %v92
    %v97 = vrsqrt.pop %v93
    %v98 = vrsqrt.pop %v94
    %v99 = vmul.f32 %v71, %v95
    %v100 = vmul.f32 %v72, %v96
    %v101 = vmul.f32 %v73, %v97
    %v102 = vmul.f32 %v74, %v98
    %v104 = vlaneseq
    %v105 = vshrl.u32 %v104, 7
    %v106 = vsub.s32 0, %v105
    %v107 = vrot.slane %v56, %v106
    %v109 = vmul.f32 %v99, %v107
    %v110 = vmul.f32 %v100, %v107
    %v111 = vmul.f32 %v101, %v107
    %v112 = vmul.f32 %v102, %v107
    %v114 = vlaneseq
    %v115 = vshrl.u32 %v114, 7
    %v116 = vsub.s32 0, %v115
    %v117 = vrot.slane %v57, %v116
    %v119 = vadd.f32 %v109, %v117
    %v120 = vadd.f32 %v110, %v117
    %v121 = vadd.f32 %v111, %v117
    %v122 = vadd.f32 %v112, %v117
    %123 = vst [vmem:[#allocation8] sm:$0xff] %v119
    %124 = vst [vmem:[#allocation8 + $0x8] sm:$0xff] %v120
    %125 = vst [vmem:[#allocation8 + $0x10] sm:$0xff] %v121
    %126 = vst [vmem:[#allocation8 + $0x18] sm:$0xff] %v122
    // Predicated region
    $region26: #{_lambda_.3} parent=1 // pred_check
      _
    $region27: #{_lambda_.3} parent=1 // pred_check_branch
      %128 = sbr.rel (0) target = $region29
    $region28: #{_lambda_.3} parent=1 // pred_region
      %s130 = ssub.s32 512, 512
      %131 = vsyncadd [#allocation4], %s130
      %s132 = sshll.u32 [#allocation8], 4
      %s133 = int_to_ptr.vmem [resolvable:$true] %s132
      %138 = dma.vmem_to_hbm [thread:$0]  %s133, 512, %s3, [#allocation4], 128, 128, 8
    $region29: #{_lambda_.3} parent=1 // pred_fallthru
      _
    // Predicated region
    $region30: #{_lambda_.3} parent=1 // pred_check
      _
    $region31: #{_lambda_.3} parent=1 // pred_check_branch
      %140 = sbr.rel (0) target = $region33
    $region32: #{_lambda_.3} parent=1 // pred_region
      %141 = dma.done [#allocation4], 512
    $region33: #{_lambda_.3} parent=1 // pred_fallthru
      _
    %142 = vsyncpa [#allocation3], 1
    %143 = vsyncpa [#allocation6], 1
    %144 = vsyncpa [#allocation4], 1

// kernel: _lambda_.4
$region0: #{_lambda_.4}
  #allocation0 [shape = 'u32[]', space=smem, size = 0x4, offset = 0x4, fixed_abs, tag = 'smem constant byte address 0x4 - core index']
  #allocation1 [shape = 'u32[144,128]{1,0:T(1,128)}', space=vmem, size = 0x12000, scoped, tag = 'internal scratch']
  %s0 = inlined_call_operand.hbm [shape: f32[2,16,128], index: 0, kind: input, shape index: {}]
  %s1 = inlined_call_operand.hbm [shape: f32[2,1,16], index: 1, kind: input, shape index: {}]
  %s2 = inlined_call_operand.hbm [shape: bf16[128,384], index: 2, kind: input, shape index: {}]
  %s3 = inlined_call_operand.hbm [shape: f32[1,384], index: 3, kind: input, shape index: {}]
  %s4 = inlined_call_operand.hbm [shape: bf16[128,128], index: 4, kind: input, shape index: {}]
  %s5 = inlined_call_operand.hbm [shape: f32[1,128], index: 5, kind: input, shape index: {}]
  %s6 = inlined_call_operand.hbm [shape: f32[1,128], index: 6, kind: input, shape index: {}]
  %s7 = inlined_call_operand.hbm [shape: f32[1,128], index: 7, kind: input, shape index: {}]
  %s8 = inlined_call_operand.hbm [shape: bf16[128,256], index: 8, kind: input, shape index: {}]
  %s9 = inlined_call_operand.hbm [shape: f32[1,256], index: 9, kind: input, shape index: {}]
  %s10 = inlined_call_operand.hbm [shape: bf16[256,128], index: 10, kind: input, shape index: {}]
  %s11 = inlined_call_operand.hbm [shape: f32[1,128], index: 11, kind: input, shape index: {}]
  %s12 = inlined_call_operand.hbm [shape: f32[1,128], index: 12, kind: input, shape index: {}]
  %s13 = inlined_call_operand.hbm [shape: f32[1,128], index: 13, kind: input, shape index: {}]
  %s14 = inlined_call_operand.hbm [shape: f32[2,16,128], index: 14, kind: output, shape index: {}]
  %s15 = sld [smem:[#allocation0]]
  $region145: #{_lambda_.4} parent=0
    _
  %s17 = ssub.s32 1, %s15
  %s18 = scalar_select 0, %s17, %s15
  $region1: #{_lambda_.4} parent=0
    #allocation2 [shape = 'u8[16384]{0}', space=vmem, size = 0x4000, scoped, tag = 'input window, operand 0']
    #allocation3 [shape = 's32[2]{0}', space=sflag, size = 0x8, scoped, tag = 'scoped memory for _lambda_.4']
    #allocation4 [shape = 's32[2]{0}', space=sflag, size = 0x8, scoped, tag = 'scoped memory for _lambda_.4']
    #allocation5 [shape = 'u8[1024]{0}', space=vmem, size = 0x400, scoped, tag = 'input window, operand 1']
    #allocation6 [shape = 's32[2]{0}', space=sflag, size = 0x8, scoped, tag = 'scoped memory for _lambda_.4']
    #allocation7 [shape = 'u8[98304]{0}', space=vmem, size = 0x18000, scoped, tag = 'input window, operand 2, single buffered']
    #allocation8 [shape = 'u8[1536]{0}', space=vmem, size = 0x800, scoped, tag = 'input window, operand 3, single buffered']
    #allocation9 [shape = 's32[1]{0}', space=sflag, size = 0x4, scoped, tag = 'scoped memory for _lambda_.4']
    #allocation10 [shape = 'u8[32768]{0}', space=vmem, size = 0x8000, scoped, tag = 'input window, operand 4, single buffered']
    #allocation11 [shape = 'u8[512]{0}', space=vmem, size = 0x400, scoped, tag = 'input window, operand 5, single buffered']
    #allocation12 [shape = 's32[1]{0}', space=sflag, size = 0x4, scoped, tag = 'scoped memory for _lambda_.4']
    #allocation13 [shape = 'u8[512]{0}', space=vmem, size = 0x400, scoped, tag = 'input window, operand 6, single buffered']
    #allocation14 [shape = 'u8[512]{0}', space=vmem, size = 0x400, scoped, tag = 'input window, operand 7, single buffered']
    #allocation15 [shape = 's32[1]{0}', space=sflag, size = 0x4, scoped, tag = 'scoped memory for _lambda_.4']
    #allocation16 [shape = 'u8[65536]{0}', space=vmem, size = 0x10000, scoped, tag = 'input window, operand 8, single buffered']
    #allocation17 [shape = 'u8[1024]{0}', space=vmem, size = 0x400, scoped, tag = 'input window, operand 9, single buffered']
    #allocation18 [shape = 's32[1]{0}', space=sflag, size = 0x4, scoped, tag = 'scoped memory for _lambda_.4']
    #allocation19 [shape = 'u8[65536]{0}', space=vmem, size = 0x10000, scoped, tag = 'input window, operand 10, single buffered']
    #allocation20 [shape = 'u8[512]{0}', space=vmem, size = 0x400, scoped, tag = 'input window, operand 11, single buffered']
    #allocation21 [shape = 's32[1]{0}', space=sflag, size = 0x4, scoped, tag = 'scoped memory for _lambda_.4']
    #allocation22 [shape = 'u8[512]{0}', space=vmem, size = 0x400, scoped, tag = 'input window, operand 12, single buffered']
    #allocation23 [shape = 'u8[512]{0}', space=vmem, size = 0x400, scoped, tag = 'input window, operand 13, single buffered']
    #allocation24 [shape = 's32[1]{0}', space=sflag, size = 0x4, scoped, tag = 'scoped memory for _lambda_.4']
    #allocation25 [shape = 'u8[16384]{0}', space=vmem, size = 0x4000, scoped, tag = 'output window, operand 0']
    %19 = vsyncpa [#allocation3], 0
    %s20 = scalar_lea.sflag [#allocation3], 1
    %21 = vsyncpa %s20, 0
    %22 = vsyncpa [#allocation6], 0
    %s23 = scalar_lea.sflag [#allocation6], 1
    %24 = vsyncpa %s23, 0
    %25 = vsyncpa [#allocation9], 0
    %26 = vsyncpa [#allocation12], 0
    %27 = vsyncpa [#allocation15], 0
    %28 = vsyncpa [#allocation18], 0
    %29 = vsyncpa [#allocation21], 0
    %30 = vsyncpa [#allocation24], 0
    %31 = vsyncpa [#allocation4], 0
    %s32 = scalar_lea.sflag [#allocation4], 1
    %33 = vsyncpa %s32, 0
    loop: start=0, step=1, limit=4
    $region2: #{_lambda_.4} parent=1 // loop_pre_header
      _
    $region3: #{_lambda_.4} parent=1 // loop_header
      %s35 = sphi 0, %s39
      %p36 = scmp.ge.s32.totalorder %s35, 4
      %s45 = sphi 0, %s47
      %s48 = sphi 0, %s45
      %s49 = sphi 0, %s48
      %s65 = sphi 0, %s49
      %s71 = sphi 0, %s73
      %s74 = sphi 0, %s71
      %s75 = sphi 0, %s74
      %s91 = sphi 0, %s75
      %s95 = sphi 0, %s95
      %s97 = sphi 0, %s95
      %s98 = sphi 0, %s97
      %s112 = sphi 0, %s98
      %s116 = sphi 0, %s116
      %s118 = sphi 0, %s116
      %s119 = sphi 0, %s118
      %s133 = sphi 0, %s119
      %s137 = sphi 0, %s137
      %s139 = sphi 0, %s137
      %s140 = sphi 0, %s139
      %s154 = sphi 0, %s140
      %s158 = sphi 0, %s158
      %s160 = sphi 0, %s158
      %s161 = sphi 0, %s160
      %s175 = sphi 0, %s161
      %s179 = sphi 0, %s179
      %s181 = sphi 0, %s179
      %s182 = sphi 0, %s181
      %s196 = sphi 0, %s182
      %s200 = sphi 0, %s200
      %s202 = sphi 0, %s200
      %s203 = sphi 0, %s202
      %s217 = sphi 0, %s203
      %s221 = sphi 0, %s221
      %s223 = sphi 0, %s221
      %s224 = sphi 0, %s223
      %s238 = sphi 0, %s224
      %s242 = sphi 0, %s242
      %s244 = sphi 0, %s242
      %s245 = sphi 0, %s244
      %s259 = sphi 0, %s245
      %s263 = sphi 0, %s263
      %s265 = sphi 0, %s263
      %s266 = sphi 0, %s265
      %s280 = sphi 0, %s266
      %s284 = sphi 0, %s284
      %s286 = sphi 0, %s284
      %s287 = sphi 0, %s286
      %s301 = sphi 0, %s287
      %s305 = sphi 0, %s305
      %s307 = sphi 0, %s305
      %s308 = sphi 0, %s307
      %s322 = sphi 0, %s308
      %s326 = sphi 0, %s326
      %s328 = sphi 0, %s326
      %s329 = sphi 0, %s328
      %s343 = sphi 0, %s329
      %s349 = sphi 0, %s351
      %s352 = sphi 0, %s349
      %s353 = sphi 0, %s352
      %s369 = sphi 0, %s353
    $region4: #{_lambda_.4} parent=1 // loop_header_branch
      %38 = sbr.rel (%p36) target = $region8
    $region5: #{_lambda_.4} parent=1 // loop_body
      %s40 = ssub.s32 %s35, 1
      %s41 = ssub.s32 %s35, 2
      %s42 = sadd.s32 %s35, 1
      %s43 = ssub.s32 %s35, %s42
      %p44 = scmp.eq.s32.totalorder %s43, 0
      %s46 = sadd.s32 %s45, 1
      %s47 = scalar_select %p44, %s45, %s46
      %p50 = pneg %p44
      %p51 = scmp.eq.s32.totalorder %s35, 1
      %p52 = por %p50, %p51
      %p53 = scmp.ne.s32.totalorder %s45, %s48
      %p54 = scmp.eq.s32.totalorder %s35, 0
      %p55 = por %p53, %p54
      %p56 = scmp.ne.s32.totalorder %s45, %s48
      %p57 = scmp.eq.s32.totalorder %s40, 1
      %p58 = por %p56, %p57
      %p59 = scmp.ne.s32.totalorder %s48, %s49
      %p60 = scmp.eq.s32.totalorder %s40, 0
      %p61 = por %p59, %p60
      %p62 = scmp.ne.s32.totalorder %s48, %s49
      %p63 = scmp.eq.s32.totalorder %s41, 1
      %p64 = por %p62, %p63
      %p66 = scmp.ne.s32.totalorder %s49, %s65
      %p67 = scmp.eq.s32.totalorder %s41, 0
      %p68 = por %p66, %p67
      %s69 = ssub.s32 %s35, %s42
      %p70 = scmp.eq.s32.totalorder %s69, 0
      %s72 = sadd.s32 %s71, 1
      %s73 = scalar_select %p70, %s71, %s72
      %p76 = pneg %p70
      %p77 = scmp.eq.s32.totalorder %s35, 1
      %p78 = por %p76, %p77
      %p79 = scmp.ne.s32.totalorder %s71, %s74
      %p80 = scmp.eq.s32.totalorder %s35, 0
      %p81 = por %p79, %p80
      %p82 = scmp.ne.s32.totalorder %s71, %s74
      %p83 = scmp.eq.s32.totalorder %s40, 1
      %p84 = por %p82, %p83
      %p85 = scmp.ne.s32.totalorder %s74, %s75
      %p86 = scmp.eq.s32.totalorder %s40, 0
      %p87 = por %p85, %p86
      %p88 = scmp.ne.s32.totalorder %s74, %s75
      %p89 = scmp.eq.s32.totalorder %s41, 1
      %p90 = por %p88, %p89
      %p92 = scmp.ne.s32.totalorder %s75, %s91
      %p93 = scmp.eq.s32.totalorder %s41, 0
      %p94 = por %p92, %p93
      %s96 = sadd.s32 %s95, 1
      %p99 = scmp.eq.s32.totalorder %s35, 1
      %p100 = scmp.ne.s32.totalorder %s95, %s97
      %p101 = scmp.eq.s32.totalorder %s35, 0
      %p102 = por %p100, %p101
      %p103 = scmp.ne.s32.totalorder %s95, %s97
      %p104 = scmp.eq.s32.totalorder %s40, 1
      %p105 = por %p103, %p104
      %p106 = scmp.ne.s32.totalorder %s97, %s98
      %p107 = scmp.eq.s32.totalorder %s40, 0
      %p108 = por %p106, %p107
      %p109 = scmp.ne.s32.totalorder %s97, %s98
      %p110 = scmp.eq.s32.totalorder %s41, 1
      %p111 = por %p109, %p110
      %p113 = scmp.ne.s32.totalorder %s98, %s112
      %p114 = scmp.eq.s32.totalorder %s41, 0
      %p115 = por %p113, %p114
      %s117 = sadd.s32 %s116, 1
      %p120 = scmp.eq.s32.totalorder %s35, 1
      %p121 = scmp.ne.s32.totalorder %s116, %s118
      %p122 = scmp.eq.s32.totalorder %s35, 0
      %p123 = por %p121, %p122
      %p124 = scmp.ne.s32.totalorder %s116, %s118
      %p125 = scmp.eq.s32.totalorder %s40, 1
      %p126 = por %p124, %p125
      %p127 = scmp.ne.s32.totalorder %s118, %s119
      %p128 = scmp.eq.s32.totalorder %s40, 0
      %p129 = por %p127, %p128
      %p130 = scmp.ne.s32.totalorder %s118, %s119
      %p131 = scmp.eq.s32.totalorder %s41, 1
      %p132 = por %p130, %p131
      %p134 = scmp.ne.s32.totalorder %s119, %s133
      %p135 = scmp.eq.s32.totalorder %s41, 0
      %p136 = por %p134, %p135
      %s138 = sadd.s32 %s137, 1
      %p141 = scmp.eq.s32.totalorder %s35, 1
      %p142 = scmp.ne.s32.totalorder %s137, %s139
      %p143 = scmp.eq.s32.totalorder %s35, 0
      %p144 = por %p142, %p143
      %p145 = scmp.ne.s32.totalorder %s137, %s139
      %p146 = scmp.eq.s32.totalorder %s40, 1
      %p147 = por %p145, %p146
      %p148 = scmp.ne.s32.totalorder %s139, %s140
      %p149 = scmp.eq.s32.totalorder %s40, 0
      %p150 = por %p148, %p149
      %p151 = scmp.ne.s32.totalorder %s139, %s140
      %p152 = scmp.eq.s32.totalorder %s41, 1
      %p153 = por %p151, %p152
      %p155 = scmp.ne.s32.totalorder %s140, %s154
      %p156 = scmp.eq.s32.totalorder %s41, 0
      %p157 = por %p155, %p156
      %s159 = sadd.s32 %s158, 1
      %p162 = scmp.eq.s32.totalorder %s35, 1
      %p163 = scmp.ne.s32.totalorder %s158, %s160
      %p164 = scmp.eq.s32.totalorder %s35, 0
      %p165 = por %p163, %p164
      %p166 = scmp.ne.s32.totalorder %s158, %s160
      %p167 = scmp.eq.s32.totalorder %s40, 1
      %p168 = por %p166, %p167
      %p169 = scmp.ne.s32.totalorder %s160, %s161
      %p170 = scmp.eq.s32.totalorder %s40, 0
      %p171 = por %p169, %p170
      %p172 = scmp.ne.s32.totalorder %s160, %s161
      %p173 = scmp.eq.s32.totalorder %s41, 1
      %p174 = por %p172, %p173
      %p176 = scmp.ne.s32.totalorder %s161, %s175
      %p177 = scmp.eq.s32.totalorder %s41, 0
      %p178 = por %p176, %p177
      %s180 = sadd.s32 %s179, 1
      %p183 = scmp.eq.s32.totalorder %s35, 1
      %p184 = scmp.ne.s32.totalorder %s179, %s181
      %p185 = scmp.eq.s32.totalorder %s35, 0
      %p186 = por %p184, %p185
      %p187 = scmp.ne.s32.totalorder %s179, %s181
      %p188 = scmp.eq.s32.totalorder %s40, 1
      %p189 = por %p187, %p188
      %p190 = scmp.ne.s32.totalorder %s181, %s182
      %p191 = scmp.eq.s32.totalorder %s40, 0
      %p192 = por %p190, %p191
      %p193 = scmp.ne.s32.totalorder %s181, %s182
      %p194 = scmp.eq.s32.totalorder %s41, 1
      %p195 = por %p193, %p194
      %p197 = scmp.ne.s32.totalorder %s182, %s196
      %p198 = scmp.eq.s32.totalorder %s41, 0
      %p199 = por %p197, %p198
      %s201 = sadd.s32 %s200, 1
      %p204 = scmp.eq.s32.totalorder %s35, 1
      %p205 = scmp.ne.s32.totalorder %s200, %s202
      %p206 = scmp.eq.s32.totalorder %s35, 0
      %p207 = por %p205, %p206
      %p208 = scmp.ne.s32.totalorder %s200, %s202
      %p209 = scmp.eq.s32.totalorder %s40, 1
      %p210 = por %p208, %p209
      %p211 = scmp.ne.s32.totalorder %s202, %s203
      %p212 = scmp.eq.s32.totalorder %s40, 0
      %p213 = por %p211, %p212
      %p214 = scmp.ne.s32.totalorder %s202, %s203
      %p215 = scmp.eq.s32.totalorder %s41, 1
      %p216 = por %p214, %p215
      %p218 = scmp.ne.s32.totalorder %s203, %s217
      %p219 = scmp.eq.s32.totalorder %s41, 0
      %p220 = por %p218, %p219
      %s222 = sadd.s32 %s221, 1
      %p225 = scmp.eq.s32.totalorder %s35, 1
      %p226 = scmp.ne.s32.totalorder %s221, %s223
      %p227 = scmp.eq.s32.totalorder %s35, 0
      %p228 = por %p226, %p227
      %p229 = scmp.ne.s32.totalorder %s221, %s223
      %p230 = scmp.eq.s32.totalorder %s40, 1
      %p231 = por %p229, %p230
      %p232 = scmp.ne.s32.totalorder %s223, %s224
      %p233 = scmp.eq.s32.totalorder %s40, 0
      %p234 = por %p232, %p233
      %p235 = scmp.ne.s32.totalorder %s223, %s224
      %p236 = scmp.eq.s32.totalorder %s41, 1
      %p237 = por %p235, %p236
      %p239 = scmp.ne.s32.totalorder %s224, %s238
      %p240 = scmp.eq.s32.totalorder %s41, 0
      %p241 = por %p239, %p240
      %s243 = sadd.s32 %s242, 1
      %p246 = scmp.eq.s32.totalorder %s35, 1
      %p247 = scmp.ne.s32.totalorder %s242, %s244
      %p248 = scmp.eq.s32.totalorder %s35, 0
      %p249 = por %p247, %p248
      %p250 = scmp.ne.s32.totalorder %s242, %s244
      %p251 = scmp.eq.s32.totalorder %s40, 1
      %p252 = por %p250, %p251
      %p253 = scmp.ne.s32.totalorder %s244, %s245
      %p254 = scmp.eq.s32.totalorder %s40, 0
      %p255 = por %p253, %p254
      %p256 = scmp.ne.s32.totalorder %s244, %s245
      %p257 = scmp.eq.s32.totalorder %s41, 1
      %p258 = por %p256, %p257
      %p260 = scmp.ne.s32.totalorder %s245, %s259
      %p261 = scmp.eq.s32.totalorder %s41, 0
      %p262 = por %p260, %p261
      %s264 = sadd.s32 %s263, 1
      %p267 = scmp.eq.s32.totalorder %s35, 1
      %p268 = scmp.ne.s32.totalorder %s263, %s265
      %p269 = scmp.eq.s32.totalorder %s35, 0
      %p270 = por %p268, %p269
      %p271 = scmp.ne.s32.totalorder %s263, %s265
      %p272 = scmp.eq.s32.totalorder %s40, 1
      %p273 = por %p271, %p272
      %p274 = scmp.ne.s32.totalorder %s265, %s266
      %p275 = scmp.eq.s32.totalorder %s40, 0
      %p276 = por %p274, %p275
      %p277 = scmp.ne.s32.totalorder %s265, %s266
      %p278 = scmp.eq.s32.totalorder %s41, 1
      %p279 = por %p277, %p278
      %p281 = scmp.ne.s32.totalorder %s266, %s280
      %p282 = scmp.eq.s32.totalorder %s41, 0
      %p283 = por %p281, %p282
      %s285 = sadd.s32 %s284, 1
      %p288 = scmp.eq.s32.totalorder %s35, 1
      %p289 = scmp.ne.s32.totalorder %s284, %s286
      %p290 = scmp.eq.s32.totalorder %s35, 0
      %p291 = por %p289, %p290
      %p292 = scmp.ne.s32.totalorder %s284, %s286
      %p293 = scmp.eq.s32.totalorder %s40, 1
      %p294 = por %p292, %p293
      %p295 = scmp.ne.s32.totalorder %s286, %s287
      %p296 = scmp.eq.s32.totalorder %s40, 0
      %p297 = por %p295, %p296
      %p298 = scmp.ne.s32.totalorder %s286, %s287
      %p299 = scmp.eq.s32.totalorder %s41, 1
      %p300 = por %p298, %p299
      %p302 = scmp.ne.s32.totalorder %s287, %s301
      %p303 = scmp.eq.s32.totalorder %s41, 0
      %p304 = por %p302, %p303
      %s306 = sadd.s32 %s305, 1
      %p309 = scmp.eq.s32.totalorder %s35, 1
      %p310 = scmp.ne.s32.totalorder %s305, %s307
      %p311 = scmp.eq.s32.totalorder %s35, 0
      %p312 = por %p310, %p311
      %p313 = scmp.ne.s32.totalorder %s305, %s307
      %p314 = scmp.eq.s32.totalorder %s40, 1
      %p315 = por %p313, %p314
      %p316 = scmp.ne.s32.totalorder %s307, %s308
      %p317 = scmp.eq.s32.totalorder %s40, 0
      %p318 = por %p316, %p317
      %p319 = scmp.ne.s32.totalorder %s307, %s308
      %p320 = scmp.eq.s32.totalorder %s41, 1
      %p321 = por %p319, %p320
      %p323 = scmp.ne.s32.totalorder %s308, %s322
      %p324 = scmp.eq.s32.totalorder %s41, 0
      %p325 = por %p323, %p324
      %s327 = sadd.s32 %s326, 1
      %p330 = scmp.eq.s32.totalorder %s35, 1
      %p331 = scmp.ne.s32.totalorder %s326, %s328
      %p332 = scmp.eq.s32.totalorder %s35, 0
      %p333 = por %p331, %p332
      %p334 = scmp.ne.s32.totalorder %s326, %s328
      %p335 = scmp.eq.s32.totalorder %s40, 1
      %p336 = por %p334, %p335
      %p337 = scmp.ne.s32.totalorder %s328, %s329
      %p338 = scmp.eq.s32.totalorder %s40, 0
      %p339 = por %p337, %p338
      %p340 = scmp.ne.s32.totalorder %s328, %s329
      %p341 = scmp.eq.s32.totalorder %s41, 1
      %p342 = por %p340, %p341
      %p344 = scmp.ne.s32.totalorder %s329, %s343
      %p345 = scmp.eq.s32.totalorder %s41, 0
      %p346 = por %p344, %p345
      %s347 = ssub.s32 %s35, %s42
      %p348 = scmp.eq.s32.totalorder %s347, 0
      %s350 = sadd.s32 %s349, 1
      %s351 = scalar_select %p348, %s349, %s350
      %p354 = pneg %p348
      %p355 = scmp.eq.s32.totalorder %s35, 1
      %p356 = por %p354, %p355
      %p357 = scmp.ne.s32.totalorder %s349, %s352
      %p358 = scmp.eq.s32.totalorder %s35, 0
      %p359 = por %p357, %p358
      %p360 = scmp.ne.s32.totalorder %s349, %s352
      %p361 = scmp.eq.s32.totalorder %s40, 1
      %p362 = por %p360, %p361
      %p363 = scmp.ne.s32.totalorder %s352, %s353
      %p364 = scmp.eq.s32.totalorder %s40, 0
      %p365 = por %p363, %p364
      %p366 = scmp.ne.s32.totalorder %s352, %s353
      %p367 = scmp.eq.s32.totalorder %s41, 1
      %p368 = por %p366, %p367
      %p370 = scmp.ne.s32.totalorder %s353, %s369
      %p371 = scmp.eq.s32.totalorder %s41, 0
      %p372 = por %p370, %p371
      %p373 = scmp.le.s32.totalorder 1, %s35
      %p374 = scmp.lt.s32.totalorder %s35, 3
      %p375 = pnand %p373, %p374
      %p376 = pneg %p375
      // Predicated region
      $region9: #{_lambda_.4} parent=5 // pred_check
        _
      $region10: #{_lambda_.4} parent=5 // pred_check_branch
        %378 = sbr.rel (%p375) target = $region12
      $region11: #{_lambda_.4} parent=5 // pred_region
        %s379 = ssub.s32 %s35, 1
        // Predicated region
        $region13: #{_lambda_.4} parent=11 // pred_check
          %p380 = pneg %p108
        $region14: #{_lambda_.4} parent=11 // pred_check_branch
          %382 = sbr.rel (%p380) target = $region16
        $region15: #{_lambda_.4} parent=11 // pred_region
          %s384 = ssub.s32 3072, 3072
          %385 = vsyncadd [#allocation6], %s384
          %s386 = sshll.u32 [#allocation7], 4
          %s387 = int_to_ptr.vmem [resolvable:$true] %s386
          %392 = dma.hbm_to_vmem [thread:$0]  %s2, 3072, %s387, [#allocation6], 192, 192, 12
        $region16: #{_lambda_.4} parent=11 // pred_fallthru
          _
        // Predicated region
        $region17: #{_lambda_.4} parent=11 // pred_check
          %p393 = pneg %p129
        $region18: #{_lambda_.4} parent=11 // pred_check_branch
          %395 = sbr.rel (%p393) target = $region20
        $region19: #{_lambda_.4} parent=11 // pred_region
          %s397 = ssub.s32 48, 48
          %398 = vsyncadd [#allocation9], %s397
          %s400 = sshll.u32 [#allocation8], 4
          %s401 = int_to_ptr.vmem [resolvable:$true] %s400
          %403 = dma.hbm_to_vmem [thread:$0]  %s3, 48, %s401, [#allocation9]
        $region20: #{_lambda_.4} parent=11 // pred_fallthru
          _
        // Predicated region
        $region21: #{_lambda_.4} parent=11 // pred_check
          %p404 = pneg %p150
        $region22: #{_lambda_.4} parent=11 // pred_check_branch
          %406 = sbr.rel (%p404) target = $region24
        $region23: #{_lambda_.4} parent=11 // pred_region
          %s408 = ssub.s32 1024, 1024
          %409 = vsyncadd [#allocation9], %s408
          %s410 = sshll.u32 [#allocation10], 4
          %s411 = int_to_ptr.vmem [resolvable:$true] %s410
          %416 = dma.hbm_to_vmem [thread:$0]  %s4, 1024, %s411, [#allocation9], 64, 64, 4
        $region24: #{_lambda_.4} parent=11 // pred_fallthru
          _
        // Predicated region
        $region25: #{_lambda_.4} parent=11 // pred_check
          %p417 = pneg %p171
        $region26: #{_lambda_.4} parent=11 // pred_check_branch
          %419 = sbr.rel (%p417) target = $region28
        $region27: #{_lambda_.4} parent=11 // pred_region
          %s421 = ssub.s32 16, 16
          %422 = vsyncadd [#allocation12], %s421
          %s424 = sshll.u32 [#allocation11], 4
          %s425 = int_to_ptr.vmem [resolvable:$true] %s424
          %427 = dma.hbm_to_vmem [thread:$0]  %s5, 16, %s425, [#allocation12]
        $region28: #{_lambda_.4} parent=11 // pred_fallthru
          _
        // Predicated region
        $region29: #{_lambda_.4} parent=11 // pred_check
          %p428 = pneg %p192
        $region30: #{_lambda_.4} parent=11 // pred_check_branch
          %430 = sbr.rel (%p428) target = $region32
        $region31: #{_lambda_.4} parent=11 // pred_region
          %s432 = ssub.s32 16, 16
          %433 = vsyncadd [#allocation12], %s432
          %s435 = sshll.u32 [#allocation13], 4
          %s436 = int_to_ptr.vmem [resolvable:$true] %s435
          %438 = dma.hbm_to_vmem [thread:$0]  %s6, 16, %s436, [#allocation12]
        $region32: #{_lambda_.4} parent=11 // pred_fallthru
          _
        // Predicated region
        $region33: #{_lambda_.4} parent=11 // pred_check
          %p439 = pneg %p213
        $region34: #{_lambda_.4} parent=11 // pred_check_branch
          %441 = sbr.rel (%p439) target = $region36
        $region35: #{_lambda_.4} parent=11 // pred_region
          %s443 = ssub.s32 16, 16
          %444 = vsyncadd [#allocation15], %s443
          %s446 = sshll.u32 [#allocation14], 4
          %s447 = int_to_ptr.vmem [resolvable:$true] %s446
          %449 = dma.hbm_to_vmem [thread:$0]  %s7, 16, %s447, [#allocation15]
        $region36: #{_lambda_.4} parent=11 // pred_fallthru
          _
        // Predicated region
        $region37: #{_lambda_.4} parent=11 // pred_check
          %p450 = pneg %p234
        $region38: #{_lambda_.4} parent=11 // pred_check_branch
          %452 = sbr.rel (%p450) target = $region40
        $region39: #{_lambda_.4} parent=11 // pred_region
          %s454 = ssub.s32 2048, 2048
          %455 = vsyncadd [#allocation15], %s454
          %s456 = sshll.u32 [#allocation16], 4
          %s457 = int_to_ptr.vmem [resolvable:$true] %s456
          %462 = dma.hbm_to_vmem [thread:$0]  %s8, 2048, %s457, [#allocation15], 128, 128, 8
        $region40: #{_lambda_.4} parent=11 // pred_fallthru
          _
        // Predicated region
        $region41: #{_lambda_.4} parent=11 // pred_check
          %p463 = pneg %p255
        $region42: #{_lambda_.4} parent=11 // pred_check_branch
          %465 = sbr.rel (%p463) target = $region44
        $region43: #{_lambda_.4} parent=11 // pred_region
          %s467 = ssub.s32 32, 32
          %468 = vsyncadd [#allocation18], %s467
          %s470 = sshll.u32 [#allocation17], 4
          %s471 = int_to_ptr.vmem [resolvable:$true] %s470
          %473 = dma.hbm_to_vmem [thread:$0]  %s9, 32, %s471, [#allocation18]
        $region44: #{_lambda_.4} parent=11 // pred_fallthru
          _
        // Predicated region
        $region45: #{_lambda_.4} parent=11 // pred_check
          %p474 = pneg %p276
        $region46: #{_lambda_.4} parent=11 // pred_check_branch
          %476 = sbr.rel (%p474) target = $region48
        $region47: #{_lambda_.4} parent=11 // pred_region
          %s478 = ssub.s32 2048, 2048
          %479 = vsyncadd [#allocation18], %s478
          %s480 = sshll.u32 [#allocation19], 4
          %s481 = int_to_ptr.vmem [resolvable:$true] %s480
          %486 = dma.hbm_to_vmem [thread:$0]  %s10, 2048, %s481, [#allocation18], 64, 64, 4
        $region48: #{_lambda_.4} parent=11 // pred_fallthru
          _
        // Predicated region
        $region49: #{_lambda_.4} parent=11 // pred_check
          %p487 = pneg %p297
        $region50: #{_lambda_.4} parent=11 // pred_check_branch
          %489 = sbr.rel (%p487) target = $region52
        $region51: #{_lambda_.4} parent=11 // pred_region
          %s491 = ssub.s32 16, 16
          %492 = vsyncadd [#allocation21], %s491
          %s494 = sshll.u32 [#allocation20], 4
          %s495 = int_to_ptr.vmem [resolvable:$true] %s494
          %497 = dma.hbm_to_vmem [thread:$0]  %s11, 16, %s495, [#allocation21]
        $region52: #{_lambda_.4} parent=11 // pred_fallthru
          _
        // Predicated region
        $region53: #{_lambda_.4} parent=11 // pred_check
          %p498 = pneg %p318
        $region54: #{_lambda_.4} parent=11 // pred_check_branch
          %500 = sbr.rel (%p498) target = $region56
        $region55: #{_lambda_.4} parent=11 // pred_region
          %s502 = ssub.s32 16, 16
          %503 = vsyncadd [#allocation21], %s502
          %s505 = sshll.u32 [#allocation22], 4
          %s506 = int_to_ptr.vmem [resolvable:$true] %s505
          %508 = dma.hbm_to_vmem [thread:$0]  %s12, 16, %s506, [#allocation21]
        $region56: #{_lambda_.4} parent=11 // pred_fallthru
          _
        // Predicated region
        $region57: #{_lambda_.4} parent=11 // pred_check
          %p509 = pneg %p339
        $region58: #{_lambda_.4} parent=11 // pred_check_branch
          %511 = sbr.rel (%p509) target = $region60
        $region59: #{_lambda_.4} parent=11 // pred_region
          %s513 = ssub.s32 16, 16
          %514 = vsyncadd [#allocation24], %s513
          %s516 = sshll.u32 [#allocation23], 4
          %s517 = int_to_ptr.vmem [resolvable:$true] %s516
          %519 = dma.hbm_to_vmem [thread:$0]  %s13, 16, %s517, [#allocation24]
        $region60: #{_lambda_.4} parent=11 // pred_fallthru
          _
      $region12: #{_lambda_.4} parent=5 // pred_fallthru
        _
      %p520 = scmp.lt.s32.totalorder %s35, 2
      // Predicated region
      $region61: #{_lambda_.4} parent=5 // pred_check
        %p521 = pneg %p520
      $region62: #{_lambda_.4} parent=5 // pred_check_branch
        %523 = sbr.rel (%p521) target = $region64
      $region63: #{_lambda_.4} parent=5 // pred_region
        // Predicated region
        $region65: #{_lambda_.4} parent=63 // pred_check
          %p524 = pneg %p55
        $region66: #{_lambda_.4} parent=63 // pred_check_branch
          %526 = sbr.rel (%p524) target = $region68
        $region67: #{_lambda_.4} parent=63 // pred_region
          %s527 = sand.u32 %s45, 1
          %s528 = scalar_lea.sflag [#allocation3], %s527
          %s529 = sand.u32 %s45, 1
          %s530 = smul.addr %s529, 16
          %s531 = scalar_lea.vmem [#allocation2], %s530
          %s533 = ssub.s32 256, 256
          %534 = vsyncadd %s528, %s533
          %s535 = smul.addr %s35, 2
          %s536 = smul.addr %s535, 128
          %s537 = scalar_lea.hbm %s0, %s536
          %s538 = sshll.u32 %s531, 4
          %s539 = int_to_ptr.vmem [resolvable:$true] %s538
          %544 = dma.hbm_to_vmem [thread:$0]  %s537, 256, %s539, %s528, 128, 128, 8
        $region68: #{_lambda_.4} parent=63 // pred_fallthru
          _
        // Predicated region
        $region69: #{_lambda_.4} parent=63 // pred_check
          %p545 = pneg %p81
        $region70: #{_lambda_.4} parent=63 // pred_check_branch
          %547 = sbr.rel (%p545) target = $region72
        $region71: #{_lambda_.4} parent=63 // pred_region
          %s548 = sand.u32 %s35, 1
          %s549 = scalar_lea.sflag [#allocation6], %s548
          %s550 = sand.u32 %s71, 1
          %s551 = scalar_lea.vmem [#allocation5], %s550
          %s553 = ssub.s32 16, 16
          %554 = vsyncadd %s549, %s553
          %s555 = smul.addr %s35, 16
          %s556 = scalar_lea.hbm %s1, %s555
          %s558 = sshll.u32 %s551, 4
          %s559 = int_to_ptr.vmem [resolvable:$true] %s558
          %561 = dma.hbm_to_vmem [thread:$0]  %s556, 16, %s559, %s549
        $region72: #{_lambda_.4} parent=63 // pred_fallthru
          _
      $region64: #{_lambda_.4} parent=5 // pred_fallthru
        _
      %p562 = scmp.le.s32.totalorder 1, %s35
      %p563 = scmp.lt.s32.totalorder %s35, 3
      %p564 = pnand %p562, %p563
      %p565 = pneg %p564
      // Predicated region
      $region73: #{_lambda_.4} parent=5 // pred_check
        _
      $region74: #{_lambda_.4} parent=5 // pred_check_branch
        %567 = sbr.rel (%p564) target = $region76
      $region75: #{_lambda_.4} parent=5 // pred_region
        %s568 = ssub.s32 %s35, 1
        %s569 = sand.u32 %s48, 1
        %s570 = scalar_lea.sflag [#allocation3], %s569
        %s571 = sand.u32 %s48, 1
        %s572 = smul.addr %s571, 16
        %s573 = scalar_lea.vmem [#allocation2], %s572
        // Predicated region
        $region77: #{_lambda_.4} parent=75 // pred_check
          %p574 = pneg %p61
        $region78: #{_lambda_.4} parent=75 // pred_check_branch
          %576 = sbr.rel (%p574) target = $region80
        $region79: #{_lambda_.4} parent=75 // pred_region
          %577 = dma.done %s570, 256
        $region80: #{_lambda_.4} parent=75 // pred_fallthru
          _
        %s578 = sand.u32 %s40, 1
        %s579 = scalar_lea.sflag [#allocation6], %s578
        %s580 = sand.u32 %s74, 1
        %s581 = scalar_lea.vmem [#allocation5], %s580
        // Predicated region
        $region81: #{_lambda_.4} parent=75 // pred_check
          %p582 = pneg %p87
        $region82: #{_lambda_.4} parent=75 // pred_check_branch
          %584 = sbr.rel (%p582) target = $region84
        $region83: #{_lambda_.4} parent=75 // pred_region
          %585 = dma.done %s579, 16
        $region84: #{_lambda_.4} parent=75 // pred_fallthru
          _
        // Predicated region
        $region85: #{_lambda_.4} parent=75 // pred_check
          %p586 = pneg %p108
        $region86: #{_lambda_.4} parent=75 // pred_check_branch
          %588 = sbr.rel (%p586) target = $region88
        $region87: #{_lambda_.4} parent=75 // pred_region
          %589 = dma.done [#allocation6], 3072
        $region88: #{_lambda_.4} parent=75 // pred_fallthru
          _
        // Predicated region
        $region89: #{_lambda_.4} parent=75 // pred_check
          %p590 = pneg %p129
        $region90: #{_lambda_.4} parent=75 // pred_check_branch
          %592 = sbr.rel (%p590) target = $region92
        $region91: #{_lambda_.4} parent=75 // pred_region
          %593 = dma.done [#allocation9], 48
        $region92: #{_lambda_.4} parent=75 // pred_fallthru
          _
        // Predicated region
        $region93: #{_lambda_.4} parent=75 // pred_check
          %p594 = pneg %p150
        $region94: #{_lambda_.4} parent=75 // pred_check_branch
          %596 = sbr.rel (%p594) target = $region96
        $region95: #{_lambda_.4} parent=75 // pred_region
          %597 = dma.done [#allocation9], 1024
        $region96: #{_lambda_.4} parent=75 // pred_fallthru
          _
        // Predicated region
        $region97: #{_lambda_.4} parent=75 // pred_check
          %p598 = pneg %p171
        $region98: #{_lambda_.4} parent=75 // pred_check_branch
          %600 = sbr.rel (%p598) target = $region100
        $region99: #{_lambda_.4} parent=75 // pred_region
          %601 = dma.done [#allocation12], 16
        $region100: #{_lambda_.4} parent=75 // pred_fallthru
          _
        // Predicated region
        $region101: #{_lambda_.4} parent=75 // pred_check
          %p602 = pneg %p192
        $region102: #{_lambda_.4} parent=75 // pred_check_branch
          %604 = sbr.rel (%p602) target = $region104
        $region103: #{_lambda_.4} parent=75 // pred_region
          %605 = dma.done [#allocation12], 16
        $region104: #{_lambda_.4} parent=75 // pred_fallthru
          _
        // Predicated region
        $region105: #{_lambda_.4} parent=75 // pred_check
          %p606 = pneg %p213
        $region106: #{_lambda_.4} parent=75 // pred_check_branch
          %608 = sbr.rel (%p606) target = $region108
        $region107: #{_lambda_.4} parent=75 // pred_region
          %609 = dma.done [#allocation15], 16
        $region108: #{_lambda_.4} parent=75 // pred_fallthru
          _
        // Predicated region
        $region109: #{_lambda_.4} parent=75 // pred_check
          %p610 = pneg %p234
        $region110: #{_lambda_.4} parent=75 // pred_check_branch
          %612 = sbr.rel (%p610) target = $region112
        $region111: #{_lambda_.4} parent=75 // pred_region
          %613 = dma.done [#allocation15], 2048
        $region112: #{_lambda_.4} parent=75 // pred_fallthru
          _
        // Predicated region
        $region113: #{_lambda_.4} parent=75 // pred_check
          %p614 = pneg %p255
        $region114: #{_lambda_.4} parent=75 // pred_check_branch
          %616 = sbr.rel (%p614) target = $region116
        $region115: #{_lambda_.4} parent=75 // pred_region
          %617 = dma.done [#allocation18], 32
        $region116: #{_lambda_.4} parent=75 // pred_fallthru
          _
        // Predicated region
        $region117: #{_lambda_.4} parent=75 // pred_check
          %p618 = pneg %p276
        $region118: #{_lambda_.4} parent=75 // pred_check_branch
          %620 = sbr.rel (%p618) target = $region120
        $region119: #{_lambda_.4} parent=75 // pred_region
          %621 = dma.done [#allocation18], 2048
        $region120: #{_lambda_.4} parent=75 // pred_fallthru
          _
        // Predicated region
        $region121: #{_lambda_.4} parent=75 // pred_check
          %p622 = pneg %p297
        $region122: #{_lambda_.4} parent=75 // pred_check_branch
          %624 = sbr.rel (%p622) target = $region124
        $region123: #{_lambda_.4} parent=75 // pred_region
          %625 = dma.done [#allocation21], 16
        $region124: #{_lambda_.4} parent=75 // pred_fallthru
          _
        // Predicated region
        $region125: #{_lambda_.4} parent=75 // pred_check
          %p626 = pneg %p318
        $region126: #{_lambda_.4} parent=75 // pred_check_branch
          %628 = sbr.rel (%p626) target = $region128
        $region127: #{_lambda_.4} parent=75 // pred_region
          %629 = dma.done [#allocation21], 16
        $region128: #{_lambda_.4} parent=75 // pred_fallthru
          _
        // Predicated region
        $region129: #{_lambda_.4} parent=75 // pred_check
          %p630 = pneg %p339
        $region130: #{_lambda_.4} parent=75 // pred_check_branch
          %632 = sbr.rel (%p630) target = $region132
        $region131: #{_lambda_.4} parent=75 // pred_region
          %633 = dma.done [#allocation24], 16
        $region132: #{_lambda_.4} parent=75 // pred_fallthru
          _
        %s634 = sand.u32 %s48, 1
        %s635 = scalar_lea.sflag [#allocation3], %s634
        %s636 = sand.u32 %s48, 1
        %s637 = smul.addr %s636, 16
        %s638 = scalar_lea.vmem [#allocation2], %s637
        %p639 = pneg %p61
        %p640 = pneg %p58
        %s641 = sand.u32 %s40, 1
        %s642 = scalar_lea.sflag [#allocation6], %s641
        %s643 = sand.u32 %s74, 1
        %s644 = scalar_lea.vmem [#allocation5], %s643
        %p645 = pneg %p87
        %p646 = pneg %p84
        %p647 = pneg %p108
        %p648 = pneg %p105
        %p649 = pneg %p129
        %p650 = pneg %p126
        %p651 = pneg %p150
        %p652 = pneg %p147
        %p653 = pneg %p171
        %p654 = pneg %p168
        %p655 = pneg %p192
        %p656 = pneg %p189
        %p657 = pneg %p213
        %p658 = pneg %p210
        %p659 = pneg %p234
        %p660 = pneg %p231
        %p661 = pneg %p255
        %p662 = pneg %p252
        %p663 = pneg %p276
        %p664 = pneg %p273
        %p665 = pneg %p297
        %p666 = pneg %p294
        %p667 = pneg %p318
        %p668 = pneg %p315
        %p669 = pneg %p339
        %p670 = pneg %p336
        %p671 = pneg %p365
        %p672 = pneg %p362
        %s673 = sand.u32 %s352, 1
        %s674 = scalar_lea.sflag [#allocation4], %s673
        %s675 = sand.u32 %s352, 1
        %s676 = smul.addr %s675, 16
        %s677 = scalar_lea.vmem [#allocation25], %s676
        %v679 = vld [vmem:[%s573] sm:$0xff]
        %v680 = vld [vmem:[%s573 + $0x8] sm:$0xff]
        %v681 = vpack.c.bf16 %v680, %v679
        %v682 = vld [vmem:[#allocation7] sm:$0xff]
        %v683 = vld [vmem:[#allocation7 + $0x8] sm:$0xf]
        %v684 = vld [vmem:[#allocation7 + $0xc] sm:$0xff]
        %v685 = vld [vmem:[#allocation7 + $0x14] sm:$0xf]
        %v686 = vld [vmem:[#allocation7 + $0x18] sm:$0xff]
        %v687 = vld [vmem:[#allocation7 + $0x20] sm:$0xf]
        %v688 = vld [vmem:[#allocation7 + $0x24] sm:$0xff]
        %v689 = vld [vmem:[#allocation7 + $0x2c] sm:$0xf]
        %v690 = vld [vmem:[#allocation7 + $0x30] sm:$0xff]
        %v691 = vld [vmem:[#allocation7 + $0x38] sm:$0xf]
        %v692 = vld [vmem:[#allocation7 + $0x3c] sm:$0xff]
        %v693 = vld [vmem:[#allocation7 + $0x44] sm:$0xf]
        %v694 = vld [vmem:[#allocation7 + $0x48] sm:$0xff]
        %v695 = vld [vmem:[#allocation7 + $0x50] sm:$0xf]
        %v696 = vld [vmem:[#allocation7 + $0x54] sm:$0xff]
        %v697 = vld [vmem:[#allocation7 + $0x5c] sm:$0xf]
        %v698 = vld [vmem:[#allocation7 + $0x60] sm:$0xff]
        %v699 = vld [vmem:[#allocation7 + $0x68] sm:$0xf]
        %v700 = vld [vmem:[#allocation7 + $0x6c] sm:$0xff]
        %v701 = vld [vmem:[#allocation7 + $0x74] sm:$0xf]
        %v702 = vld [vmem:[#allocation7 + $0x78] sm:$0xff]
        %v703 = vld [vmem:[#allocation7 + $0x80] sm:$0xf]
        %v704 = vld [vmem:[#allocation7 + $0x84] sm:$0xff]
        %v705 = vld [vmem:[#allocation7 + $0x8c] sm:$0xf]
        %v706 = vld [vmem:[#allocation7 + $0x90] sm:$0xff]
        %v707 = vld [vmem:[#allocation7 + $0x98] sm:$0xf]
        %v708 = vld [vmem:[#allocation7 + $0x9c] sm:$0xff]
        %v709 = vld [vmem:[#allocation7 + $0xa4] sm:$0xf]
        %v710 = vld [vmem:[#allocation7 + $0xa8] sm:$0xff]
        %v711 = vld [vmem:[#allocation7 + $0xb0] sm:$0xf]
        %v712 = vld [vmem:[#allocation7 + $0xb4] sm:$0xff]
        %v713 = vld [vmem:[#allocation7 + $0xbc] sm:$0xf]
        %v714 = vld [vmem:[#allocation8] sm:$0x7]
        %v716 = vlaneseq
        %v717 = vshrl.u32 %v716, 7
        %v718 = vsub.s32 0, %v717
        %v719 = vrot.slane %v714, %v718
        %v720 = vlaneseq
        %v721 = vshrl.u32 %v720, 7
        %v722 = vsub.s32 1, %v721
        %v723 = vrot.slane %v714, %v722
        %v724 = vlaneseq
        %v725 = vshrl.u32 %v724, 7
        %v726 = vsub.s32 2, %v725
        %v727 = vrot.slane %v714, %v726
        %v763 = vunpack.c.l.b16 %v682
        %v764 = vunpack.c.h.b16 %v682
        %v765 = vunpack.c.l.b16 %v683
        %v766 = vunpack.c.l.b16 %v684
        %v767 = vunpack.c.h.b16 %v684
        %v768 = vunpack.c.l.b16 %v685
        %v769 = vunpack.c.l.b16 %v686
        %v770 = vunpack.c.h.b16 %v686
        %v771 = vunpack.c.l.b16 %v687
        %v772 = vunpack.c.l.b16 %v688
        %v773 = vunpack.c.h.b16 %v688
        %v774 = vunpack.c.l.b16 %v689
        %v775 = vunpack.c.l.b16 %v690
        %v776 = vunpack.c.h.b16 %v690
        %v777 = vunpack.c.l.b16 %v691
        %v778 = vunpack.c.l.b16 %v692
        %v779 = vunpack.c.h.b16 %v692
        %v780 = vunpack.c.l.b16 %v693
        %v781 = vunpack.c.l.b16 %v694
        %v782 = vunpack.c.h.b16 %v694
        %v783 = vunpack.c.l.b16 %v695
        %v784 = vunpack.c.l.b16 %v696
        %v785 = vunpack.c.h.b16 %v696
        %v786 = vunpack.c.l.b16 %v697
        %v787 = vunpack.c.l.b16 %v698
        %v788 = vunpack.c.h.b16 %v698
        %v789 = vunpack.c.l.b16 %v699
        %v790 = vunpack.c.l.b16 %v700
        %v791 = vunpack.c.h.b16 %v700
        %v792 = vunpack.c.l.b16 %v701
        %v793 = vunpack.c.l.b16 %v702
        %v794 = vunpack.c.h.b16 %v702
        %v795 = vunpack.c.l.b16 %v703
        %v796 = vunpack.c.l.b16 %v704
        %v797 = vunpack.c.h.b16 %v704
        %v798 = vunpack.c.l.b16 %v705
        %v799 = vunpack.c.l.b16 %v706
        %v800 = vunpack.c.h.b16 %v706
        %v801 = vunpack.c.l.b16 %v707
        %v802 = vunpack.c.l.b16 %v708
        %v803 = vunpack.c.h.b16 %v708
        %v804 = vunpack.c.l.b16 %v709
        %v805 = vunpack.c.l.b16 %v710
        %v806 = vunpack.c.h.b16 %v710
        %v807 = vunpack.c.l.b16 %v711
        %v808 = vunpack.c.l.b16 %v712
        %v809 = vunpack.c.h.b16 %v712
        %v810 = vunpack.c.l.b16 %v713
        %v811 = vpack.c.b16 %v766, %v763
        %v812 = vpack.c.b16 %v767, %v764
        %v813 = vpack.c.b16 %v768, %v765
        %v814 = vpack.c.b16 %v772, %v769
        %v815 = vpack.c.b16 %v773, %v770
        %v816 = vpack.c.b16 %v774, %v771
        %v817 = vpack.c.b16 %v778, %v775
        %v818 = vpack.c.b16 %v779, %v776
        %v819 = vpack.c.b16 %v780, %v777
        %v820 = vpack.c.b16 %v784, %v781
        %v821 = vpack.c.b16 %v785, %v782
        %v822 = vpack.c.b16 %v786, %v783
        %v823 = vpack.c.b16 %v790, %v787
        %v824 = vpack.c.b16 %v791, %v788
        %v825 = vpack.c.b16 %v792, %v789
        %v826 = vpack.c.b16 %v796, %v793
        %v827 = vpack.c.b16 %v797, %v794
        %v828 = vpack.c.b16 %v798, %v795
        %v829 = vpack.c.b16 %v802, %v799
        %v830 = vpack.c.b16 %v803, %v800
        %v831 = vpack.c.b16 %v804, %v801
        %v832 = vpack.c.b16 %v808, %v805
        %v833 = vpack.c.b16 %v809, %v806
        %v834 = vpack.c.b16 %v810, %v807
        %859 = vmatprep.subr.bf16.mxu0 %v812
        %860 = vmatpush1.bf16.msra.mxu0 %v811
        %861 = vmatprep.subr.bf16.mxu0 %v815
        %862 = vmatpush1.bf16.msra.mxu0 %v814
        %863 = vmatprep.subr.bf16.mxu0 %v818
        %864 = vmatpush1.bf16.msra.mxu0 %v817
        %865 = vmatprep.subr.bf16.mxu0 %v821
        %866 = vmatpush1.bf16.msra.mxu0 %v820
        %867 = vmatprep.subr.bf16.mxu0 %v824
        %868 = vmatpush1.bf16.msra.mxu0 %v823
        %869 = vmatprep.subr.bf16.mxu0 %v827
        %870 = vmatpush1.bf16.msra.mxu0 %v826
        %871 = vmatprep.subr.bf16.mxu0 %v830
        %872 = vmatpush1.bf16.msra.mxu0 %v829
        %873 = vmatprep.subr.bf16.mxu0 %v833
        %874 = vmatpush1.bf16.msra.mxu0 %v832
        %875 = vmatprep.subr.bf16.mxu0 0
        %876 = vmatpush1.bf16.msra.mxu0 0
        %877 = vmatprep.subr.bf16.mxu0 0
        %878 = vmatpush1.bf16.msra.mxu0 0
        %879 = vmatprep.subr.bf16.mxu0 0
        %880 = vmatpush1.bf16.msra.mxu0 0
        %881 = vmatprep.subr.bf16.mxu0 0
        %882 = vmatpush1.bf16.msra.mxu0 0
        %883 = vmatprep.subr.bf16.mxu0 0
        %884 = vmatpush1.bf16.msra.mxu0 0
        %885 = vmatprep.subr.bf16.mxu0 0
        %886 = vmatpush1.bf16.msra.mxu0 0
        %887 = vmatprep.subr.bf16.mxu0 0
        %888 = vmatpush1.bf16.msra.mxu0 0
        %889 = vmatprep.subr.bf16.mxu0 0
        %890 = vmatpush1.bf16.msra.mxu0 0
        %891 = vmatprep.mubr.bf16.mxu0 0
        %892 = vmatmul.mubr.bf16.gmra.mrb[0].mxu0 %v681
        %v893 = vpop.f32.mrb[0].mxu0
        %v894 = vadd.f32 %v719, %v893
        %v895 = vpop.f32.mrb[0].mxu0
        %v896 = vadd.f32 %v723, %v895
        %v897 = vpop.f32.mrb[0].mxu0
        %v898 = vadd.f32 %v719, %v897
        %v899 = vpop.f32.mrb[0].mxu0
        %v900 = vadd.f32 %v723, %v899
        %901 = vdwg.mxu0
        %902 = vmatprep.subr.bf16.mxu0 0
        %903 = vmatpush1.bf16.msra.mxu0 %v813
        %904 = vmatprep.subr.bf16.mxu0 0
        %905 = vmatpush1.bf16.msra.mxu0 %v816
        %906 = vmatprep.subr.bf16.mxu0 0
        %907 = vmatpush1.bf16.msra.mxu0 %v819
        %908 = vmatprep.subr.bf16.mxu0 0
        %909 = vmatpush1.bf16.msra.mxu0 %v822
        %910 = vmatprep.subr.bf16.mxu0 0
        %911 = vmatpush1.bf16.msra.mxu0 %v825
        %912 = vmatprep.subr.bf16.mxu0 0
        %913 = vmatpush1.bf16.msra.mxu0 %v828
        %914 = vmatprep.subr.bf16.mxu0 0
        %915 = vmatpush1.bf16.msra.mxu0 %v831
        %916 = vmatprep.subr.bf16.mxu0 0
        %917 = vmatpush1.bf16.msra.mxu0 %v834
        %918 = vmatprep.subr.bf16.mxu0 0
        %919 = vmatpush1.bf16.msra.mxu0 0
        %920 = vmatprep.subr.bf16.mxu0 0
        %921 = vmatpush1.bf16.msra.mxu0 0
        %922 = vmatprep.subr.bf16.mxu0 0
        %923 = vmatpush1.bf16.msra.mxu0 0
        %924 = vmatprep.subr.bf16.mxu0 0
        %925 = vmatpush1.bf16.msra.mxu0 0
        %926 = vmatprep.subr.bf16.mxu0 0
        %927 = vmatpush1.bf16.msra.mxu0 0
        %928 = vmatprep.subr.bf16.mxu0 0
        %929 = vmatpush1.bf16.msra.mxu0 0
        %930 = vmatprep.subr.bf16.mxu0 0
        %931 = vmatpush1.bf16.msra.mxu0 0
        %932 = vmatprep.subr.bf16.mxu0 0
        %933 = vmatpush1.bf16.msra.mxu0 0
        %934 = vmatprep.mubr.bf16.mxu0 0
        %935 = vmatmul.mubr.bf16.gmra.mrb[0].mxu0 %v681
        %v936 = vpop.f32.mrb[0].mxu0
        %v937 = vadd.f32 %v727, %v936
        %v938 = vpop.f32.mrb[0].mxu0
        %v939 = vpop.f32.mrb[0].mxu0
        %v940 = vadd.f32 %v727, %v939
        %v941 = vpop.f32.mrb[0].mxu0
        %942 = vdwg.mxu0
        %v943 = vld [vmem:[%s581] sm:$0x1]
        %vm944 = vcmp.gt.f32.partialorder %v943, 0.0
        %v945 = vsel %vm944, 0.0, -1e+09
        %v946 = vpack.c.bf16 %v898, %v894
        %v947 = vpack.c.bf16 %v900, %v896
        %v948 = vpack.c.bf16 %v940, %v937
        %vm949 = vcmask 261120
        %v951 = vsel %vm949, %v946, 0
        %v954 = vsel %vm949, %v947, 0
        %956 = vmatprep.subr.bf16.mxu0 0
        %957 = vmatpush1.bf16.xpose.msra.mxu0 %v954
        %958 = vmatprep.subr.bf16.mxu0 0
        %959 = vmatpush1.bf16.xpose.msra.mxu0 0
        %960 = vmatprep.subr.bf16.mxu0 0
        %961 = vmatpush1.bf16.xpose.msra.mxu0 0
        %962 = vmatprep.subr.bf16.mxu0 0
        %963 = vmatpush1.bf16.xpose.msra.mxu0 0
        %964 = vmatprep.subr.bf16.mxu0 0
        %965 = vmatpush1.bf16.xpose.msra.mxu0 0
        %966 = vmatprep.subr.bf16.mxu0 0
        %967 = vmatpush1.bf16.xpose.msra.mxu0 0
        %968 = vmatprep.subr.bf16.mxu0 0
        %969 = vmatpush1.bf16.xpose.msra.mxu0 0
        %970 = vmatprep.subr.bf16.mxu0 0
        %971 = vmatpush1.bf16.xpose.msra.mxu0 0
        %972 = vmatprep.subr.bf16.mxu0 0
        %973 = vmatpush1.bf16.xpose.msra.mxu0 0
        %974 = vmatprep.subr.bf16.mxu0 0
        %975 = vmatpush1.bf16.xpose.msra.mxu0 0
        %976 = vmatprep.subr.bf16.mxu0 0
        %977 = vmatpush1.bf16.xpose.msra.mxu0 0
        %978 = vmatprep.subr.bf16.mxu0 0
        %979 = vmatpush1.bf16.xpose.msra.mxu0 0
        %980 = vmatprep.subr.bf16.mxu0 0
        %981 = vmatpush1.bf16.xpose.msra.mxu0 0
        %982 = vmatprep.subr.bf16.mxu0 0
        %983 = vmatpush1.bf16.xpose.msra.mxu0 0
        %984 = vmatprep.subr.bf16.mxu0 0
        %985 = vmatpush1.bf16.xpose.msra.mxu0 0
        %986 = vmatprep.subr.bf16.mxu0 0
        %987 = vmatpush1.bf16.xpose.msra.mxu0 0
        %988 = vmatprep.mubr.bf16.mxu0 0
        %989 = vmatmul.mubr.bf16.gmra.mrb[0].mxu0 %v951
        %v990 = vpop.f32.mrb[0].mxu0
        %v991 = vadd.f32 0.0, %v990
        %v992 = vpop.f32.mrb[0].mxu0
        %v993 = vpop.f32.mrb[0].mxu0
        %v994 = vadd.f32 0.0, %v993
        %v995 = vpop.f32.mrb[0].mxu0
        %996 = vdwg.mxu0
        %v997 = vmul.f32 %v991, 0.17677669
        %v998 = vmul.f32 %v994, 0.17677669
        %v1000 = vlaneseq
        %v1001 = vshrl.u32 %v1000, 7
        %v1002 = vsub.s32 0, %v1001
        %v1003 = vrot.slane %v945, %v1002
        %v1005 = vadd.f32 %v997, %v1003
        %v1006 = vadd.f32 %v998, %v1003
        %vm1007 = vcmask 130048
        %v1008 = vsel %vm1007, %v1005, -inf
        %1009 = vmax.xlane.f32.xlu0 %v1008
        %v1010 = vpop.xlane.xlu0 %1009
        %v1011 = vsel %vm1007, %v1006, -inf
        %1012 = vmax.xlane.f32.xlu0 %v1011
        %v1013 = vpop.xlane.xlu0 %1012
        %v1014 = vsub.f32 %v1005, %v1010
        %v1015 = vsub.f32 %v1006, %v1013
        %v1016 = vmul.f32 %v1014, 1.442695
        %v1017 = vpow.pop %v1016
        %v1018 = vmul.f32 %v1015, 1.442695
        %v1019 = vpow.pop %v1018
        %v1020 = vsel %vm1007, %v1017, 0.0
        %1021 = vadd.xlane.f32.xlu0 %v1020
        %v1022 = vpop.xlane.xlu0 %1021
        %v1023 = vsel %vm1007, %v1019, 0.0
        %1024 = vadd.xlane.f32.xlu0 %v1023
        %v1025 = vpop.xlane.xlu0 %1024
        %v1026 = vrcp.pop %v1022
        %v1027 = vrcp.pop %v1025
        %v1028 = vmul.f32 %v1017, %v1026
        %v1029 = vmul.f32 %v1019, %v1027
        %v1030 = vpack.c.bf16 %v1029, %v1028
        %v1032 = vsel %vm1007, %v1030, 0
        %1034 = vmatprep.subr.bf16.mxu0 0
        %1035 = vmatpush1.bf16.msra.mxu0 %v948
        %1036 = vmatprep.subr.bf16.mxu0 0
        %1037 = vmatpush1.bf16.msra.mxu0 0
        %1038 = vmatprep.subr.bf16.mxu0 0
        %1039 = vmatpush1.bf16.msra.mxu0 0
        %1040 = vmatprep.subr.bf16.mxu0 0
        %1041 = vmatpush1.bf16.msra.mxu0 0
        %1042 = vmatprep.subr.bf16.mxu0 0
        %1043 = vmatpush1.bf16.msra.mxu0 0
        %1044 = vmatprep.subr.bf16.mxu0 0
        %1045 = vmatpush1.bf16.msra.mxu0 0
        %1046 = vmatprep.subr.bf16.mxu0 0
        %1047 = vmatpush1.bf16.msra.mxu0 0
        %1048 = vmatprep.subr.bf16.mxu0 0
        %1049 = vmatpush1.bf16.msra.mxu0 0
        %1050 = vmatprep.subr.bf16.mxu0 0
        %1051 = vmatpush1.bf16.msra.mxu0 0
        %1052 = vmatprep.subr.bf16.mxu0 0
        %1053 = vmatpush1.bf16.msra.mxu0 0
        %1054 = vmatprep.subr.bf16.mxu0 0
        %1055 = vmatpush1.bf16.msra.mxu0 0
        %1056 = vmatprep.subr.bf16.mxu0 0
        %1057 = vmatpush1.bf16.msra.mxu0 0
        %1058 = vmatprep.subr.bf16.mxu0 0
        %1059 = vmatpush1.bf16.msra.mxu0 0
        %1060 = vmatprep.subr.bf16.mxu0 0
        %1061 = vmatpush1.bf16.msra.mxu0 0
        %1062 = vmatprep.subr.bf16.mxu0 0
        %1063 = vmatpush1.bf16.msra.mxu0 0
        %1064 = vmatprep.subr.bf16.mxu0 0
        %1065 = vmatpush1.bf16.msra.mxu0 0
        %1066 = vmatprep.mubr.bf16.mxu0 0
        %1067 = vmatmul.mubr.bf16.gmra.mrb[0].mxu0 %v1032
        %v1068 = vpop.f32.mrb[0].mxu0
        %v1069 = vadd.f32 0.0, %v1068
        %v1070 = vpop.f32.mrb[0].mxu0
        %v1071 = vpop.f32.mrb[0].mxu0
        %v1072 = vadd.f32 0.0, %v1071
        %v1073 = vpop.f32.mrb[0].mxu0
        %1074 = vdwg.mxu0
        %v1075 = vpack.c.bf16 %v1072, %v1069
        %v1076 = vld [vmem:[#allocation10] sm:$0xf]
        %v1077 = vld [vmem:[#allocation10 + $0x4] sm:$0xf]
        %v1078 = vld [vmem:[#allocation10 + $0x8] sm:$0xf]
        %v1079 = vld [vmem:[#allocation10 + $0xc] sm:$0xf]
        %1081 = vrot.lane.b32.xlu0 %v946, 96
        %v1082 = vpop.permute.xlu0 %1081
        %1084 = vrot.lane.b32.xlu0 %v947, 96
        %v1085 = vpop.permute.xlu0 %1084
        %v1087 = vsel %vm949, %v1082, 0
        %v1090 = vsel %vm949, %v1085, 0
        %1092 = vmatprep.subr.bf16.mxu0 0
        %1093 = vmatpush1.bf16.xpose.msra.mxu0 %v1090
        %1094 = vmatprep.subr.bf16.mxu0 0
        %1095 = vmatpush1.bf16.xpose.msra.mxu0 0
        %1096 = vmatprep.subr.bf16.mxu0 0
        %1097 = vmatpush1.bf16.xpose.msra.mxu0 0
        %1098 = vmatprep.subr.bf16.mxu0 0
        %1099 = vmatpush1.bf16.xpose.msra.mxu0 0
        %1100 = vmatprep.subr.bf16.mxu0 0
        %1101 = vmatpush1.bf16.xpose.msra.mxu0 0
        %1102 = vmatprep.subr.bf16.mxu0 0
        %1103 = vmatpush1.bf16.xpose.msra.mxu0 0
        %1104 = vmatprep.subr.bf16.mxu0 0
        %1105 = vmatpush1.bf16.xpose.msra.mxu0 0
        %1106 = vmatprep.subr.bf16.mxu0 0
        %1107 = vmatpush1.bf16.xpose.msra.mxu0 0
        %1108 = vmatprep.subr.bf16.mxu0 0
        %1109 = vmatpush1.bf16.xpose.msra.mxu0 0
        %1110 = vmatprep.subr.bf16.mxu0 0
        %1111 = vmatpush1.bf16.xpose.msra.mxu0 0
        %1112 = vmatprep.subr.bf16.mxu0 0
        %1113 = vmatpush1.bf16.xpose.msra.mxu0 0
        %1114 = vmatprep.subr.bf16.mxu0 0
        %1115 = vmatpush1.bf16.xpose.msra.mxu0 0
        %1116 = vmatprep.subr.bf16.mxu0 0
        %1117 = vmatpush1.bf16.xpose.msra.mxu0 0
        %1118 = vmatprep.subr.bf16.mxu0 0
        %1119 = vmatpush1.bf16.xpose.msra.mxu0 0
        %1120 = vmatprep.subr.bf16.mxu0 0
        %1121 = vmatpush1.bf16.xpose.msra.mxu0 0
        %1122 = vmatprep.subr.bf16.mxu0 0
        %1123 = vmatpush1.bf16.xpose.msra.mxu0 0
        %1124 = vmatprep.mubr.bf16.mxu0 0
        %1125 = vmatmul.mubr.bf16.gmra.mrb[0].mxu0 %v1087
        %v1126 = vpop.f32.mrb[0].mxu0
        %v1127 = vadd.f32 0.0, %v1126
        %v1128 = vpop.f32.mrb[0].mxu0
        %v1129 = vpop.f32.mrb[0].mxu0
        %v1130 = vadd.f32 0.0, %v1129
        %v1131 = vpop.f32.mrb[0].mxu0
        %1132 = vdwg.mxu0
        %v1133 = vmul.f32 %v1127, 0.17677669
        %v1134 = vmul.f32 %v1130, 0.17677669
        %v1135 = vadd.f32 %v1133, %v1003
        %v1136 = vadd.f32 %v1134, %v1003
        %v1137 = vsel %vm1007, %v1135, -inf
        %1138 = vmax.xlane.f32.xlu0 %v1137
        %v1139 = vpop.xlane.xlu0 %1138
        %v1140 = vsel %vm1007, %v1136, -inf
        %1141 = vmax.xlane.f32.xlu0 %v1140
        %v1142 = vpop.xlane.xlu0 %1141
        %v1143 = vsub.f32 %v1135, %v1139
        %v1144 = vsub.f32 %v1136, %v1142
        %v1145 = vmul.f32 %v1143, 1.442695
        %v1146 = vpow.pop %v1145
        %v1147 = vmul.f32 %v1144, 1.442695
        %v1148 = vpow.pop %v1147
        %v1149 = vsel %vm1007, %v1146, 0.0
        %1150 = vadd.xlane.f32.xlu0 %v1149
        %v1151 = vpop.xlane.xlu0 %1150
        %v1152 = vsel %vm1007, %v1148, 0.0
        %1153 = vadd.xlane.f32.xlu0 %v1152
        %v1154 = vpop.xlane.xlu0 %1153
        %v1155 = vrcp.pop %v1151
        %v1156 = vrcp.pop %v1154
        %v1157 = vmul.f32 %v1146, %v1155
        %v1158 = vmul.f32 %v1148, %v1156
        %v1159 = vpack.c.bf16 %v1158, %v1157
        %1161 = vrot.lane.b32.xlu0 %v948, 96
        %v1162 = vpop.permute.xlu0 %1161
        %v1165 = vsel %vm1007, %v1159, 0
        %1167 = vmatprep.subr.bf16.mxu0 0
        %1168 = vmatpush1.bf16.msra.mxu0 %v1162
        %1169 = vmatprep.subr.bf16.mxu0 0
        %1170 = vmatpush1.bf16.msra.mxu0 0
        %1171 = vmatprep.subr.bf16.mxu0 0
        %1172 = vmatpush1.bf16.msra.mxu0 0
        %1173 = vmatprep.subr.bf16.mxu0 0
        %1174 = vmatpush1.bf16.msra.mxu0 0
        %1175 = vmatprep.subr.bf16.mxu0 0
        %1176 = vmatpush1.bf16.msra.mxu0 0
        %1177 = vmatprep.subr.bf16.mxu0 0
        %1178 = vmatpush1.bf16.msra.mxu0 0
        %1179 = vmatprep.subr.bf16.mxu0 0
        %1180 = vmatpush1.bf16.msra.mxu0 0
        %1181 = vmatprep.subr.bf16.mxu0 0
        %1182 = vmatpush1.bf16.msra.mxu0 0
        %1183 = vmatprep.subr.bf16.mxu0 0
        %1184 = vmatpush1.bf16.msra.mxu0 0
        %1185 = vmatprep.subr.bf16.mxu0 0
        %1186 = vmatpush1.bf16.msra.mxu0 0
        %1187 = vmatprep.subr.bf16.mxu0 0
        %1188 = vmatpush1.bf16.msra.mxu0 0
        %1189 = vmatprep.subr.bf16.mxu0 0
        %1190 = vmatpush1.bf16.msra.mxu0 0
        %1191 = vmatprep.subr.bf16.mxu0 0
        %1192 = vmatpush1.bf16.msra.mxu0 0
        %1193 = vmatprep.subr.bf16.mxu0 0
        %1194 = vmatpush1.bf16.msra.mxu0 0
        %1195 = vmatprep.subr.bf16.mxu0 0
        %1196 = vmatpush1.bf16.msra.mxu0 0
        %1197 = vmatprep.subr.bf16.mxu0 0
        %1198 = vmatpush1.bf16.msra.mxu0 0
        %1199 = vmatprep.mubr.bf16.mxu0 0
        %1200 = vmatmul.mubr.bf16.gmra.mrb[0].mxu0 %v1165
        %v1201 = vpop.f32.mrb[0].mxu0
        %v1202 = vadd.f32 0.0, %v1201
        %v1203 = vpop.f32.mrb[0].mxu0
        %v1204 = vpop.f32.mrb[0].mxu0
        %v1205 = vadd.f32 0.0, %v1204
        %v1206 = vpop.f32.mrb[0].mxu0
        %1207 = vdwg.mxu0
        %v1208 = vpack.c.bf16 %v1205, %v1202
        %v1209 = vld [vmem:[#allocation10 + $0x10] sm:$0xf]
        %v1210 = vld [vmem:[#allocation10 + $0x14] sm:$0xf]
        %v1211 = vld [vmem:[#allocation10 + $0x18] sm:$0xf]
        %v1212 = vld [vmem:[#allocation10 + $0x1c] sm:$0xf]
        %v1217 = vunpack.c.l.b16 %v1209
        %v1218 = vunpack.c.l.b16 %v1210
        %v1219 = vunpack.c.l.b16 %v1211
        %v1220 = vunpack.c.l.b16 %v1212
        %v1221 = vpack.c.b16 %v1218, %v1217
        %v1222 = vpack.c.b16 %v1220, %v1219
        %v1226 = vsel %vm949, %v1208, 0
        %1228 = vmatprep.subr.bf16.mxu0 0
        %1229 = vmatpush1.bf16.msra.mxu0 %v1221
        %1230 = vmatprep.subr.bf16.mxu0 0
        %1231 = vmatpush1.bf16.msra.mxu0 %v1222
        %1232 = vmatprep.subr.bf16.mxu0 0
        %1233 = vmatpush1.bf16.msra.mxu0 0
        %1234 = vmatprep.subr.bf16.mxu0 0
        %1235 = vmatpush1.bf16.msra.mxu0 0
        %1236 = vmatprep.subr.bf16.mxu0 0
        %1237 = vmatpush1.bf16.msra.mxu0 0
        %1238 = vmatprep.subr.bf16.mxu0 0
        %1239 = vmatpush1.bf16.msra.mxu0 0
        %1240 = vmatprep.subr.bf16.mxu0 0
        %1241 = vmatpush1.bf16.msra.mxu0 0
        %1242 = vmatprep.subr.bf16.mxu0 0
        %1243 = vmatpush1.bf16.msra.mxu0 0
        %1244 = vmatprep.subr.bf16.mxu0 0
        %1245 = vmatpush1.bf16.msra.mxu0 0
        %1246 = vmatprep.subr.bf16.mxu0 0
        %1247 = vmatpush1.bf16.msra.mxu0 0
        %1248 = vmatprep.subr.bf16.mxu0 0
        %1249 = vmatpush1.bf16.msra.mxu0 0
        %1250 = vmatprep.subr.bf16.mxu0 0
        %1251 = vmatpush1.bf16.msra.mxu0 0
        %1252 = vmatprep.subr.bf16.mxu0 0
        %1253 = vmatpush1.bf16.msra.mxu0 0
        %1254 = vmatprep.subr.bf16.mxu0 0
        %1255 = vmatpush1.bf16.msra.mxu0 0
        %1256 = vmatprep.subr.bf16.mxu0 0
        %1257 = vmatpush1.bf16.msra.mxu0 0
        %1258 = vmatprep.subr.bf16.mxu0 0
        %1259 = vmatpush1.bf16.msra.mxu0 0
        %1260 = vmatprep.mubr.bf16.mxu0 0
        %1261 = vmatmul.mubr.bf16.gmra.mrb[0].mxu0 %v1226
        %v1262 = vpop.f32.mrb[0].mxu0
        %v1263 = vadd.f32 0.0, %v1262
        %v1264 = vpop.f32.mrb[0].mxu0
        %v1265 = vpop.f32.mrb[0].mxu0
        %v1266 = vadd.f32 0.0, %v1265
        %v1267 = vpop.f32.mrb[0].mxu0
        %1268 = vdwg.mxu0
        %v1273 = vunpack.c.l.b16 %v1076
        %v1274 = vunpack.c.l.b16 %v1077
        %v1275 = vunpack.c.l.b16 %v1078
        %v1276 = vunpack.c.l.b16 %v1079
        %v1277 = vpack.c.b16 %v1274, %v1273
        %v1278 = vpack.c.b16 %v1276, %v1275
        %v1282 = vsel %vm949, %v1075, 0
        %1284 = vmatprep.subr.bf16.mxu0 0
        %1285 = vmatpush1.bf16.msra.mxu0 %v1277
        %1286 = vmatprep.subr.bf16.mxu0 0
        %1287 = vmatpush1.bf16.msra.mxu0 %v1278
        %1288 = vmatprep.subr.bf16.mxu0 0
        %1289 = vmatpush1.bf16.msra.mxu0 0
        %1290 = vmatprep.subr.bf16.mxu0 0
        %1291 = vmatpush1.bf16.msra.mxu0 0
        %1292 = vmatprep.subr.bf16.mxu0 0
        %1293 = vmatpush1.bf16.msra.mxu0 0
        %1294 = vmatprep.subr.bf16.mxu0 0
        %1295 = vmatpush1.bf16.msra.mxu0 0
        %1296 = vmatprep.subr.bf16.mxu0 0
        %1297 = vmatpush1.bf16.msra.mxu0 0
        %1298 = vmatprep.subr.bf16.mxu0 0
        %1299 = vmatpush1.bf16.msra.mxu0 0
        %1300 = vmatprep.subr.bf16.mxu0 0
        %1301 = vmatpush1.bf16.msra.mxu0 0
        %1302 = vmatprep.subr.bf16.mxu0 0
        %1303 = vmatpush1.bf16.msra.mxu0 0
        %1304 = vmatprep.subr.bf16.mxu0 0
        %1305 = vmatpush1.bf16.msra.mxu0 0
        %1306 = vmatprep.subr.bf16.mxu0 0
        %1307 = vmatpush1.bf16.msra.mxu0 0
        %1308 = vmatprep.subr.bf16.mxu0 0
        %1309 = vmatpush1.bf16.msra.mxu0 0
        %1310 = vmatprep.subr.bf16.mxu0 0
        %1311 = vmatpush1.bf16.msra.mxu0 0
        %1312 = vmatprep.subr.bf16.mxu0 0
        %1313 = vmatpush1.bf16.msra.mxu0 0
        %1314 = vmatprep.subr.bf16.mxu0 0
        %1315 = vmatpush1.bf16.msra.mxu0 0
        %1316 = vmatprep.mubr.bf16.mxu0 0
        %1317 = vmatmul.mubr.bf16.gmra.mrb[0].mxu0 %v1282
        %v1318 = vpop.f32.mrb[0].mxu0
        %v1319 = vadd.f32 %v1263, %v1318
        %v1320 = vpop.f32.mrb[0].mxu0
        %v1321 = vpop.f32.mrb[0].mxu0
        %v1322 = vadd.f32 %v1266, %v1321
        %v1323 = vpop.f32.mrb[0].mxu0
        %1324 = vdwg.mxu0
        %1325 = vrot.lane.b32.xlu0 %v946, 64
        %v1326 = vpop.permute.xlu0 %1325
        %1327 = vrot.lane.b32.xlu0 %v947, 64
        %v1328 = vpop.permute.xlu0 %1327
        %v1330 = vsel %vm949, %v1326, 0
        %v1333 = vsel %vm949, %v1328, 0
        %1335 = vmatprep.subr.bf16.mxu0 0
        %1336 = vmatpush1.bf16.xpose.msra.mxu0 %v1333
        %1337 = vmatprep.subr.bf16.mxu0 0
        %1338 = vmatpush1.bf16.xpose.msra.mxu0 0
        %1339 = vmatprep.subr.bf16.mxu0 0
        %1340 = vmatpush1.bf16.xpose.msra.mxu0 0
        %1341 = vmatprep.subr.bf16.mxu0 0
        %1342 = vmatpush1.bf16.xpose.msra.mxu0 0
        %1343 = vmatprep.subr.bf16.mxu0 0
        %1344 = vmatpush1.bf16.xpose.msra.mxu0 0
        %1345 = vmatprep.subr.bf16.mxu0 0
        %1346 = vmatpush1.bf16.xpose.msra.mxu0 0
        %1347 = vmatprep.subr.bf16.mxu0 0
        %1348 = vmatpush1.bf16.xpose.msra.mxu0 0
        %1349 = vmatprep.subr.bf16.mxu0 0
        %1350 = vmatpush1.bf16.xpose.msra.mxu0 0
        %1351 = vmatprep.subr.bf16.mxu0 0
        %1352 = vmatpush1.bf16.xpose.msra.mxu0 0
        %1353 = vmatprep.subr.bf16.mxu0 0
        %1354 = vmatpush1.bf16.xpose.msra.mxu0 0
        %1355 = vmatprep.subr.bf16.mxu0 0
        %1356 = vmatpush1.bf16.xpose.msra.mxu0 0
        %1357 = vmatprep.subr.bf16.mxu0 0
        %1358 = vmatpush1.bf16.xpose.msra.mxu0 0
        %1359 = vmatprep.subr.bf16.mxu0 0
        %1360 = vmatpush1.bf16.xpose.msra.mxu0 0
        %1361 = vmatprep.subr.bf16.mxu0 0
        %1362 = vmatpush1.bf16.xpose.msra.mxu0 0
        %1363 = vmatprep.subr.bf16.mxu0 0
        %1364 = vmatpush1.bf16.xpose.msra.mxu0 0
        %1365 = vmatprep.subr.bf16.mxu0 0
        %1366 = vmatpush1.bf16.xpose.msra.mxu0 0
        %1367 = vmatprep.mubr.bf16.mxu0 0
        %1368 = vmatmul.mubr.bf16.gmra.mrb[0].mxu0 %v1330
        %v1369 = vpop.f32.mrb[0].mxu0
        %v1370 = vadd.f32 0.0, %v1369
        %v1371 = vpop.f32.mrb[0].mxu0
        %v1372 = vpop.f32.mrb[0].mxu0
        %v1373 = vadd.f32 0.0, %v1372
        %v1374 = vpop.f32.mrb[0].mxu0
        %1375 = vdwg.mxu0
        %v1376 = vmul.f32 %v1370, 0.17677669
        %v1377 = vmul.f32 %v1373, 0.17677669
        %v1378 = vadd.f32 %v1376, %v1003
        %v1379 = vadd.f32 %v1377, %v1003
        %v1380 = vsel %vm1007, %v1378, -inf
        %1381 = vmax.xlane.f32.xlu0 %v1380
        %v1382 = vpop.xlane.xlu0 %1381
        %v1383 = vsel %vm1007, %v1379, -inf
        %1384 = vmax.xlane.f32.xlu0 %v1383
        %v1385 = vpop.xlane.xlu0 %1384
        %v1386 = vsub.f32 %v1378, %v1382
        %v1387 = vsub.f32 %v1379, %v1385
        %v1388 = vmul.f32 %v1386, 1.442695
        %v1389 = vpow.pop %v1388
        %v1390 = vmul.f32 %v1387, 1.442695
        %v1391 = vpow.pop %v1390
        %v1392 = vsel %vm1007, %v1389, 0.0
        %1393 = vadd.xlane.f32.xlu0 %v1392
        %v1394 = vpop.xlane.xlu0 %1393
        %v1395 = vsel %vm1007, %v1391, 0.0
        %1396 = vadd.xlane.f32.xlu0 %v1395
        %v1397 = vpop.xlane.xlu0 %1396
        %v1398 = vrcp.pop %v1394
        %v1399 = vrcp.pop %v1397
        %v1400 = vmul.f32 %v1389, %v1398
        %v1401 = vmul.f32 %v1391, %v1399
        %v1402 = vpack.c.bf16 %v1401, %v1400
        %1403 = vrot.lane.b32.xlu0 %v948, 64
        %v1404 = vpop.permute.xlu0 %1403
        %v1407 = vsel %vm1007, %v1402, 0
        %1409 = vmatprep.subr.bf16.mxu0 0
        %1410 = vmatpush1.bf16.msra.mxu0 %v1404
        %1411 = vmatprep.subr.bf16.mxu0 0
        %1412 = vmatpush1.bf16.msra.mxu0 0
        %1413 = vmatprep.subr.bf16.mxu0 0
        %1414 = vmatpush1.bf16.msra.mxu0 0
        %1415 = vmatprep.subr.bf16.mxu0 0
        %1416 = vmatpush1.bf16.msra.mxu0 0
        %1417 = vmatprep.subr.bf16.mxu0 0
        %1418 = vmatpush1.bf16.msra.mxu0 0
        %1419 = vmatprep.subr.bf16.mxu0 0
        %1420 = vmatpush1.bf16.msra.mxu0 0
        %1421 = vmatprep.subr.bf16.mxu0 0
        %1422 = vmatpush1.bf16.msra.mxu0 0
        %1423 = vmatprep.subr.bf16.mxu0 0
        %1424 = vmatpush1.bf16.msra.mxu0 0
        %1425 = vmatprep.subr.bf16.mxu0 0
        %1426 = vmatpush1.bf16.msra.mxu0 0
        %1427 = vmatprep.subr.bf16.mxu0 0
        %1428 = vmatpush1.bf16.msra.mxu0 0
        %1429 = vmatprep.subr.bf16.mxu0 0
        %1430 = vmatpush1.bf16.msra.mxu0 0
        %1431 = vmatprep.subr.bf16.mxu0 0
        %1432 = vmatpush1.bf16.msra.mxu0 0
        %1433 = vmatprep.subr.bf16.mxu0 0
        %1434 = vmatpush1.bf16.msra.mxu0 0
        %1435 = vmatprep.subr.bf16.mxu0 0
        %1436 = vmatpush1.bf16.msra.mxu0 0
        %1437 = vmatprep.subr.bf16.mxu0 0
        %1438 = vmatpush1.bf16.msra.mxu0 0
        %1439 = vmatprep.subr.bf16.mxu0 0
        %1440 = vmatpush1.bf16.msra.mxu0 0
        %1441 = vmatprep.mubr.bf16.mxu0 0
        %1442 = vmatmul.mubr.bf16.gmra.mrb[0].mxu0 %v1407
        %v1443 = vpop.f32.mrb[0].mxu0
        %v1444 = vadd.f32 0.0, %v1443
        %v1445 = vpop.f32.mrb[0].mxu0
        %v1446 = vpop.f32.mrb[0].mxu0
        %v1447 = vadd.f32 0.0, %v1446
        %v1448 = vpop.f32.mrb[0].mxu0
        %1449 = vdwg.mxu0
        %v1450 = vpack.c.bf16 %v1447, %v1444
        %v1451 = vld [vmem:[#allocation10 + $0x20] sm:$0xf]
        %v1452 = vld [vmem:[#allocation10 + $0x24] sm:$0xf]
        %v1453 = vld [vmem:[#allocation10 + $0x28] sm:$0xf]
        %v1454 = vld [vmem:[#allocation10 + $0x2c] sm:$0xf]
        %v1459 = vunpack.c.l.b16 %v1451
        %v1460 = vunpack.c.l.b16 %v1452
        %v1461 = vunpack.c.l.b16 %v1453
        %v1462 = vunpack.c.l.b16 %v1454
        %v1463 = vpack.c.b16 %v1460, %v1459
        %v1464 = vpack.c.b16 %v1462, %v1461
        %v1468 = vsel %vm949, %v1450, 0
        %1470 = vmatprep.subr.bf16.mxu0 0
        %1471 = vmatpush1.bf16.msra.mxu0 %v1463
        %1472 = vmatprep.subr.bf16.mxu0 0
        %1473 = vmatpush1.bf16.msra.mxu0 %v1464
        %1474 = vmatprep.subr.bf16.mxu0 0
        %1475 = vmatpush1.bf16.msra.mxu0 0
        %1476 = vmatprep.subr.bf16.mxu0 0
        %1477 = vmatpush1.bf16.msra.mxu0 0
        %1478 = vmatprep.subr.bf16.mxu0 0
        %1479 = vmatpush1.bf16.msra.mxu0 0
        %1480 = vmatprep.subr.bf16.mxu0 0
        %1481 = vmatpush1.bf16.msra.mxu0 0
        %1482 = vmatprep.subr.bf16.mxu0 0
        %1483 = vmatpush1.bf16.msra.mxu0 0
        %1484 = vmatprep.subr.bf16.mxu0 0
        %1485 = vmatpush1.bf16.msra.mxu0 0
        %1486 = vmatprep.subr.bf16.mxu0 0
        %1487 = vmatpush1.bf16.msra.mxu0 0
        %1488 = vmatprep.subr.bf16.mxu0 0
        %1489 = vmatpush1.bf16.msra.mxu0 0
        %1490 = vmatprep.subr.bf16.mxu0 0
        %1491 = vmatpush1.bf16.msra.mxu0 0
        %1492 = vmatprep.subr.bf16.mxu0 0
        %1493 = vmatpush1.bf16.msra.mxu0 0
        %1494 = vmatprep.subr.bf16.mxu0 0
        %1495 = vmatpush1.bf16.msra.mxu0 0
        %1496 = vmatprep.subr.bf16.mxu0 0
        %1497 = vmatpush1.bf16.msra.mxu0 0
        %1498 = vmatprep.subr.bf16.mxu0 0
        %1499 = vmatpush1.bf16.msra.mxu0 0
        %1500 = vmatprep.subr.bf16.mxu0 0
        %1501 = vmatpush1.bf16.msra.mxu0 0
        %1502 = vmatprep.mubr.bf16.mxu0 0
        %1503 = vmatmul.mubr.bf16.gmra.mrb[0].mxu0 %v1468
        %v1504 = vpop.f32.mrb[0].mxu0
        %v1505 = vadd.f32 0.0, %v1504
        %v1506 = vpop.f32.mrb[0].mxu0
        %v1507 = vpop.f32.mrb[0].mxu0
        %v1508 = vadd.f32 0.0, %v1507
        %v1509 = vpop.f32.mrb[0].mxu0
        %1510 = vdwg.mxu0
        %v1511 = vadd.f32 %v1319, %v1505
        %v1512 = vadd.f32 %v1322, %v1508
        %1513 = vrot.lane.b32.xlu0 %v946, 32
        %v1514 = vpop.permute.xlu0 %1513
        %1515 = vrot.lane.b32.xlu0 %v947, 32
        %v1516 = vpop.permute.xlu0 %1515
        %v1518 = vsel %vm949, %v1514, 0
        %v1521 = vsel %vm949, %v1516, 0
        %1523 = vmatprep.subr.bf16.mxu0 0
        %1524 = vmatpush1.bf16.xpose.msra.mxu0 %v1521
        %1525 = vmatprep.subr.bf16.mxu0 0
        %1526 = vmatpush1.bf16.xpose.msra.mxu0 0
        %1527 = vmatprep.subr.bf16.mxu0 0
        %1528 = vmatpush1.bf16.xpose.msra.mxu0 0
        %1529 = vmatprep.subr.bf16.mxu0 0
        %1530 = vmatpush1.bf16.xpose.msra.mxu0 0
        %1531 = vmatprep.subr.bf16.mxu0 0
        %1532 = vmatpush1.bf16.xpose.msra.mxu0 0
        %1533 = vmatprep.subr.bf16.mxu0 0
        %1534 = vmatpush1.bf16.xpose.msra.mxu0 0
        %1535 = vmatprep.subr.bf16.mxu0 0
        %1536 = vmatpush1.bf16.xpose.msra.mxu0 0
        %1537 = vmatprep.subr.bf16.mxu0 0
        %1538 = vmatpush1.bf16.xpose.msra.mxu0 0
        %1539 = vmatprep.subr.bf16.mxu0 0
        %1540 = vmatpush1.bf16.xpose.msra.mxu0 0
        %1541 = vmatprep.subr.bf16.mxu0 0
        %1542 = vmatpush1.bf16.xpose.msra.mxu0 0
        %1543 = vmatprep.subr.bf16.mxu0 0
        %1544 = vmatpush1.bf16.xpose.msra.mxu0 0
        %1545 = vmatprep.subr.bf16.mxu0 0
        %1546 = vmatpush1.bf16.xpose.msra.mxu0 0
        %1547 = vmatprep.subr.bf16.mxu0 0
        %1548 = vmatpush1.bf16.xpose.msra.mxu0 0
        %1549 = vmatprep.subr.bf16.mxu0 0
        %1550 = vmatpush1.bf16.xpose.msra.mxu0 0
        %1551 = vmatprep.subr.bf16.mxu0 0
        %1552 = vmatpush1.bf16.xpose.msra.mxu0 0
        %1553 = vmatprep.subr.bf16.mxu0 0
        %1554 = vmatpush1.bf16.xpose.msra.mxu0 0
        %1555 = vmatprep.mubr.bf16.mxu0 0
        %1556 = vmatmul.mubr.bf16.gmra.mrb[0].mxu0 %v1518
        %v1557 = vpop.f32.mrb[0].mxu0
        %v1558 = vadd.f32 0.0, %v1557
        %v1559 = vpop.f32.mrb[0].mxu0
        %v1560 = vpop.f32.mrb[0].mxu0
        %v1561 = vadd.f32 0.0, %v1560
        %v1562 = vpop.f32.mrb[0].mxu0
        %1563 = vdwg.mxu0
        %v1564 = vmul.f32 %v1558, 0.17677669
        %v1565 = vmul.f32 %v1561, 0.17677669
        %v1566 = vadd.f32 %v1564, %v1003
        %v1567 = vadd.f32 %v1565, %v1003
        %v1568 = vsel %vm1007, %v1566, -inf
        %1569 = vmax.xlane.f32.xlu0 %v1568
        %v1570 = vpop.xlane.xlu0 %1569
        %v1571 = vsel %vm1007, %v1567, -inf
        %1572 = vmax.xlane.f32.xlu0 %v1571
        %v1573 = vpop.xlane.xlu0 %1572
        %v1574 = vsub.f32 %v1566, %v1570
        %v1575 = vsub.f32 %v1567, %v1573
        %v1576 = vmul.f32 %v1574, 1.442695
        %v1577 = vpow.pop %v1576
        %v1578 = vmul.f32 %v1575, 1.442695
        %v1579 = vpow.pop %v1578
        %v1580 = vsel %vm1007, %v1577, 0.0
        %1581 = vadd.xlane.f32.xlu0 %v1580
        %v1582 = vpop.xlane.xlu0 %1581
        %v1583 = vsel %vm1007, %v1579, 0.0
        %1584 = vadd.xlane.f32.xlu0 %v1583
        %v1585 = vpop.xlane.xlu0 %1584
        %v1586 = vrcp.pop %v1582
        %v1587 = vrcp.pop %v1585
        %v1588 = vmul.f32 %v1577, %v1586
        %v1589 = vmul.f32 %v1579, %v1587
        %v1590 = vpack.c.bf16 %v1589, %v1588
        %1591 = vrot.lane.b32.xlu0 %v948, 32
        %v1592 = vpop.permute.xlu0 %1591
        %v1595 = vsel %vm1007, %v1590, 0
        %1597 = vmatprep.subr.bf16.mxu0 0
        %1598 = vmatpush1.bf16.msra.mxu0 %v1592
        %1599 = vmatprep.subr.bf16.mxu0 0
        %1600 = vmatpush1.bf16.msra.mxu0 0
        %1601 = vmatprep.subr.bf16.mxu0 0
        %1602 = vmatpush1.bf16.msra.mxu0 0
        %1603 = vmatprep.subr.bf16.mxu0 0
        %1604 = vmatpush1.bf16.msra.mxu0 0
        %1605 = vmatprep.subr.bf16.mxu0 0
        %1606 = vmatpush1.bf16.msra.mxu0 0
        %1607 = vmatprep.subr.bf16.mxu0 0
        %1608 = vmatpush1.bf16.msra.mxu0 0
        %1609 = vmatprep.subr.bf16.mxu0 0
        %1610 = vmatpush1.bf16.msra.mxu0 0
        %1611 = vmatprep.subr.bf16.mxu0 0
        %1612 = vmatpush1.bf16.msra.mxu0 0
        %1613 = vmatprep.subr.bf16.mxu0 0
        %1614 = vmatpush1.bf16.msra.mxu0 0
        %1615 = vmatprep.subr.bf16.mxu0 0
        %1616 = vmatpush1.bf16.msra.mxu0 0
        %1617 = vmatprep.subr.bf16.mxu0 0
        %1618 = vmatpush1.bf16.msra.mxu0 0
        %1619 = vmatprep.subr.bf16.mxu0 0
        %1620 = vmatpush1.bf16.msra.mxu0 0
        %1621 = vmatprep.subr.bf16.mxu0 0
        %1622 = vmatpush1.bf16.msra.mxu0 0
        %1623 = vmatprep.subr.bf16.mxu0 0
        %1624 = vmatpush1.bf16.msra.mxu0 0
        %1625 = vmatprep.subr.bf16.mxu0 0
        %1626 = vmatpush1.bf16.msra.mxu0 0
        %1627 = vmatprep.subr.bf16.mxu0 0
        %1628 = vmatpush1.bf16.msra.mxu0 0
        %1629 = vmatprep.mubr.bf16.mxu0 0
        %1630 = vmatmul.mubr.bf16.gmra.mrb[0].mxu0 %v1595
        %v1631 = vpop.f32.mrb[0].mxu0
        %v1632 = vadd.f32 0.0, %v1631
        %v1633 = vpop.f32.mrb[0].mxu0
        %v1634 = vpop.f32.mrb[0].mxu0
        %v1635 = vadd.f32 0.0, %v1634
        %v1636 = vpop.f32.mrb[0].mxu0
        %1637 = vdwg.mxu0
        %v1638 = vpack.c.bf16 %v1635, %v1632
        %v1639 = vld [vmem:[#allocation10 + $0x30] sm:$0xf]
        %v1640 = vld [vmem:[#allocation10 + $0x34] sm:$0xf]
        %v1641 = vld [vmem:[#allocation10 + $0x38] sm:$0xf]
        %v1642 = vld [vmem:[#allocation10 + $0x3c] sm:$0xf]
        %v1647 = vunpack.c.l.b16 %v1639
        %v1648 = vunpack.c.l.b16 %v1640
        %v1649 = vunpack.c.l.b16 %v1641
        %v1650 = vunpack.c.l.b16 %v1642
        %v1651 = vpack.c.b16 %v1648, %v1647
        %v1652 = vpack.c.b16 %v1650, %v1649
        %v1656 = vsel %vm949, %v1638, 0
        %1658 = vmatprep.subr.bf16.mxu0 0
        %1659 = vmatpush1.bf16.msra.mxu0 %v1651
        %1660 = vmatprep.subr.bf16.mxu0 0
        %1661 = vmatpush1.bf16.msra.mxu0 %v1652
        %1662 = vmatprep.subr.bf16.mxu0 0
        %1663 = vmatpush1.bf16.msra.mxu0 0
        %1664 = vmatprep.subr.bf16.mxu0 0
        %1665 = vmatpush1.bf16.msra.mxu0 0
        %1666 = vmatprep.subr.bf16.mxu0 0
        %1667 = vmatpush1.bf16.msra.mxu0 0
        %1668 = vmatprep.subr.bf16.mxu0 0
        %1669 = vmatpush1.bf16.msra.mxu0 0
        %1670 = vmatprep.subr.bf16.mxu0 0
        %1671 = vmatpush1.bf16.msra.mxu0 0
        %1672 = vmatprep.subr.bf16.mxu0 0
        %1673 = vmatpush1.bf16.msra.mxu0 0
        %1674 = vmatprep.subr.bf16.mxu0 0
        %1675 = vmatpush1.bf16.msra.mxu0 0
        %1676 = vmatprep.subr.bf16.mxu0 0
        %1677 = vmatpush1.bf16.msra.mxu0 0
        %1678 = vmatprep.subr.bf16.mxu0 0
        %1679 = vmatpush1.bf16.msra.mxu0 0
        %1680 = vmatprep.subr.bf16.mxu0 0
        %1681 = vmatpush1.bf16.msra.mxu0 0
        %1682 = vmatprep.subr.bf16.mxu0 0
        %1683 = vmatpush1.bf16.msra.mxu0 0
        %1684 = vmatprep.subr.bf16.mxu0 0
        %1685 = vmatpush1.bf16.msra.mxu0 0
        %1686 = vmatprep.subr.bf16.mxu0 0
        %1687 = vmatpush1.bf16.msra.mxu0 0
        %1688 = vmatprep.subr.bf16.mxu0 0
        %1689 = vmatpush1.bf16.msra.mxu0 0
        %1690 = vmatprep.mubr.bf16.mxu0 0
        %1691 = vmatmul.mubr.bf16.gmra.mrb[0].mxu0 %v1656
        %v1692 = vpop.f32.mrb[0].mxu0
        %v1693 = vadd.f32 0.0, %v1692
        %v1694 = vpop.f32.mrb[0].mxu0
        %v1695 = vpop.f32.mrb[0].mxu0
        %v1696 = vadd.f32 0.0, %v1695
        %v1697 = vpop.f32.mrb[0].mxu0
        %1698 = vdwg.mxu0
        %v1699 = vadd.f32 %v1511, %v1693
        %v1700 = vadd.f32 %v1512, %v1696
        %v1701 = vadd.f32 %v679, %v1699
        %v1702 = vadd.f32 %v680, %v1700
        %v1703 = vld [vmem:[#allocation11] sm:$0x1]
        %v1705 = vlaneseq
        %v1706 = vshrl.u32 %v1705, 7
        %v1707 = vsub.s32 0, %v1706
        %v1708 = vrot.slane %v1703, %v1707
        %v1710 = vadd.f32 %v1701, %v1708
        %v1711 = vadd.f32 %v1702, %v1708
        %v1712 = vld [vmem:[#allocation13] sm:$0x1]
        %v1713 = vld [vmem:[#allocation14] sm:$0x1]
        %1714 = vadd.xlane.f32.xlu0 %v1710
        %v1715 = vpop.xlane.xlu0 %1714
        %1716 = vadd.xlane.f32.xlu0 %v1711
        %v1717 = vpop.xlane.xlu0 %1716
        %v1718 = vrcp.pop 128.0
        %v1719 = vmul.f32 %v1715, %v1718
        %v1720 = vmul.f32 %v1717, %v1718
        %v1721 = vsub.f32 %v1710, %v1719
        %v1722 = vsub.f32 %v1711, %v1720
        %v1723 = vmul.f32 %v1721, %v1721
        %v1724 = vmul.f32 %v1722, %v1722
        %1725 = vadd.xlane.f32.xlu0 %v1723
        %v1726 = vpop.xlane.xlu0 %1725
        %1727 = vadd.xlane.f32.xlu0 %v1724
        %v1728 = vpop.xlane.xlu0 %1727
        %v1729 = vmul.f32 %v1726, %v1718
        %v1730 = vmul.f32 %v1728, %v1718
        %v1731 = vadd.f32 %v1729, 1e-05
        %v1732 = vadd.f32 %v1730, 1e-05
        %v1733 = vrsqrt.pop %v1731
        %v1734 = vrsqrt.pop %v1732
        %v1735 = vmul.f32 %v1721, %v1733
        %v1736 = vmul.f32 %v1722, %v1734
        %v1738 = vlaneseq
        %v1739 = vshrl.u32 %v1738, 7
        %v1740 = vsub.s32 0, %v1739
        %v1741 = vrot.slane %v1712, %v1740
        %v1743 = vmul.f32 %v1735, %v1741
        %v1744 = vmul.f32 %v1736, %v1741
        %v1746 = vlaneseq
        %v1747 = vshrl.u32 %v1746, 7
        %v1748 = vsub.s32 0, %v1747
        %v1749 = vrot.slane %v1713, %v1748
        %v1751 = vadd.f32 %v1743, %v1749
        %v1752 = vadd.f32 %v1744, %v1749
        %v1753 = vpack.c.bf16 %v1752, %v1751
        %v1754 = vld [vmem:[#allocation16] sm:$0xff]
        %v1755 = vld [vmem:[#allocation16 + $0x8] sm:$0xff]
        %v1756 = vld [vmem:[#allocation16 + $0x10] sm:$0xff]
        %v1757 = vld [vmem:[#allocation16 + $0x18] sm:$0xff]
        %v1758 = vld [vmem:[#allocation16 + $0x20] sm:$0xff]
        %v1759 = vld [vmem:[#allocation16 + $0x28] sm:$0xff]
        %v1760 = vld [vmem:[#allocation16 + $0x30] sm:$0xff]
        %v1761 = vld [vmem:[#allocation16 + $0x38] sm:$0xff]
        %v1762 = vld [vmem:[#allocation16 + $0x40] sm:$0xff]
        %v1763 = vld [vmem:[#allocation16 + $0x48] sm:$0xff]
        %v1764 = vld [vmem:[#allocation16 + $0x50] sm:$0xff]
        %v1765 = vld [vmem:[#allocation16 + $0x58] sm:$0xff]
        %v1766 = vld [vmem:[#allocation16 + $0x60] sm:$0xff]
        %v1767 = vld [vmem:[#allocation16 + $0x68] sm:$0xff]
        %v1768 = vld [vmem:[#allocation16 + $0x70] sm:$0xff]
        %v1769 = vld [vmem:[#allocation16 + $0x78] sm:$0xff]
        %v1770 = vld [vmem:[#allocation17] sm:$0x3]
        %v1772 = vlaneseq
        %v1773 = vshrl.u32 %v1772, 7
        %v1774 = vsub.s32 0, %v1773
        %v1775 = vrot.slane %v1770, %v1774
        %v1776 = vlaneseq
        %v1777 = vshrl.u32 %v1776, 7
        %v1778 = vsub.s32 1, %v1777
        %v1779 = vrot.slane %v1770, %v1778
        %v1798 = vunpack.c.l.b16 %v1754
        %v1799 = vunpack.c.h.b16 %v1754
        %v1800 = vunpack.c.l.b16 %v1755
        %v1801 = vunpack.c.h.b16 %v1755
        %v1802 = vunpack.c.l.b16 %v1756
        %v1803 = vunpack.c.h.b16 %v1756
        %v1804 = vunpack.c.l.b16 %v1757
        %v1805 = vunpack.c.h.b16 %v1757
        %v1806 = vunpack.c.l.b16 %v1758
        %v1807 = vunpack.c.h.b16 %v1758
        %v1808 = vunpack.c.l.b16 %v1759
        %v1809 = vunpack.c.h.b16 %v1759
        %v1810 = vunpack.c.l.b16 %v1760
        %v1811 = vunpack.c.h.b16 %v1760
        %v1812 = vunpack.c.l.b16 %v1761
        %v1813 = vunpack.c.h.b16 %v1761
        %v1814 = vunpack.c.l.b16 %v1762
        %v1815 = vunpack.c.h.b16 %v1762
        %v1816 = vunpack.c.l.b16 %v1763
        %v1817 = vunpack.c.h.b16 %v1763
        %v1818 = vunpack.c.l.b16 %v1764
        %v1819 = vunpack.c.h.b16 %v1764
        %v1820 = vunpack.c.l.b16 %v1765
        %v1821 = vunpack.c.h.b16 %v1765
        %v1822 = vunpack.c.l.b16 %v1766
        %v1823 = vunpack.c.h.b16 %v1766
        %v1824 = vunpack.c.l.b16 %v1767
        %v1825 = vunpack.c.h.b16 %v1767
        %v1826 = vunpack.c.l.b16 %v1768
        %v1827 = vunpack.c.h.b16 %v1768
        %v1828 = vunpack.c.l.b16 %v1769
        %v1829 = vunpack.c.h.b16 %v1769
        %v1830 = vpack.c.b16 %v1800, %v1798
        %v1831 = vpack.c.b16 %v1801, %v1799
        %v1832 = vpack.c.b16 %v1804, %v1802
        %v1833 = vpack.c.b16 %v1805, %v1803
        %v1834 = vpack.c.b16 %v1808, %v1806
        %v1835 = vpack.c.b16 %v1809, %v1807
        %v1836 = vpack.c.b16 %v1812, %v1810
        %v1837 = vpack.c.b16 %v1813, %v1811
        %v1838 = vpack.c.b16 %v1816, %v1814
        %v1839 = vpack.c.b16 %v1817, %v1815
        %v1840 = vpack.c.b16 %v1820, %v1818
        %v1841 = vpack.c.b16 %v1821, %v1819
        %v1842 = vpack.c.b16 %v1824, %v1822
        %v1843 = vpack.c.b16 %v1825, %v1823
        %v1844 = vpack.c.b16 %v1828, %v1826
        %v1845 = vpack.c.b16 %v1829, %v1827
        %1862 = vmatprep.subr.bf16.mxu0 %v1831
        %1863 = vmatpush1.bf16.msra.mxu0 %v1830
        %1864 = vmatprep.subr.bf16.mxu0 %v1833
        %1865 = vmatpush1.bf16.msra.mxu0 %v1832
        %1866 = vmatprep.subr.bf16.mxu0 %v1835
        %1867 = vmatpush1.bf16.msra.mxu0 %v1834
        %1868 = vmatprep.subr.bf16.mxu0 %v1837
        %1869 = vmatpush1.bf16.msra.mxu0 %v1836
        %1870 = vmatprep.subr.bf16.mxu0 %v1839
        %1871 = vmatpush1.bf16.msra.mxu0 %v1838
        %1872 = vmatprep.subr.bf16.mxu0 %v1841
        %1873 = vmatpush1.bf16.msra.mxu0 %v1840
        %1874 = vmatprep.subr.bf16.mxu0 %v1843
        %1875 = vmatpush1.bf16.msra.mxu0 %v1842
        %1876 = vmatprep.subr.bf16.mxu0 %v1845
        %1877 = vmatpush1.bf16.msra.mxu0 %v1844
        %1878 = vmatprep.subr.bf16.mxu0 0
        %1879 = vmatpush1.bf16.msra.mxu0 0
        %1880 = vmatprep.subr.bf16.mxu0 0
        %1881 = vmatpush1.bf16.msra.mxu0 0
        %1882 = vmatprep.subr.bf16.mxu0 0
        %1883 = vmatpush1.bf16.msra.mxu0 0
        %1884 = vmatprep.subr.bf16.mxu0 0
        %1885 = vmatpush1.bf16.msra.mxu0 0
        %1886 = vmatprep.subr.bf16.mxu0 0
        %1887 = vmatpush1.bf16.msra.mxu0 0
        %1888 = vmatprep.subr.bf16.mxu0 0
        %1889 = vmatpush1.bf16.msra.mxu0 0
        %1890 = vmatprep.subr.bf16.mxu0 0
        %1891 = vmatpush1.bf16.msra.mxu0 0
        %1892 = vmatprep.subr.bf16.mxu0 0
        %1893 = vmatpush1.bf16.msra.mxu0 0
        %1894 = vmatprep.mubr.bf16.mxu0 0
        %1895 = vmatmul.mubr.bf16.gmra.mrb[0].mxu0 %v1753
        %v1896 = vpop.f32.mrb[0].mxu0
        %v1897 = vadd.f32 %v1775, %v1896
        %v1898 = vpop.f32.mrb[0].mxu0
        %v1899 = vadd.f32 %v1779, %v1898
        %v1900 = vpop.f32.mrb[0].mxu0
        %v1901 = vadd.f32 %v1775, %v1900
        %v1902 = vpop.f32.mrb[0].mxu0
        %v1903 = vadd.f32 %v1779, %v1902
        %1904 = vdwg.mxu0
        %v1905 = vmul.f32 %v1897, %v1897
        %v1906 = vmul.f32 %v1899, %v1899
        %v1907 = vmul.f32 %v1901, %v1901
        %v1908 = vmul.f32 %v1903, %v1903
        %v1909 = vmul.f32 %v1897, %v1905
        %v1910 = vmul.f32 %v1899, %v1906
        %v1911 = vmul.f32 %v1901, %v1907
        %v1912 = vmul.f32 %v1903, %v1908
        %v1913 = vmul.f32 %v1909, 0.044715
        %v1914 = vmul.f32 %v1910, 0.044715
        %v1915 = vmul.f32 %v1911, 0.044715
        %v1916 = vmul.f32 %v1912, 0.044715
        %v1917 = vadd.f32 %v1897, %v1913
        %v1918 = vadd.f32 %v1899, %v1914
        %v1919 = vadd.f32 %v1901, %v1915
        %v1920 = vadd.f32 %v1903, %v1916
        %v1921 = vmul.f32 %v1917, 0.7978846
        %v1922 = vmul.f32 %v1918, 0.7978846
        %v1923 = vmul.f32 %v1919, 0.7978846
        %v1924 = vmul.f32 %v1920, 0.7978846
        %v1925 = vtanh.pop %v1921
        %v1926 = vtanh.pop %v1922
        %v1927 = vtanh.pop %v1923
        %v1928 = vtanh.pop %v1924
        %v1929 = vadd.f32 %v1925, 1.0
        %v1930 = vadd.f32 %v1926, 1.0
        %v1931 = vadd.f32 %v1927, 1.0
        %v1932 = vadd.f32 %v1928, 1.0
        %v1933 = vmul.f32 %v1929, 0.5
        %v1934 = vmul.f32 %v1930, 0.5
        %v1935 = vmul.f32 %v1931, 0.5
        %v1936 = vmul.f32 %v1932, 0.5
        %v1937 = vmul.f32 %v1897, %v1933
        %v1938 = vmul.f32 %v1899, %v1934
        %v1939 = vmul.f32 %v1901, %v1935
        %v1940 = vmul.f32 %v1903, %v1936
        %v1941 = vpack.c.bf16 %v1939, %v1937
        %v1942 = vpack.c.bf16 %v1940, %v1938
        %v1943 = vld [vmem:[#allocation19] sm:$0xf]
        %v1944 = vld [vmem:[#allocation19 + $0x4] sm:$0xf]
        %v1945 = vld [vmem:[#allocation19 + $0x8] sm:$0xf]
        %v1946 = vld [vmem:[#allocation19 + $0xc] sm:$0xf]
        %v1947 = vld [vmem:[#allocation19 + $0x10] sm:$0xf]
        %v1948 = vld [vmem:[#allocation19 + $0x14] sm:$0xf]
        %v1949 = vld [vmem:[#allocation19 + $0x18] sm:$0xf]
        %v1950 = vld [vmem:[#allocation19 + $0x1c] sm:$0xf]
        %v1951 = vld [vmem:[#allocation19 + $0x20] sm:$0xf]
        %v1952 = vld [vmem:[#allocation19 + $0x24] sm:$0xf]
        %v1953 = vld [vmem:[#allocation19 + $0x28] sm:$0xf]
        %v1954 = vld [vmem:[#allocation19 + $0x2c] sm:$0xf]
        %v1955 = vld [vmem:[#allocation19 + $0x30] sm:$0xf]
        %v1956 = vld [vmem:[#allocation19 + $0x34] sm:$0xf]
        %v1957 = vld [vmem:[#allocation19 + $0x38] sm:$0xf]
        %v1958 = vld [vmem:[#allocation19 + $0x3c] sm:$0xf]
        %v1959 = vld [vmem:[#allocation19 + $0x40] sm:$0xf]
        %v1960 = vld [vmem:[#allocation19 + $0x44] sm:$0xf]
        %v1961 = vld [vmem:[#allocation19 + $0x48] sm:$0xf]
        %v1962 = vld [vmem:[#allocation19 + $0x4c] sm:$0xf]
        %v1963 = vld [vmem:[#allocation19 + $0x50] sm:$0xf]
        %v1964 = vld [vmem:[#allocation19 + $0x54] sm:$0xf]
        %v1965 = vld [vmem:[#allocation19 + $0x58] sm:$0xf]
        %v1966 = vld [vmem:[#allocation19 + $0x5c] sm:$0xf]
        %v1967 = vld [vmem:[#allocation19 + $0x60] sm:$0xf]
        %v1968 = vld [vmem:[#allocation19 + $0x64] sm:$0xf]
        %v1969 = vld [vmem:[#allocation19 + $0x68] sm:$0xf]
        %v1970 = vld [vmem:[#allocation19 + $0x6c] sm:$0xf]
        %v1971 = vld [vmem:[#allocation19 + $0x70] sm:$0xf]
        %v1972 = vld [vmem:[#allocation19 + $0x74] sm:$0xf]
        %v1973 = vld [vmem:[#allocation19 + $0x78] sm:$0xf]
        %v1974 = vld [vmem:[#allocation19 + $0x7c] sm:$0xf]
        %v1975 = vld [vmem:[#allocation20] sm:$0x1]
        %v1977 = vlaneseq
        %v1978 = vshrl.u32 %v1977, 7
        %v1979 = vsub.s32 0, %v1978
        %v1980 = vrot.slane %v1975, %v1979
        %v2014 = vunpack.c.l.b16 %v1943
        %v2015 = vunpack.c.l.b16 %v1944
        %v2016 = vunpack.c.l.b16 %v1945
        %v2017 = vunpack.c.l.b16 %v1946
        %v2018 = vunpack.c.l.b16 %v1947
        %v2019 = vunpack.c.l.b16 %v1948
        %v2020 = vunpack.c.l.b16 %v1949
        %v2021 = vunpack.c.l.b16 %v1950
        %v2022 = vunpack.c.l.b16 %v1951
        %v2023 = vunpack.c.l.b16 %v1952
        %v2024 = vunpack.c.l.b16 %v1953
        %v2025 = vunpack.c.l.b16 %v1954
        %v2026 = vunpack.c.l.b16 %v1955
        %v2027 = vunpack.c.l.b16 %v1956
        %v2028 = vunpack.c.l.b16 %v1957
        %v2029 = vunpack.c.l.b16 %v1958
        %v2030 = vunpack.c.l.b16 %v1959
        %v2031 = vunpack.c.l.b16 %v1960
        %v2032 = vunpack.c.l.b16 %v1961
        %v2033 = vunpack.c.l.b16 %v1962
        %v2034 = vunpack.c.l.b16 %v1963
        %v2035 = vunpack.c.l.b16 %v1964
        %v2036 = vunpack.c.l.b16 %v1965
        %v2037 = vunpack.c.l.b16 %v1966
        %v2038 = vunpack.c.l.b16 %v1967
        %v2039 = vunpack.c.l.b16 %v1968
        %v2040 = vunpack.c.l.b16 %v1969
        %v2041 = vunpack.c.l.b16 %v1970
        %v2042 = vunpack.c.l.b16 %v1971
        %v2043 = vunpack.c.l.b16 %v1972
        %v2044 = vunpack.c.l.b16 %v1973
        %v2045 = vunpack.c.l.b16 %v1974
        %v2046 = vpack.c.b16 %v2015, %v2014
        %v2047 = vpack.c.b16 %v2017, %v2016
        %v2048 = vpack.c.b16 %v2019, %v2018
        %v2049 = vpack.c.b16 %v2021, %v2020
        %v2050 = vpack.c.b16 %v2023, %v2022
        %v2051 = vpack.c.b16 %v2025, %v2024
        %v2052 = vpack.c.b16 %v2027, %v2026
        %v2053 = vpack.c.b16 %v2029, %v2028
        %v2054 = vpack.c.b16 %v2031, %v2030
        %v2055 = vpack.c.b16 %v2033, %v2032
        %v2056 = vpack.c.b16 %v2035, %v2034
        %v2057 = vpack.c.b16 %v2037, %v2036
        %v2058 = vpack.c.b16 %v2039, %v2038
        %v2059 = vpack.c.b16 %v2041, %v2040
        %v2060 = vpack.c.b16 %v2043, %v2042
        %v2061 = vpack.c.b16 %v2045, %v2044
        %2078 = vmatprep.subr.bf16.mxu0 0
        %2079 = vmatpush1.bf16.msra.mxu0 %v2046
        %2080 = vmatprep.subr.bf16.mxu0 0
        %2081 = vmatpush1.bf16.msra.mxu0 %v2047
        %2082 = vmatprep.subr.bf16.mxu0 0
        %2083 = vmatpush1.bf16.msra.mxu0 %v2048
        %2084 = vmatprep.subr.bf16.mxu0 0
        %2085 = vmatpush1.bf16.msra.mxu0 %v2049
        %2086 = vmatprep.subr.bf16.mxu0 0
        %2087 = vmatpush1.bf16.msra.mxu0 %v2050
        %2088 = vmatprep.subr.bf16.mxu0 0
        %2089 = vmatpush1.bf16.msra.mxu0 %v2051
        %2090 = vmatprep.subr.bf16.mxu0 0
        %2091 = vmatpush1.bf16.msra.mxu0 %v2052
        %2092 = vmatprep.subr.bf16.mxu0 0
        %2093 = vmatpush1.bf16.msra.mxu0 %v2053
        %2094 = vmatprep.subr.bf16.mxu0 0
        %2095 = vmatpush1.bf16.msra.mxu0 %v2054
        %2096 = vmatprep.subr.bf16.mxu0 0
        %2097 = vmatpush1.bf16.msra.mxu0 %v2055
        %2098 = vmatprep.subr.bf16.mxu0 0
        %2099 = vmatpush1.bf16.msra.mxu0 %v2056
        %2100 = vmatprep.subr.bf16.mxu0 0
        %2101 = vmatpush1.bf16.msra.mxu0 %v2057
        %2102 = vmatprep.subr.bf16.mxu0 0
        %2103 = vmatpush1.bf16.msra.mxu0 %v2058
        %2104 = vmatprep.subr.bf16.mxu0 0
        %2105 = vmatpush1.bf16.msra.mxu0 %v2059
        %2106 = vmatprep.subr.bf16.mxu0 0
        %2107 = vmatpush1.bf16.msra.mxu0 %v2060
        %2108 = vmatprep.subr.bf16.mxu0 0
        %2109 = vmatpush1.bf16.msra.mxu0 %v2061
        %2110 = vmatprep.mubr.bf16.mxu0 %v1942
        %2111 = vmatmul.mubr.bf16.gmra.mrb[0].mxu0 %v1941
        %v2112 = vpop.f32.mrb[0].mxu0
        %v2113 = vadd.f32 %v1980, %v2112
        %v2114 = vpop.f32.mrb[0].mxu0
        %v2115 = vpop.f32.mrb[0].mxu0
        %v2116 = vadd.f32 %v1980, %v2115
        %v2117 = vpop.f32.mrb[0].mxu0
        %2118 = vdwg.mxu0
        %v2119 = vadd.f32 %v1751, %v2113
        %v2120 = vadd.f32 %v1752, %v2116
        %v2121 = vld [vmem:[#allocation22] sm:$0x1]
        %v2122 = vld [vmem:[#allocation23] sm:$0x1]
        %2123 = vadd.xlane.f32.xlu0 %v2119
        %v2124 = vpop.xlane.xlu0 %2123
        %2125 = vadd.xlane.f32.xlu0 %v2120
        %v2126 = vpop.xlane.xlu0 %2125
        %v2127 = vmul.f32 %v2124, %v1718
        %v2128 = vmul.f32 %v2126, %v1718
        %v2129 = vsub.f32 %v2119, %v2127
        %v2130 = vsub.f32 %v2120, %v2128
        %v2131 = vmul.f32 %v2129, %v2129
        %v2132 = vmul.f32 %v2130, %v2130
        %2133 = vadd.xlane.f32.xlu0 %v2131
        %v2134 = vpop.xlane.xlu0 %2133
        %2135 = vadd.xlane.f32.xlu0 %v2132
        %v2136 = vpop.xlane.xlu0 %2135
        %v2137 = vmul.f32 %v2134, %v1718
        %v2138 = vmul.f32 %v2136, %v1718
        %v2139 = vadd.f32 %v2137, 1e-05
        %v2140 = vadd.f32 %v2138, 1e-05
        %v2141 = vrsqrt.pop %v2139
        %v2142 = vrsqrt.pop %v2140
        %v2143 = vmul.f32 %v2129, %v2141
        %v2144 = vmul.f32 %v2130, %v2142
        %v2146 = vlaneseq
        %v2147 = vshrl.u32 %v2146, 7
        %v2148 = vsub.s32 0, %v2147
        %v2149 = vrot.slane %v2121, %v2148
        %v2151 = vmul.f32 %v2143, %v2149
        %v2152 = vmul.f32 %v2144, %v2149
        %v2154 = vlaneseq
        %v2155 = vshrl.u32 %v2154, 7
        %v2156 = vsub.s32 0, %v2155
        %v2157 = vrot.slane %v2122, %v2156
        %v2159 = vadd.f32 %v2151, %v2157
        %v2160 = vadd.f32 %v2152, %v2157
        %2161 = vst [vmem:[%s677] sm:$0xff] %v2159
        %2162 = vst [vmem:[%s677 + $0x8] sm:$0xff] %v2160
        %s2163 = sand.u32 %s352, 1
        %s2164 = scalar_lea.sflag [#allocation4], %s2163
        %s2165 = sand.u32 %s352, 1
        %s2166 = smul.addr %s2165, 16
        %s2167 = scalar_lea.vmem [#allocation25], %s2166
        // Predicated region
        $region133: #{_lambda_.4} parent=75 // pred_check
          %p2168 = pneg %p362
        $region134: #{_lambda_.4} parent=75 // pred_check_branch
          %2170 = sbr.rel (%p2168) target = $region136
        $region135: #{_lambda_.4} parent=75 // pred_region
          %s2172 = ssub.s32 256, 256
          %2173 = vsyncadd %s2164, %s2172
          %s2174 = smul.addr %s40, 2
          %s2175 = smul.addr %s2174, 128
          %s2176 = scalar_lea.hbm %s14, %s2175
          %s2177 = sshll.u32 %s2167, 4
          %s2178 = int_to_ptr.vmem [resolvable:$true] %s2177
          %2183 = dma.vmem_to_hbm [thread:$0]  %s2178, 256, %s2176, %s2164, 128, 128, 8
        $region136: #{_lambda_.4} parent=75 // pred_fallthru
          _
      $region76: #{_lambda_.4} parent=5 // pred_fallthru
        _
      %p2184 = scmp.le.s32.totalorder 2, %s35
      // Predicated region
      $region137: #{_lambda_.4} parent=5 // pred_check
        %p2185 = pneg %p2184
      $region138: #{_lambda_.4} parent=5 // pred_check_branch
        %2187 = sbr.rel (%p2185) target = $region140
      $region139: #{_lambda_.4} parent=5 // pred_region
        %s2188 = ssub.s32 %s35, 2
        // Predicated region
        $region141: #{_lambda_.4} parent=139 // pred_check
          %p2189 = pneg %p368
        $region142: #{_lambda_.4} parent=139 // pred_check_branch
          %2191 = sbr.rel (%p2189) target = $region144
        $region143: #{_lambda_.4} parent=139 // pred_region
          %s2192 = sand.u32 %s353, 1
          %s2193 = scalar_lea.sflag [#allocation4], %s2192
          %s2194 = sand.u32 %s353, 1
          %s2195 = smul.addr %s2194, 16
          %s2196 = scalar_lea.vmem [#allocation25], %s2195
          %2197 = dma.done %s2193, 256
        $region144: #{_lambda_.4} parent=139 // pred_fallthru
          _
      $region140: #{_lambda_.4} parent=5 // pred_fallthru
        _
    $region6: #{_lambda_.4} parent=1 // loop_footer
      %s39 = sadd.s32 1, %s35
    $region7: #{_lambda_.4} parent=1 // loop_footer_branch
      %34 = sbr.rel target = $region3
    $region8: #{_lambda_.4} parent=1 // loop_exit
      _
    %2198 = vsyncpa [#allocation3], 1
    %s2199 = scalar_lea.sflag [#allocation3], 1
    %2200 = vsyncpa %s2199, 1
    %2201 = vsyncpa [#allocation6], 1
    %s2202 = scalar_lea.sflag [#allocation6], 1
    %2203 = vsyncpa %s2202, 1
    %2204 = vsyncpa [#allocation9], 1
    %2205 = vsyncpa [#allocation12], 1
    %2206 = vsyncpa [#allocation15], 1
    %2207 = vsyncpa [#allocation18], 1
    %2208 = vsyncpa [#allocation21], 1
    %2209 = vsyncpa [#allocation24], 1
    %2210 = vsyncpa [#allocation4], 1
    %s2211 = scalar_lea.sflag [#allocation4], 1
    %2212 = vsyncpa %s2211, 1

</llo_original>
